<compile_context>
chip_gen: v6e
topology: v6e:2x2x1
jax: 0.10.0
libtpu: 0.0.40
codegen_flags: <defaults>
</compile_context>

<pallas_src>
import jax
import jax.numpy as jnp
import numpy as np
from jax import lax
from jax.experimental import pallas as pl
from jax.experimental.pallas import tpu as pltpu


def _round_up(x, m):
    return ((x + m - 1) // m) * m


def _edge_mlp_kernel(e_ref, idx_ref, we_ref, z_ref, o_ref):
    tm = e_ref.shape[0]
    n_z = z_ref.shape[0]
    cdt = we_ref.dtype                       # compute dtype (bf16 or f32)

    packed = idx_ref[...]                    # (tm, 1) int32: (src<<16) | (dst + n_u_pad)
    src = packed >> 16                       # src < 32768 -> arithmetic shift == logical
    dst = packed & 0xFFFF                    # already offset by n_u_pad in the wrapper

    # Single "two-hot" selecting both precomputed node rows of Z with one MXU dot.
    # (src rows live in [0, n_u_pad), offset dst rows in [n_u_pad, n_z): disjoint.)
    iota = lax.broadcasted_iota(jnp.int32, (tm, n_z), 1)
    sel = (iota == src) | (iota == dst)
    two_hot = jnp.where(sel, 1.0, 0.0).astype(z_ref.dtype)   # exact in bf16

    acc = jnp.dot(e_ref[...].astype(cdt), we_ref[...],
                  preferred_element_type=jnp.float32)
    acc = acc + jnp.dot(two_hot, z_ref[...], preferred_element_type=jnp.float32)
    o_ref[...] = acc.astype(o_ref.dtype)


def mlp_forward(src_idx, dst_idx, e_feat, u_feat, v_feat, w, b, *,
                tm=1024, input_dtype=jnp.bfloat16, out_dtype=jnp.float32):
    """Mirrors MLP.forward.

    w: PyTorch-layout [out_dim, in_dim] with in_dim = d_e + d_u + d_v; b: [out_dim].
    Returns per-edge scores [E, out_dim] in `out_dtype` (f32 by default).
    """
    E, d_e = e_feat.shape
    n_u, d_u = u_feat.shape
    n_v, d_v = v_feat.shape
    out_dim = w.shape[0]
    assert w.shape[1] == d_e + d_u + d_v
    assert n_u < (1 << 15) and n_v < (1 << 15), "packed int32 index assumes <32768 nodes"

    # Split the PyTorch weight along in_dim; [d, out] layout.
    w_t = jnp.transpose(w).astype(jnp.float32)
    w_e = w_t[:d_e].astype(input_dtype)
    w_u = w_t[d_e:d_e + d_u]
    w_v = w_t[d_e + d_u:]

    # Per-node partial scores (tiny resident [N, out] table); bias folded into the
    # u-rows since every edge selects exactly one u-row and one v-row.
    zu = jnp.dot(u_feat.astype(jnp.float32), w_u) + b.astype(jnp.float32)[None, :]
    zv = jnp.dot(v_feat.astype(jnp.float32), w_v)
    n_u_pad = _round_up(n_u, 8)
    n_v_pad = _round_up(n_v, 8)
    z = jnp.concatenate(
        [jnp.pad(zu, ((0, n_u_pad - n_u), (0, 0))),
         jnp.pad(zv, ((0, n_v_pad - n_v), (0, 0)))],
        axis=0).astype(input_dtype)                       # [n_u_pad + n_v_pad, out]
    n_z = n_u_pad + n_v_pad
    # TODO(synk): for node tables too large to stay resident in VMEM (or when the
    # O(tm*n_z) two-hot build binds the VALU), fall back to a wrapper-side gather
    # or an in-kernel DMA row-gather instead of the selection matmul.

    # One packed int32 per edge: high 16 bits = src, low 16 = dst + n_u_pad.
    idx = ((src_idx.astype(jnp.int32) << 16)
           | (dst_idx.astype(jnp.int32) + n_u_pad)).reshape(E, 1)

    # Edge features streamed as-is (f32), cast in-kernel: avoids a full extra
    # HBM read+write pass over the dominant stream in the wrapper.
    e_in = e_feat.astype(jnp.float32)

    # Tile the edge axis; cdiv grid handles the non-divisible tail (masked store).
    tm = _round_up(int(min(tm, _round_up(max(E, 1), 8))), 8)
    grid = (pl.cdiv(E, tm),)

    out = pl.pallas_call(
        _edge_mlp_kernel,
        out_shape=jax.ShapeDtypeStruct((E, out_dim), out_dtype),
        grid_spec=pltpu.PrefetchScalarGridSpec(
            num_scalar_prefetch=0,
            grid=grid,
            in_specs=[
                pl.BlockSpec((tm, d_e), lambda i: (i, 0)),        # edge feature tile
                pl.BlockSpec((tm, 1), lambda i: (i, 0)),          # packed [src|dst] idx
                pl.BlockSpec((d_e, out_dim), lambda i: (0, 0)),   # W_e        (resident)
                pl.BlockSpec((n_z, out_dim), lambda i: (0, 0)),   # [ZU+b; ZV] (resident)
            ],
            out_specs=pl.BlockSpec((tm, out_dim), lambda i: (i, 0)),
        ),
        # TODO(synk): on v7x switch this axis to pltpu.CORE_PARALLEL (with tm chosen
        # so the grid has >=8 steps) to actually shard edges across the two TCs.
        compiler_params=pltpu.CompilerParams(
            dimension_semantics=("parallel",)),
    )(e_in, idx, w_e, z)
    return out


if __name__ == "__main__":
    # Small synthetic bipartite graph u --forward--> v.
    E = 2500                     # not a multiple of the tile -> exercises the cdiv tail
    N_U, N_V = 20, 45            # node counts (padded to sublane multiples internally)
    d_e, d_u, d_v = 32, 32, 32
    in_dim = d_e + d_u + d_v
    out_dim = 32

    key = jax.random.PRNGKey(0)
    k1, k2, k3, k4, k5, k6, k7 = jax.random.split(key, 7)

    e_feat = jax.random.normal(k1, (E, d_e), dtype=jnp.float32)
    u_feat = jax.random.normal(k2, (N_U, d_u), dtype=jnp.float32)
    v_feat = jax.random.normal(k3, (N_V, d_v), dtype=jnp.float32)
    src_idx = jax.random.randint(k4, (E,), 0, N_U)
    dst_idx = jax.random.randint(k5, (E,), 0, N_V)

    # Deterministic Linear(in_dim, out_dim) params (PyTorch layout: W [out, in]).
    bound = 1.0 / np.sqrt(in_dim)
    w = jax.random.uniform(k6, (out_dim, in_dim), minval=-bound, maxval=bound,
                           dtype=jnp.float32)
    b = jax.random.uniform(k7, (out_dim,), minval=-bound, maxval=bound,
                           dtype=jnp.float32)

    # Pure-JAX reference: concat then linear (exactly the PyTorch forward).
    x_ref = jnp.concatenate([e_feat, u_feat[src_idx], v_feat[dst_idx]], axis=-1)
    ref = x_ref @ w.T + b

    # Full-precision path: tight check.
    score_f32 = jax.block_until_ready(
        mlp_forward(src_idx, dst_idx, e_feat, u_feat, v_feat, w, b,
                    input_dtype=jnp.float32))
    np.testing.assert_allclose(np.asarray(score_f32), np.asarray(ref),
                               rtol=1e-5, atol=1e-5)

    # Default bf16 fast path (bf16 weights / node table / in-kernel edge cast):
    # looser tolerance since node terms are now bf16-rounded too.
    score_bf16 = jax.block_until_ready(
        mlp_forward(src_idx, dst_idx, e_feat, u_feat, v_feat, w, b))
    np.testing.assert_allclose(np.asarray(score_bf16), np.asarray(ref),
                               rtol=2e-2, atol=4e-2)

    print("KERNEL_OK")
</pallas_src>

<mosaic_0001>
module attributes {stable_mosaic.version = 11 : i64} {
  func.func @_edge_mlp_kernel(%arg0: i32, %arg1: memref<1024x32xf32, #tpu.memory_space<vmem>>, %arg2: memref<1024x1xi32, #tpu.memory_space<vmem>>, %arg3: memref<32x32xf32, #tpu.memory_space<vmem>>, %arg4: memref<72x32xf32, #tpu.memory_space<vmem>>, %arg5: memref<1024x32xf32, #tpu.memory_space<vmem>>) attributes {dimension_semantics = [#tpu.dimension_semantics<parallel>], iteration_bounds = array<i64: 3>, scalar_prefetch = 0 : i64, scratch_operands = 0 : i64, tpu.core_type = #tpu.core_type<tc>, window_params = [{transform_indices = @transform_0, window_bounds = array<i64: 1024, 32>}, {transform_indices = @transform_1, window_bounds = array<i64: 1024, 1>}, {pipeline_mode = #tpu.pipeline_mode<synchronous>, transform_indices = @transform_2, window_bounds = array<i64: 32, 32>}, {pipeline_mode = #tpu.pipeline_mode<synchronous>, transform_indices = @transform_3, window_bounds = array<i64: 72, 32>}, {transform_indices = @transform_4, window_bounds = array<i64: 1024, 32>}]} {
    %c0 = arith.constant 0 : index
    %c0_0 = arith.constant 0 : index
    %0 = vector.load %arg2[%c0, %c0_0] : memref<1024x1xi32, #tpu.memory_space<vmem>>, vector<1024x1xi32>
    %c16_i32 = arith.constant 16 : i32
    %1 = vector.broadcast %c16_i32 : i32 to vector<1024x1xi32>
    %2 = arith.shrsi %0, %1 : vector<1024x1xi32>
    %c65535_i32 = arith.constant 65535 : i32
    %3 = vector.broadcast %c65535_i32 : i32 to vector<1024x1xi32>
    %4 = arith.andi %0, %3 : vector<1024x1xi32>
    %5 = tpu.iota {dimensions = array<i32: 1>} : vector<1024x72xi32>
    %6 = vector.broadcast %2 : vector<1024x1xi32> to vector<1024x72xi32>
    %7 = arith.cmpi eq, %5, %6 : vector<1024x72xi32>
    %8 = vector.broadcast %4 : vector<1024x1xi32> to vector<1024x72xi32>
    %9 = arith.cmpi eq, %5, %8 : vector<1024x72xi32>
    %10 = arith.ori %7, %9 : vector<1024x72xi1>
    %cst = arith.constant 1.000000e+00 : f32
    %cst_1 = arith.constant 0.000000e+00 : f32
    %11 = vector.broadcast %cst : f32 to vector<1024x72xf32>
    %12 = vector.broadcast %cst_1 : f32 to vector<1024x72xf32>
    %13 = arith.select %10, %11, %12 : vector<1024x72xi1>, vector<1024x72xf32>
    %c0_2 = arith.constant 0 : index
    %c0_3 = arith.constant 0 : index
    %14 = vector.load %arg1[%c0_2, %c0_3] : memref<1024x32xf32, #tpu.memory_space<vmem>>, vector<1024x32xf32>
    %c0_4 = arith.constant 0 : index
    %c0_5 = arith.constant 0 : index
    %15 = vector.load %arg3[%c0_4, %c0_5] : memref<32x32xf32, #tpu.memory_space<vmem>>, vector<32x32xf32>
    %cst_6 = arith.constant dense<0.000000e+00> : vector<1024x32xf32>
    %16 = tpu.matmul %14, %15, %cst_6 {dimension_numbers = #tpu.dot_dimension_numbers<[1], [0], [0], [1], [0, 0, 1, 1], [], []>} : vector<1024x32xf32>, vector<32x32xf32>, vector<1024x32xf32> -> vector<1024x32xf32>
    %c0_7 = arith.constant 0 : index
    %c0_8 = arith.constant 0 : index
    %17 = vector.load %arg4[%c0_7, %c0_8] : memref<72x32xf32, #tpu.memory_space<vmem>>, vector<72x32xf32>
    %cst_9 = arith.constant dense<0.000000e+00> : vector<1024x32xf32>
    %18 = tpu.matmul %13, %17, %cst_9 {dimension_numbers = #tpu.dot_dimension_numbers<[1], [0], [0], [1], [0, 0, 1, 1], [], []>} : vector<1024x72xf32>, vector<72x32xf32>, vector<1024x32xf32> -> vector<1024x32xf32>
    %19 = arith.addf %16, %18 : vector<1024x32xf32>
    %c0_10 = arith.constant 0 : index
    %c0_11 = arith.constant 0 : index
    %20 = vector.load %arg5[%c0_10, %c0_11] : memref<1024x32xf32, #tpu.memory_space<vmem>>, vector<1024x32xf32>
    tpu.vector_store %arg5[%c0_10, %c0_11], %19 {strides = array<i32>} : memref<1024x32xf32, #tpu.memory_space<vmem>>, vector<1024x32xf32>,
    return
  }
  func.func @transform_0(%arg0: i32) -> (i32, i32) {
    %c0_i32 = arith.constant 0 : i32
    %c0_i32_0 = arith.constant 0 : i32
    return %arg0, %c0_i32 : i32, i32
  }
  func.func @transform_1(%arg0: i32) -> (i32, i32) {
    %c0_i32 = arith.constant 0 : i32
    %c0_i32_0 = arith.constant 0 : i32
    return %arg0, %c0_i32 : i32, i32
  }
  func.func @transform_2(%arg0: i32) -> (i32, i32) {
    %c0_i32 = arith.constant 0 : i32
    %c0_i32_0 = arith.constant 0 : i32
    %c0_i32_1 = arith.constant 0 : i32
    return %c0_i32, %c0_i32_0 : i32, i32
  }
  func.func @transform_3(%arg0: i32) -> (i32, i32) {
    %c0_i32 = arith.constant 0 : i32
    %c0_i32_0 = arith.constant 0 : i32
    %c0_i32_1 = arith.constant 0 : i32
    return %c0_i32, %c0_i32_0 : i32, i32
  }
  func.func @transform_4(%arg0: i32) -> (i32, i32) {
    %c0_i32 = arith.constant 0 : i32
    %c0_i32_0 = arith.constant 0 : i32
    return %arg0, %c0_i32 : i32, i32
  }
}

</mosaic_0001>

<llo_original>
// kernel: tpu_custom_call.1
$region0: #{tpu_custom_call.1}
  #allocation0 [shape = 'u32[]', space=smem, size = 0x4, offset = 0x4, fixed_abs, tag = 'smem constant byte address 0x4 - core index']
  #allocation1 [shape = 'u32[144,128]{1,0:T(1,128)}', space=vmem, size = 0x12000, scoped, tag = 'internal scratch']
  %s0 = inlined_call_operand.vmem [shape: f32[2500,32], index: 0, kind: input, shape index: {}]
  %s1 = inlined_call_operand.vmem [shape: s32[2500,1], index: 1, kind: input, shape index: {}]
  %s2 = inlined_call_operand.vmem [shape: f32[32,32], index: 2, kind: input, shape index: {}]
  %s3 = inlined_call_operand.vmem [shape: f32[72,32], index: 3, kind: input, shape index: {}]
  %s4 = inlined_call_operand.vmem [shape: f32[2500,32], index: 4, kind: output, shape index: {}]
  %s5 = sld [smem:[#allocation0]]
  $region97: #{tpu_custom_call.1} parent=0
    _
  %s7 = ssub.s32 1, %s5
  %s8 = scalar_select 0, %s7, %s5
  $region1: #{tpu_custom_call.1} parent=0
    #allocation2 [shape = 'u8[1048576]{0}', space=vmem, size = 0x100000, scoped, tag = 'output window, operand 0']
    loop: start=0, step=1, limit=5
    $region2: #{tpu_custom_call.1} parent=1 // loop_pre_header
      _
    $region3: #{tpu_custom_call.1} parent=1 // loop_header
      %s10 = sphi 0, %s14
      %p11 = scmp.ge.s32.totalorder %s10, 5
      %s20 = sphi 0, %s22
      %s23 = sphi 0, %s20
      %s24 = sphi 0, %s23
      %s40 = sphi 0, %s24
      %s46 = sphi 0, %s48
      %s49 = sphi 0, %s46
      %s50 = sphi 0, %s49
      %s66 = sphi 0, %s50
      %s70 = sphi 0, %s70
      %s72 = sphi 0, %s70
      %s73 = sphi 0, %s72
      %s87 = sphi 0, %s73
      %s91 = sphi 0, %s91
      %s93 = sphi 0, %s91
      %s94 = sphi 0, %s93
      %s108 = sphi 0, %s94
      %s114 = sphi 0, %s116
      %s117 = sphi 0, %s114
      %s118 = sphi 0, %s117
      %s134 = sphi 0, %s118
    $region4: #{tpu_custom_call.1} parent=1 // loop_header_branch
      %13 = sbr.rel (%p11) target = $region8
    $region5: #{tpu_custom_call.1} parent=1 // loop_body
      %s15 = ssub.s32 %s10, 1
      %s16 = ssub.s32 %s10, 2
      %s17 = sadd.s32 %s10, 1
      %s18 = ssub.s32 %s10, %s17
      %p19 = scmp.eq.s32.totalorder %s18, 0
      %s21 = sadd.s32 %s20, 1
      %s22 = scalar_select %p19, %s20, %s21
      %p25 = pneg %p19
      %p26 = scmp.eq.s32.totalorder %s10, 2
      %p27 = por %p25, %p26
      %p28 = scmp.ne.s32.totalorder %s20, %s23
      %p29 = scmp.eq.s32.totalorder %s10, 0
      %p30 = por %p28, %p29
      %p31 = scmp.ne.s32.totalorder %s20, %s23
      %p32 = scmp.eq.s32.totalorder %s15, 2
      %p33 = por %p31, %p32
      %p34 = scmp.ne.s32.totalorder %s23, %s24
      %p35 = scmp.eq.s32.totalorder %s15, 0
      %p36 = por %p34, %p35
      %p37 = scmp.ne.s32.totalorder %s23, %s24
      %p38 = scmp.eq.s32.totalorder %s16, 2
      %p39 = por %p37, %p38
      %p41 = scmp.ne.s32.totalorder %s24, %s40
      %p42 = scmp.eq.s32.totalorder %s16, 0
      %p43 = por %p41, %p42
      %s44 = ssub.s32 %s10, %s17
      %p45 = scmp.eq.s32.totalorder %s44, 0
      %s47 = sadd.s32 %s46, 1
      %s48 = scalar_select %p45, %s46, %s47
      %p51 = pneg %p45
      %p52 = scmp.eq.s32.totalorder %s10, 2
      %p53 = por %p51, %p52
      %p54 = scmp.ne.s32.totalorder %s46, %s49
      %p55 = scmp.eq.s32.totalorder %s10, 0
      %p56 = por %p54, %p55
      %p57 = scmp.ne.s32.totalorder %s46, %s49
      %p58 = scmp.eq.s32.totalorder %s15, 2
      %p59 = por %p57, %p58
      %p60 = scmp.ne.s32.totalorder %s49, %s50
      %p61 = scmp.eq.s32.totalorder %s15, 0
      %p62 = por %p60, %p61
      %p63 = scmp.ne.s32.totalorder %s49, %s50
      %p64 = scmp.eq.s32.totalorder %s16, 2
      %p65 = por %p63, %p64
      %p67 = scmp.ne.s32.totalorder %s50, %s66
      %p68 = scmp.eq.s32.totalorder %s16, 0
      %p69 = por %p67, %p68
      %s71 = sadd.s32 %s70, 1
      %p74 = scmp.eq.s32.totalorder %s10, 2
      %p75 = scmp.ne.s32.totalorder %s70, %s72
      %p76 = scmp.eq.s32.totalorder %s10, 0
      %p77 = por %p75, %p76
      %p78 = scmp.ne.s32.totalorder %s70, %s72
      %p79 = scmp.eq.s32.totalorder %s15, 2
      %p80 = por %p78, %p79
      %p81 = scmp.ne.s32.totalorder %s72, %s73
      %p82 = scmp.eq.s32.totalorder %s15, 0
      %p83 = por %p81, %p82
      %p84 = scmp.ne.s32.totalorder %s72, %s73
      %p85 = scmp.eq.s32.totalorder %s16, 2
      %p86 = por %p84, %p85
      %p88 = scmp.ne.s32.totalorder %s73, %s87
      %p89 = scmp.eq.s32.totalorder %s16, 0
      %p90 = por %p88, %p89
      %s92 = sadd.s32 %s91, 1
      %p95 = scmp.eq.s32.totalorder %s10, 2
      %p96 = scmp.ne.s32.totalorder %s91, %s93
      %p97 = scmp.eq.s32.totalorder %s10, 0
      %p98 = por %p96, %p97
      %p99 = scmp.ne.s32.totalorder %s91, %s93
      %p100 = scmp.eq.s32.totalorder %s15, 2
      %p101 = por %p99, %p100
      %p102 = scmp.ne.s32.totalorder %s93, %s94
      %p103 = scmp.eq.s32.totalorder %s15, 0
      %p104 = por %p102, %p103
      %p105 = scmp.ne.s32.totalorder %s93, %s94
      %p106 = scmp.eq.s32.totalorder %s16, 2
      %p107 = por %p105, %p106
      %p109 = scmp.ne.s32.totalorder %s94, %s108
      %p110 = scmp.eq.s32.totalorder %s16, 0
      %p111 = por %p109, %p110
      %s112 = ssub.s32 %s10, %s17
      %p113 = scmp.eq.s32.totalorder %s112, 0
      %s115 = sadd.s32 %s114, 1
      %s116 = scalar_select %p113, %s114, %s115
      %p119 = pneg %p113
      %p120 = scmp.eq.s32.totalorder %s10, 2
      %p121 = por %p119, %p120
      %p122 = scmp.ne.s32.totalorder %s114, %s117
      %p123 = scmp.eq.s32.totalorder %s10, 0
      %p124 = por %p122, %p123
      %p125 = scmp.ne.s32.totalorder %s114, %s117
      %p126 = scmp.eq.s32.totalorder %s15, 2
      %p127 = por %p125, %p126
      %p128 = scmp.ne.s32.totalorder %s117, %s118
      %p129 = scmp.eq.s32.totalorder %s15, 0
      %p130 = por %p128, %p129
      %p131 = scmp.ne.s32.totalorder %s117, %s118
      %p132 = scmp.eq.s32.totalorder %s16, 2
      %p133 = por %p131, %p132
      %p135 = scmp.ne.s32.totalorder %s118, %s134
      %p136 = scmp.eq.s32.totalorder %s16, 0
      %p137 = por %p135, %p136
      %p138 = scmp.le.s32.totalorder 1, %s10
      %p139 = scmp.lt.s32.totalorder %s10, 4
      %p140 = pnand %p138, %p139
      %p141 = pneg %p140
      // Predicated region
      $region9: #{tpu_custom_call.1} parent=5 // pred_check
        _
      $region10: #{tpu_custom_call.1} parent=5 // pred_check_branch
        %143 = sbr.rel (%p140) target = $region12
      $region11: #{tpu_custom_call.1} parent=5 // pred_region
        %s144 = ssub.s32 %s10, 1
        // Predicated region
        $region13: #{tpu_custom_call.1} parent=11 // pred_check
          %p145 = pneg %p83
        $region14: #{tpu_custom_call.1} parent=11 // pred_check_branch
          %147 = sbr.rel (%p145) target = $region16
        $region15: #{tpu_custom_call.1} parent=11 // pred_region
          _
        $region16: #{tpu_custom_call.1} parent=11 // pred_fallthru
          _
        // Predicated region
        $region17: #{tpu_custom_call.1} parent=11 // pred_check
          %p148 = pneg %p104
        $region18: #{tpu_custom_call.1} parent=11 // pred_check_branch
          %150 = sbr.rel (%p148) target = $region20
        $region19: #{tpu_custom_call.1} parent=11 // pred_region
          _
        $region20: #{tpu_custom_call.1} parent=11 // pred_fallthru
          _
      $region12: #{tpu_custom_call.1} parent=5 // pred_fallthru
        _
      %p151 = scmp.lt.s32.totalorder %s10, 3
      // Predicated region
      $region21: #{tpu_custom_call.1} parent=5 // pred_check
        %p152 = pneg %p151
      $region22: #{tpu_custom_call.1} parent=5 // pred_check_branch
        %154 = sbr.rel (%p152) target = $region24
      $region23: #{tpu_custom_call.1} parent=5 // pred_region
        // Predicated region
        $region25: #{tpu_custom_call.1} parent=23 // pred_check
          %p155 = pneg %p30
        $region26: #{tpu_custom_call.1} parent=23 // pred_check_branch
          %157 = sbr.rel (%p155) target = $region28
        $region27: #{tpu_custom_call.1} parent=23 // pred_region
          %s158 = smul.u32 128, %s10
          %s159 = ssub.s32 313, %s158
          %p160 = scmp.lt.s32.totalorder %s159, 128
          %s161 = scalar_select %p160, %s159, 128
          %s162 = smul.u32 128, %s161
          %p163 = scmp.lt.s32.totalorder %s158, 312
          %s164 = scalar_select %p163, %s158, 312
          %s165 = smul.addr %s164, 8
          %s166 = scalar_lea.vmem %s0, %s165
          %s167 = smul.u32 128, %s10
          %s168 = ssub.s32 313, %s167
          %p169 = scmp.lt.s32.totalorder %s168, 128
          %s170 = scalar_select %p169, %s168, 128
          %s171 = smul.u32 128, %s170
        $region28: #{tpu_custom_call.1} parent=23 // pred_fallthru
          _
        // Predicated region
        $region29: #{tpu_custom_call.1} parent=23 // pred_check
          %p172 = pneg %p56
        $region30: #{tpu_custom_call.1} parent=23 // pred_check_branch
          %174 = sbr.rel (%p172) target = $region32
        $region31: #{tpu_custom_call.1} parent=23 // pred_region
          %s175 = smul.u32 128, %s10
          %s176 = ssub.s32 313, %s175
          %p177 = scmp.lt.s32.totalorder %s176, 128
          %s178 = scalar_select %p177, %s176, 128
          %s179 = smul.u32 128, %s178
          %p180 = scmp.lt.s32.totalorder %s175, 312
          %s181 = scalar_select %p180, %s175, 312
          %s182 = smul.addr %s181, 8
          %s183 = scalar_lea.vmem %s1, %s182
          %s184 = smul.u32 128, %s10
          %s185 = ssub.s32 313, %s184
          %p186 = scmp.lt.s32.totalorder %s185, 128
          %s187 = scalar_select %p186, %s185, 128
          %s188 = smul.u32 128, %s187
        $region32: #{tpu_custom_call.1} parent=23 // pred_fallthru
          _
      $region24: #{tpu_custom_call.1} parent=5 // pred_fallthru
        _
      %p189 = scmp.le.s32.totalorder 1, %s10
      %p190 = scmp.lt.s32.totalorder %s10, 4
      %p191 = pnand %p189, %p190
      %p192 = pneg %p191
      // Predicated region
      $region33: #{tpu_custom_call.1} parent=5 // pred_check
        _
      $region34: #{tpu_custom_call.1} parent=5 // pred_check_branch
        %194 = sbr.rel (%p191) target = $region36
      $region35: #{tpu_custom_call.1} parent=5 // pred_region
        %s195 = ssub.s32 %s10, 1
        %s196 = smul.u32 128, %s15
        %s197 = ssub.s32 313, %s196
        %p198 = scmp.lt.s32.totalorder %s197, 128
        %s199 = scalar_select %p198, %s197, 128
        %s200 = smul.u32 128, %s199
        %p201 = scmp.lt.s32.totalorder %s196, 312
        %s202 = scalar_select %p201, %s196, 312
        %s203 = smul.addr %s202, 8
        %s204 = scalar_lea.vmem %s0, %s203
        %p205 = pneg %p36
        %p206 = pneg %p33
        %s207 = smul.u32 128, %s15
        %s208 = ssub.s32 313, %s207
        %p209 = scmp.lt.s32.totalorder %s208, 128
        %s210 = scalar_select %p209, %s208, 128
        %s211 = smul.u32 128, %s210
        %p212 = scmp.lt.s32.totalorder %s207, 312
        %s213 = scalar_select %p212, %s207, 312
        %s214 = smul.addr %s213, 8
        %s215 = scalar_lea.vmem %s1, %s214
        %p216 = pneg %p62
        %p217 = pneg %p59
        %p218 = pneg %p83
        %p219 = pneg %p80
        %p220 = pneg %p104
        %p221 = pneg %p101
        %p222 = pneg %p130
        %p223 = pneg %p127
        %s224 = sand.u32 %s117, 1
        %s225 = sand.u32 %s117, 1
        %s226 = smul.addr %s225, 1024
        %s227 = scalar_lea.vmem [#allocation2], %s226
        %s228 = smul.u32 128, %s15
        %s229 = ssub.s32 313, %s228
        %p230 = scmp.lt.s32.totalorder %s229, 128
        %s231 = scalar_select %p230, %s229, 128
        %s232 = smul.u32 128, %s231
        %p233 = scmp.lt.s32.totalorder %s228, 312
        %s234 = scalar_select %p233, %s228, 312
        %s235 = smul.addr %s234, 8
        %s236 = scalar_lea.vmem %s0, %s235
        %s237 = smul.u32 128, %s15
        %s238 = ssub.s32 313, %s237
        %p239 = scmp.lt.s32.totalorder %s238, 128
        %s240 = scalar_select %p239, %s238, 128
        %s241 = smul.u32 128, %s240
        %s242 = smul.u32 128, %s15
        %s243 = ssub.s32 313, %s242
        %p244 = scmp.lt.s32.totalorder %s243, 128
        %s245 = scalar_select %p244, %s243, 128
        %s246 = smul.u32 128, %s245
        %p247 = scmp.lt.s32.totalorder %s242, 312
        %s248 = scalar_select %p247, %s242, 312
        %s249 = smul.addr %s248, 8
        %s250 = scalar_lea.vmem %s1, %s249
        %s251 = smul.u32 128, %s15
        %s252 = ssub.s32 313, %s251
        %p253 = scmp.lt.s32.totalorder %s252, 128
        %s254 = scalar_select %p253, %s252, 128
        %s255 = smul.u32 128, %s254
        %s256 = smul.u32 128, %s15
        %s257 = ssub.s32 313, %s256
        %p258 = scmp.lt.s32.totalorder %s257, 128
        %s259 = scalar_select %p258, %s257, 128
        %s260 = smul.u32 128, %s259
        %v261 = vld [vmem:[%s250] sm:$0xff]
        %v262 = vld [vmem:[%s250 + $0x8] sm:$0xff]
        %v263 = vld [vmem:[%s250 + $0x10] sm:$0xff]
        %v264 = vld [vmem:[%s250 + $0x18] sm:$0xff]
        %v265 = vld [vmem:[%s250 + $0x20] sm:$0xff]
        %v266 = vld [vmem:[%s250 + $0x28] sm:$0xff]
        %v267 = vld [vmem:[%s250 + $0x30] sm:$0xff]
        %v268 = vld [vmem:[%s250 + $0x38] sm:$0xff]
        %v269 = vld [vmem:[%s250 + $0x40] sm:$0xff]
        %v270 = vld [vmem:[%s250 + $0x48] sm:$0xff]
        %v271 = vld [vmem:[%s250 + $0x50] sm:$0xff]
        %v272 = vld [vmem:[%s250 + $0x58] sm:$0xff]
        %v273 = vld [vmem:[%s250 + $0x60] sm:$0xff]
        %v274 = vld [vmem:[%s250 + $0x68] sm:$0xff]
        %v275 = vld [vmem:[%s250 + $0x70] sm:$0xff]
        %v276 = vld [vmem:[%s250 + $0x78] sm:$0xff]
        %v277 = vld [vmem:[%s250 + $0x80] sm:$0xff]
        %v278 = vld [vmem:[%s250 + $0x88] sm:$0xff]
        %v279 = vld [vmem:[%s250 + $0x90] sm:$0xff]
        %v280 = vld [vmem:[%s250 + $0x98] sm:$0xff]
        %v281 = vld [vmem:[%s250 + $0xa0] sm:$0xff]
        %v282 = vld [vmem:[%s250 + $0xa8] sm:$0xff]
        %v283 = vld [vmem:[%s250 + $0xb0] sm:$0xff]
        %v284 = vld [vmem:[%s250 + $0xb8] sm:$0xff]
        %v285 = vld [vmem:[%s250 + $0xc0] sm:$0xff]
        %v286 = vld [vmem:[%s250 + $0xc8] sm:$0xff]
        %v287 = vld [vmem:[%s250 + $0xd0] sm:$0xff]
        %v288 = vld [vmem:[%s250 + $0xd8] sm:$0xff]
        %v289 = vld [vmem:[%s250 + $0xe0] sm:$0xff]
        %v290 = vld [vmem:[%s250 + $0xe8] sm:$0xff]
        %v291 = vld [vmem:[%s250 + $0xf0] sm:$0xff]
        %v292 = vld [vmem:[%s250 + $0xf8] sm:$0xff]
        %v293 = vld [vmem:[%s250 + $0x100] sm:$0xff]
        %v294 = vld [vmem:[%s250 + $0x108] sm:$0xff]
        %v295 = vld [vmem:[%s250 + $0x110] sm:$0xff]
        %v296 = vld [vmem:[%s250 + $0x118] sm:$0xff]
        %v297 = vld [vmem:[%s250 + $0x120] sm:$0xff]
        %v298 = vld [vmem:[%s250 + $0x128] sm:$0xff]
        %v299 = vld [vmem:[%s250 + $0x130] sm:$0xff]
        %v300 = vld [vmem:[%s250 + $0x138] sm:$0xff]
        %v301 = vld [vmem:[%s250 + $0x140] sm:$0xff]
        %v302 = vld [vmem:[%s250 + $0x148] sm:$0xff]
        %v303 = vld [vmem:[%s250 + $0x150] sm:$0xff]
        %v304 = vld [vmem:[%s250 + $0x158] sm:$0xff]
        %v305 = vld [vmem:[%s250 + $0x160] sm:$0xff]
        %v306 = vld [vmem:[%s250 + $0x168] sm:$0xff]
        %v307 = vld [vmem:[%s250 + $0x170] sm:$0xff]
        %v308 = vld [vmem:[%s250 + $0x178] sm:$0xff]
        %v309 = vld [vmem:[%s250 + $0x180] sm:$0xff]
        %v310 = vld [vmem:[%s250 + $0x188] sm:$0xff]
        %v311 = vld [vmem:[%s250 + $0x190] sm:$0xff]
        %v312 = vld [vmem:[%s250 + $0x198] sm:$0xff]
        %v313 = vld [vmem:[%s250 + $0x1a0] sm:$0xff]
        %v314 = vld [vmem:[%s250 + $0x1a8] sm:$0xff]
        %v315 = vld [vmem:[%s250 + $0x1b0] sm:$0xff]
        %v316 = vld [vmem:[%s250 + $0x1b8] sm:$0xff]
        %v317 = vld [vmem:[%s250 + $0x1c0] sm:$0xff]
        %v318 = vld [vmem:[%s250 + $0x1c8] sm:$0xff]
        %v319 = vld [vmem:[%s250 + $0x1d0] sm:$0xff]
        %v320 = vld [vmem:[%s250 + $0x1d8] sm:$0xff]
        %v321 = vld [vmem:[%s250 + $0x1e0] sm:$0xff]
        %v322 = vld [vmem:[%s250 + $0x1e8] sm:$0xff]
        %v323 = vld [vmem:[%s250 + $0x1f0] sm:$0xff]
        %v324 = vld [vmem:[%s250 + $0x1f8] sm:$0xff]
        %v325 = vld [vmem:[%s250 + $0x200] sm:$0xff]
        %v326 = vld [vmem:[%s250 + $0x208] sm:$0xff]
        %v327 = vld [vmem:[%s250 + $0x210] sm:$0xff]
        %v328 = vld [vmem:[%s250 + $0x218] sm:$0xff]
        %v329 = vld [vmem:[%s250 + $0x220] sm:$0xff]
        %v330 = vld [vmem:[%s250 + $0x228] sm:$0xff]
        %v331 = vld [vmem:[%s250 + $0x230] sm:$0xff]
        %v332 = vld [vmem:[%s250 + $0x238] sm:$0xff]
        %v333 = vld [vmem:[%s250 + $0x240] sm:$0xff]
        %v334 = vld [vmem:[%s250 + $0x248] sm:$0xff]
        %v335 = vld [vmem:[%s250 + $0x250] sm:$0xff]
        %v336 = vld [vmem:[%s250 + $0x258] sm:$0xff]
        %v337 = vld [vmem:[%s250 + $0x260] sm:$0xff]
        %v338 = vld [vmem:[%s250 + $0x268] sm:$0xff]
        %v339 = vld [vmem:[%s250 + $0x270] sm:$0xff]
        %v340 = vld [vmem:[%s250 + $0x278] sm:$0xff]
        %v341 = vld [vmem:[%s250 + $0x280] sm:$0xff]
        %v342 = vld [vmem:[%s250 + $0x288] sm:$0xff]
        %v343 = vld [vmem:[%s250 + $0x290] sm:$0xff]
        %v344 = vld [vmem:[%s250 + $0x298] sm:$0xff]
        %v345 = vld [vmem:[%s250 + $0x2a0] sm:$0xff]
        %v346 = vld [vmem:[%s250 + $0x2a8] sm:$0xff]
        %v347 = vld [vmem:[%s250 + $0x2b0] sm:$0xff]
        %v348 = vld [vmem:[%s250 + $0x2b8] sm:$0xff]
        %v349 = vld [vmem:[%s250 + $0x2c0] sm:$0xff]
        %v350 = vld [vmem:[%s250 + $0x2c8] sm:$0xff]
        %v351 = vld [vmem:[%s250 + $0x2d0] sm:$0xff]
        %v352 = vld [vmem:[%s250 + $0x2d8] sm:$0xff]
        %v353 = vld [vmem:[%s250 + $0x2e0] sm:$0xff]
        %v354 = vld [vmem:[%s250 + $0x2e8] sm:$0xff]
        %v355 = vld [vmem:[%s250 + $0x2f0] sm:$0xff]
        %v356 = vld [vmem:[%s250 + $0x2f8] sm:$0xff]
        %v357 = vld [vmem:[%s250 + $0x300] sm:$0xff]
        %v358 = vld [vmem:[%s250 + $0x308] sm:$0xff]
        %v359 = vld [vmem:[%s250 + $0x310] sm:$0xff]
        %v360 = vld [vmem:[%s250 + $0x318] sm:$0xff]
        %v361 = vld [vmem:[%s250 + $0x320] sm:$0xff]
        %v362 = vld [vmem:[%s250 + $0x328] sm:$0xff]
        %v363 = vld [vmem:[%s250 + $0x330] sm:$0xff]
        %v364 = vld [vmem:[%s250 + $0x338] sm:$0xff]
        %v365 = vld [vmem:[%s250 + $0x340] sm:$0xff]
        %v366 = vld [vmem:[%s250 + $0x348] sm:$0xff]
        %v367 = vld [vmem:[%s250 + $0x350] sm:$0xff]
        %v368 = vld [vmem:[%s250 + $0x358] sm:$0xff]
        %v369 = vld [vmem:[%s250 + $0x360] sm:$0xff]
        %v370 = vld [vmem:[%s250 + $0x368] sm:$0xff]
        %v371 = vld [vmem:[%s250 + $0x370] sm:$0xff]
        %v372 = vld [vmem:[%s250 + $0x378] sm:$0xff]
        %v373 = vld [vmem:[%s250 + $0x380] sm:$0xff]
        %v374 = vld [vmem:[%s250 + $0x388] sm:$0xff]
        %v375 = vld [vmem:[%s250 + $0x390] sm:$0xff]
        %v376 = vld [vmem:[%s250 + $0x398] sm:$0xff]
        %v377 = vld [vmem:[%s250 + $0x3a0] sm:$0xff]
        %v378 = vld [vmem:[%s250 + $0x3a8] sm:$0xff]
        %v379 = vld [vmem:[%s250 + $0x3b0] sm:$0xff]
        %v380 = vld [vmem:[%s250 + $0x3b8] sm:$0xff]
        %v381 = vld [vmem:[%s250 + $0x3c0] sm:$0xff]
        %v382 = vld [vmem:[%s250 + $0x3c8] sm:$0xff]
        %v383 = vld [vmem:[%s250 + $0x3d0] sm:$0xff]
        %v384 = vld [vmem:[%s250 + $0x3d8] sm:$0xff]
        %v385 = vld [vmem:[%s250 + $0x3e0] sm:$0xff]
        %v386 = vld [vmem:[%s250 + $0x3e8] sm:$0xff]
        %v387 = vld [vmem:[%s250 + $0x3f0] sm:$0xff]
        %v388 = vld [vmem:[%s250 + $0x3f8] sm:$0xff]
        %v389 = vshra.s32 %v261, 16
        %v390 = vshra.s32 %v262, 16
        %v391 = vshra.s32 %v263, 16
        %v392 = vshra.s32 %v264, 16
        %v393 = vshra.s32 %v265, 16
        %v394 = vshra.s32 %v266, 16
        %v395 = vshra.s32 %v267, 16
        %v396 = vshra.s32 %v268, 16
        %v397 = vshra.s32 %v269, 16
        %v398 = vshra.s32 %v270, 16
        %v399 = vshra.s32 %v271, 16
        %v400 = vshra.s32 %v272, 16
        %v401 = vshra.s32 %v273, 16
        %v402 = vshra.s32 %v274, 16
        %v403 = vshra.s32 %v275, 16
        %v404 = vshra.s32 %v276, 16
        %v405 = vshra.s32 %v277, 16
        %v406 = vshra.s32 %v278, 16
        %v407 = vshra.s32 %v279, 16
        %v408 = vshra.s32 %v280, 16
        %v409 = vshra.s32 %v281, 16
        %v410 = vshra.s32 %v282, 16
        %v411 = vshra.s32 %v283, 16
        %v412 = vshra.s32 %v284, 16
        %v413 = vshra.s32 %v285, 16
        %v414 = vshra.s32 %v286, 16
        %v415 = vshra.s32 %v287, 16
        %v416 = vshra.s32 %v288, 16
        %v417 = vshra.s32 %v289, 16
        %v418 = vshra.s32 %v290, 16
        %v419 = vshra.s32 %v291, 16
        %v420 = vshra.s32 %v292, 16
        %v421 = vshra.s32 %v293, 16
        %v422 = vshra.s32 %v294, 16
        %v423 = vshra.s32 %v295, 16
        %v424 = vshra.s32 %v296, 16
        %v425 = vshra.s32 %v297, 16
        %v426 = vshra.s32 %v298, 16
        %v427 = vshra.s32 %v299, 16
        %v428 = vshra.s32 %v300, 16
        %v429 = vshra.s32 %v301, 16
        %v430 = vshra.s32 %v302, 16
        %v431 = vshra.s32 %v303, 16
        %v432 = vshra.s32 %v304, 16
        %v433 = vshra.s32 %v305, 16
        %v434 = vshra.s32 %v306, 16
        %v435 = vshra.s32 %v307, 16
        %v436 = vshra.s32 %v308, 16
        %v437 = vshra.s32 %v309, 16
        %v438 = vshra.s32 %v310, 16
        %v439 = vshra.s32 %v311, 16
        %v440 = vshra.s32 %v312, 16
        %v441 = vshra.s32 %v313, 16
        %v442 = vshra.s32 %v314, 16
        %v443 = vshra.s32 %v315, 16
        %v444 = vshra.s32 %v316, 16
        %v445 = vshra.s32 %v317, 16
        %v446 = vshra.s32 %v318, 16
        %v447 = vshra.s32 %v319, 16
        %v448 = vshra.s32 %v320, 16
        %v449 = vshra.s32 %v321, 16
        %v450 = vshra.s32 %v322, 16
        %v451 = vshra.s32 %v323, 16
        %v452 = vshra.s32 %v324, 16
        %v453 = vshra.s32 %v325, 16
        %v454 = vshra.s32 %v326, 16
        %v455 = vshra.s32 %v327, 16
        %v456 = vshra.s32 %v328, 16
        %v457 = vshra.s32 %v329, 16
        %v458 = vshra.s32 %v330, 16
        %v459 = vshra.s32 %v331, 16
        %v460 = vshra.s32 %v332, 16
        %v461 = vshra.s32 %v333, 16
        %v462 = vshra.s32 %v334, 16
        %v463 = vshra.s32 %v335, 16
        %v464 = vshra.s32 %v336, 16
        %v465 = vshra.s32 %v337, 16
        %v466 = vshra.s32 %v338, 16
        %v467 = vshra.s32 %v339, 16
        %v468 = vshra.s32 %v340, 16
        %v469 = vshra.s32 %v341, 16
        %v470 = vshra.s32 %v342, 16
        %v471 = vshra.s32 %v343, 16
        %v472 = vshra.s32 %v344, 16
        %v473 = vshra.s32 %v345, 16
        %v474 = vshra.s32 %v346, 16
        %v475 = vshra.s32 %v347, 16
        %v476 = vshra.s32 %v348, 16
        %v477 = vshra.s32 %v349, 16
        %v478 = vshra.s32 %v350, 16
        %v479 = vshra.s32 %v351, 16
        %v480 = vshra.s32 %v352, 16
        %v481 = vshra.s32 %v353, 16
        %v482 = vshra.s32 %v354, 16
        %v483 = vshra.s32 %v355, 16
        %v484 = vshra.s32 %v356, 16
        %v485 = vshra.s32 %v357, 16
        %v486 = vshra.s32 %v358, 16
        %v487 = vshra.s32 %v359, 16
        %v488 = vshra.s32 %v360, 16
        %v489 = vshra.s32 %v361, 16
        %v490 = vshra.s32 %v362, 16
        %v491 = vshra.s32 %v363, 16
        %v492 = vshra.s32 %v364, 16
        %v493 = vshra.s32 %v365, 16
        %v494 = vshra.s32 %v366, 16
        %v495 = vshra.s32 %v367, 16
        %v496 = vshra.s32 %v368, 16
        %v497 = vshra.s32 %v369, 16
        %v498 = vshra.s32 %v370, 16
        %v499 = vshra.s32 %v371, 16
        %v500 = vshra.s32 %v372, 16
        %v501 = vshra.s32 %v373, 16
        %v502 = vshra.s32 %v374, 16
        %v503 = vshra.s32 %v375, 16
        %v504 = vshra.s32 %v376, 16
        %v505 = vshra.s32 %v377, 16
        %v506 = vshra.s32 %v378, 16
        %v507 = vshra.s32 %v379, 16
        %v508 = vshra.s32 %v380, 16
        %v509 = vshra.s32 %v381, 16
        %v510 = vshra.s32 %v382, 16
        %v511 = vshra.s32 %v383, 16
        %v512 = vshra.s32 %v384, 16
        %v513 = vshra.s32 %v385, 16
        %v514 = vshra.s32 %v386, 16
        %v515 = vshra.s32 %v387, 16
        %v516 = vshra.s32 %v388, 16
        %v517 = vand.u32 %v261, 65535
        %v518 = vand.u32 %v262, 65535
        %v519 = vand.u32 %v263, 65535
        %v520 = vand.u32 %v264, 65535
        %v521 = vand.u32 %v265, 65535
        %v522 = vand.u32 %v266, 65535
        %v523 = vand.u32 %v267, 65535
        %v524 = vand.u32 %v268, 65535
        %v525 = vand.u32 %v269, 65535
        %v526 = vand.u32 %v270, 65535
        %v527 = vand.u32 %v271, 65535
        %v528 = vand.u32 %v272, 65535
        %v529 = vand.u32 %v273, 65535
        %v530 = vand.u32 %v274, 65535
        %v531 = vand.u32 %v275, 65535
        %v532 = vand.u32 %v276, 65535
        %v533 = vand.u32 %v277, 65535
        %v534 = vand.u32 %v278, 65535
        %v535 = vand.u32 %v279, 65535
        %v536 = vand.u32 %v280, 65535
        %v537 = vand.u32 %v281, 65535
        %v538 = vand.u32 %v282, 65535
        %v539 = vand.u32 %v283, 65535
        %v540 = vand.u32 %v284, 65535
        %v541 = vand.u32 %v285, 65535
        %v542 = vand.u32 %v286, 65535
        %v543 = vand.u32 %v287, 65535
        %v544 = vand.u32 %v288, 65535
        %v545 = vand.u32 %v289, 65535
        %v546 = vand.u32 %v290, 65535
        %v547 = vand.u32 %v291, 65535
        %v548 = vand.u32 %v292, 65535
        %v549 = vand.u32 %v293, 65535
        %v550 = vand.u32 %v294, 65535
        %v551 = vand.u32 %v295, 65535
        %v552 = vand.u32 %v296, 65535
        %v553 = vand.u32 %v297, 65535
        %v554 = vand.u32 %v298, 65535
        %v555 = vand.u32 %v299, 65535
        %v556 = vand.u32 %v300, 65535
        %v557 = vand.u32 %v301, 65535
        %v558 = vand.u32 %v302, 65535
        %v559 = vand.u32 %v303, 65535
        %v560 = vand.u32 %v304, 65535
        %v561 = vand.u32 %v305, 65535
        %v562 = vand.u32 %v306, 65535
        %v563 = vand.u32 %v307, 65535
        %v564 = vand.u32 %v308, 65535
        %v565 = vand.u32 %v309, 65535
        %v566 = vand.u32 %v310, 65535
        %v567 = vand.u32 %v311, 65535
        %v568 = vand.u32 %v312, 65535
        %v569 = vand.u32 %v313, 65535
        %v570 = vand.u32 %v314, 65535
        %v571 = vand.u32 %v315, 65535
        %v572 = vand.u32 %v316, 65535
        %v573 = vand.u32 %v317, 65535
        %v574 = vand.u32 %v318, 65535
        %v575 = vand.u32 %v319, 65535
        %v576 = vand.u32 %v320, 65535
        %v577 = vand.u32 %v321, 65535
        %v578 = vand.u32 %v322, 65535
        %v579 = vand.u32 %v323, 65535
        %v580 = vand.u32 %v324, 65535
        %v581 = vand.u32 %v325, 65535
        %v582 = vand.u32 %v326, 65535
        %v583 = vand.u32 %v327, 65535
        %v584 = vand.u32 %v328, 65535
        %v585 = vand.u32 %v329, 65535
        %v586 = vand.u32 %v330, 65535
        %v587 = vand.u32 %v331, 65535
        %v588 = vand.u32 %v332, 65535
        %v589 = vand.u32 %v333, 65535
        %v590 = vand.u32 %v334, 65535
        %v591 = vand.u32 %v335, 65535
        %v592 = vand.u32 %v336, 65535
        %v593 = vand.u32 %v337, 65535
        %v594 = vand.u32 %v338, 65535
        %v595 = vand.u32 %v339, 65535
        %v596 = vand.u32 %v340, 65535
        %v597 = vand.u32 %v341, 65535
        %v598 = vand.u32 %v342, 65535
        %v599 = vand.u32 %v343, 65535
        %v600 = vand.u32 %v344, 65535
        %v601 = vand.u32 %v345, 65535
        %v602 = vand.u32 %v346, 65535
        %v603 = vand.u32 %v347, 65535
        %v604 = vand.u32 %v348, 65535
        %v605 = vand.u32 %v349, 65535
        %v606 = vand.u32 %v350, 65535
        %v607 = vand.u32 %v351, 65535
        %v608 = vand.u32 %v352, 65535
        %v609 = vand.u32 %v353, 65535
        %v610 = vand.u32 %v354, 65535
        %v611 = vand.u32 %v355, 65535
        %v612 = vand.u32 %v356, 65535
        %v613 = vand.u32 %v357, 65535
        %v614 = vand.u32 %v358, 65535
        %v615 = vand.u32 %v359, 65535
        %v616 = vand.u32 %v360, 65535
        %v617 = vand.u32 %v361, 65535
        %v618 = vand.u32 %v362, 65535
        %v619 = vand.u32 %v363, 65535
        %v620 = vand.u32 %v364, 65535
        %v621 = vand.u32 %v365, 65535
        %v622 = vand.u32 %v366, 65535
        %v623 = vand.u32 %v367, 65535
        %v624 = vand.u32 %v368, 65535
        %v625 = vand.u32 %v369, 65535
        %v626 = vand.u32 %v370, 65535
        %v627 = vand.u32 %v371, 65535
        %v628 = vand.u32 %v372, 65535
        %v629 = vand.u32 %v373, 65535
        %v630 = vand.u32 %v374, 65535
        %v631 = vand.u32 %v375, 65535
        %v632 = vand.u32 %v376, 65535
        %v633 = vand.u32 %v377, 65535
        %v634 = vand.u32 %v378, 65535
        %v635 = vand.u32 %v379, 65535
        %v636 = vand.u32 %v380, 65535
        %v637 = vand.u32 %v381, 65535
        %v638 = vand.u32 %v382, 65535
        %v639 = vand.u32 %v383, 65535
        %v640 = vand.u32 %v384, 65535
        %v641 = vand.u32 %v385, 65535
        %v642 = vand.u32 %v386, 65535
        %v643 = vand.u32 %v387, 65535
        %v644 = vand.u32 %v388, 65535
        %v645 = vlaneseq
        %v646 = vand.u32 %v645, 127
        %647 = vset.pattern.permute.xlu0 0
        %648 = vperm.xlu0 %647, %v389
        %v649 = vpop.permute.xlu0 %648
        %650 = vset.pattern.permute.xlu0 0
        %651 = vperm.xlu0 %650, %v390
        %v652 = vpop.permute.xlu0 %651
        %653 = vset.pattern.permute.xlu0 0
        %654 = vperm.xlu0 %653, %v391
        %v655 = vpop.permute.xlu0 %654
        %656 = vset.pattern.permute.xlu0 0
        %657 = vperm.xlu0 %656, %v392
        %v658 = vpop.permute.xlu0 %657
        %659 = vset.pattern.permute.xlu0 0
        %660 = vperm.xlu0 %659, %v393
        %v661 = vpop.permute.xlu0 %660
        %662 = vset.pattern.permute.xlu0 0
        %663 = vperm.xlu0 %662, %v394
        %v664 = vpop.permute.xlu0 %663
        %665 = vset.pattern.permute.xlu0 0
        %666 = vperm.xlu0 %665, %v395
        %v667 = vpop.permute.xlu0 %666
        %668 = vset.pattern.permute.xlu0 0
        %669 = vperm.xlu0 %668, %v396
        %v670 = vpop.permute.xlu0 %669
        %671 = vset.pattern.permute.xlu0 0
        %672 = vperm.xlu0 %671, %v397
        %v673 = vpop.permute.xlu0 %672
        %674 = vset.pattern.permute.xlu0 0
        %675 = vperm.xlu0 %674, %v398
        %v676 = vpop.permute.xlu0 %675
        %677 = vset.pattern.permute.xlu0 0
        %678 = vperm.xlu0 %677, %v399
        %v679 = vpop.permute.xlu0 %678
        %680 = vset.pattern.permute.xlu0 0
        %681 = vperm.xlu0 %680, %v400
        %v682 = vpop.permute.xlu0 %681
        %683 = vset.pattern.permute.xlu0 0
        %684 = vperm.xlu0 %683, %v401
        %v685 = vpop.permute.xlu0 %684
        %686 = vset.pattern.permute.xlu0 0
        %687 = vperm.xlu0 %686, %v402
        %v688 = vpop.permute.xlu0 %687
        %689 = vset.pattern.permute.xlu0 0
        %690 = vperm.xlu0 %689, %v403
        %v691 = vpop.permute.xlu0 %690
        %692 = vset.pattern.permute.xlu0 0
        %693 = vperm.xlu0 %692, %v404
        %v694 = vpop.permute.xlu0 %693
        %695 = vset.pattern.permute.xlu0 0
        %696 = vperm.xlu0 %695, %v405
        %v697 = vpop.permute.xlu0 %696
        %698 = vset.pattern.permute.xlu0 0
        %699 = vperm.xlu0 %698, %v406
        %v700 = vpop.permute.xlu0 %699
        %701 = vset.pattern.permute.xlu0 0
        %702 = vperm.xlu0 %701, %v407
        %v703 = vpop.permute.xlu0 %702
        %704 = vset.pattern.permute.xlu0 0
        %705 = vperm.xlu0 %704, %v408
        %v706 = vpop.permute.xlu0 %705
        %707 = vset.pattern.permute.xlu0 0
        %708 = vperm.xlu0 %707, %v409
        %v709 = vpop.permute.xlu0 %708
        %710 = vset.pattern.permute.xlu0 0
        %711 = vperm.xlu0 %710, %v410
        %v712 = vpop.permute.xlu0 %711
        %713 = vset.pattern.permute.xlu0 0
        %714 = vperm.xlu0 %713, %v411
        %v715 = vpop.permute.xlu0 %714
        %716 = vset.pattern.permute.xlu0 0
        %717 = vperm.xlu0 %716, %v412
        %v718 = vpop.permute.xlu0 %717
        %719 = vset.pattern.permute.xlu0 0
        %720 = vperm.xlu0 %719, %v413
        %v721 = vpop.permute.xlu0 %720
        %722 = vset.pattern.permute.xlu0 0
        %723 = vperm.xlu0 %722, %v414
        %v724 = vpop.permute.xlu0 %723
        %725 = vset.pattern.permute.xlu0 0
        %726 = vperm.xlu0 %725, %v415
        %v727 = vpop.permute.xlu0 %726
        %728 = vset.pattern.permute.xlu0 0
        %729 = vperm.xlu0 %728, %v416
        %v730 = vpop.permute.xlu0 %729
        %731 = vset.pattern.permute.xlu0 0
        %732 = vperm.xlu0 %731, %v417
        %v733 = vpop.permute.xlu0 %732
        %734 = vset.pattern.permute.xlu0 0
        %735 = vperm.xlu0 %734, %v418
        %v736 = vpop.permute.xlu0 %735
        %737 = vset.pattern.permute.xlu0 0
        %738 = vperm.xlu0 %737, %v419
        %v739 = vpop.permute.xlu0 %738
        %740 = vset.pattern.permute.xlu0 0
        %741 = vperm.xlu0 %740, %v420
        %v742 = vpop.permute.xlu0 %741
        %743 = vset.pattern.permute.xlu0 0
        %744 = vperm.xlu0 %743, %v421
        %v745 = vpop.permute.xlu0 %744
        %746 = vset.pattern.permute.xlu0 0
        %747 = vperm.xlu0 %746, %v422
        %v748 = vpop.permute.xlu0 %747
        %749 = vset.pattern.permute.xlu0 0
        %750 = vperm.xlu0 %749, %v423
        %v751 = vpop.permute.xlu0 %750
        %752 = vset.pattern.permute.xlu0 0
        %753 = vperm.xlu0 %752, %v424
        %v754 = vpop.permute.xlu0 %753
        %755 = vset.pattern.permute.xlu0 0
        %756 = vperm.xlu0 %755, %v425
        %v757 = vpop.permute.xlu0 %756
        %758 = vset.pattern.permute.xlu0 0
        %759 = vperm.xlu0 %758, %v426
        %v760 = vpop.permute.xlu0 %759
        %761 = vset.pattern.permute.xlu0 0
        %762 = vperm.xlu0 %761, %v427
        %v763 = vpop.permute.xlu0 %762
        %764 = vset.pattern.permute.xlu0 0
        %765 = vperm.xlu0 %764, %v428
        %v766 = vpop.permute.xlu0 %765
        %767 = vset.pattern.permute.xlu0 0
        %768 = vperm.xlu0 %767, %v429
        %v769 = vpop.permute.xlu0 %768
        %770 = vset.pattern.permute.xlu0 0
        %771 = vperm.xlu0 %770, %v430
        %v772 = vpop.permute.xlu0 %771
        %773 = vset.pattern.permute.xlu0 0
        %774 = vperm.xlu0 %773, %v431
        %v775 = vpop.permute.xlu0 %774
        %776 = vset.pattern.permute.xlu0 0
        %777 = vperm.xlu0 %776, %v432
        %v778 = vpop.permute.xlu0 %777
        %779 = vset.pattern.permute.xlu0 0
        %780 = vperm.xlu0 %779, %v433
        %v781 = vpop.permute.xlu0 %780
        %782 = vset.pattern.permute.xlu0 0
        %783 = vperm.xlu0 %782, %v434
        %v784 = vpop.permute.xlu0 %783
        %785 = vset.pattern.permute.xlu0 0
        %786 = vperm.xlu0 %785, %v435
        %v787 = vpop.permute.xlu0 %786
        %788 = vset.pattern.permute.xlu0 0
        %789 = vperm.xlu0 %788, %v436
        %v790 = vpop.permute.xlu0 %789
        %791 = vset.pattern.permute.xlu0 0
        %792 = vperm.xlu0 %791, %v437
        %v793 = vpop.permute.xlu0 %792
        %794 = vset.pattern.permute.xlu0 0
        %795 = vperm.xlu0 %794, %v438
        %v796 = vpop.permute.xlu0 %795
        %797 = vset.pattern.permute.xlu0 0
        %798 = vperm.xlu0 %797, %v439
        %v799 = vpop.permute.xlu0 %798
        %800 = vset.pattern.permute.xlu0 0
        %801 = vperm.xlu0 %800, %v440
        %v802 = vpop.permute.xlu0 %801
        %803 = vset.pattern.permute.xlu0 0
        %804 = vperm.xlu0 %803, %v441
        %v805 = vpop.permute.xlu0 %804
        %806 = vset.pattern.permute.xlu0 0
        %807 = vperm.xlu0 %806, %v442
        %v808 = vpop.permute.xlu0 %807
        %809 = vset.pattern.permute.xlu0 0
        %810 = vperm.xlu0 %809, %v443
        %v811 = vpop.permute.xlu0 %810
        %812 = vset.pattern.permute.xlu0 0
        %813 = vperm.xlu0 %812, %v444
        %v814 = vpop.permute.xlu0 %813
        %815 = vset.pattern.permute.xlu0 0
        %816 = vperm.xlu0 %815, %v445
        %v817 = vpop.permute.xlu0 %816
        %818 = vset.pattern.permute.xlu0 0
        %819 = vperm.xlu0 %818, %v446
        %v820 = vpop.permute.xlu0 %819
        %821 = vset.pattern.permute.xlu0 0
        %822 = vperm.xlu0 %821, %v447
        %v823 = vpop.permute.xlu0 %822
        %824 = vset.pattern.permute.xlu0 0
        %825 = vperm.xlu0 %824, %v448
        %v826 = vpop.permute.xlu0 %825
        %827 = vset.pattern.permute.xlu0 0
        %828 = vperm.xlu0 %827, %v449
        %v829 = vpop.permute.xlu0 %828
        %830 = vset.pattern.permute.xlu0 0
        %831 = vperm.xlu0 %830, %v450
        %v832 = vpop.permute.xlu0 %831
        %833 = vset.pattern.permute.xlu0 0
        %834 = vperm.xlu0 %833, %v451
        %v835 = vpop.permute.xlu0 %834
        %836 = vset.pattern.permute.xlu0 0
        %837 = vperm.xlu0 %836, %v452
        %v838 = vpop.permute.xlu0 %837
        %839 = vset.pattern.permute.xlu0 0
        %840 = vperm.xlu0 %839, %v453
        %v841 = vpop.permute.xlu0 %840
        %842 = vset.pattern.permute.xlu0 0
        %843 = vperm.xlu0 %842, %v454
        %v844 = vpop.permute.xlu0 %843
        %845 = vset.pattern.permute.xlu0 0
        %846 = vperm.xlu0 %845, %v455
        %v847 = vpop.permute.xlu0 %846
        %848 = vset.pattern.permute.xlu0 0
        %849 = vperm.xlu0 %848, %v456
        %v850 = vpop.permute.xlu0 %849
        %851 = vset.pattern.permute.xlu0 0
        %852 = vperm.xlu0 %851, %v457
        %v853 = vpop.permute.xlu0 %852
        %854 = vset.pattern.permute.xlu0 0
        %855 = vperm.xlu0 %854, %v458
        %v856 = vpop.permute.xlu0 %855
        %857 = vset.pattern.permute.xlu0 0
        %858 = vperm.xlu0 %857, %v459
        %v859 = vpop.permute.xlu0 %858
        %860 = vset.pattern.permute.xlu0 0
        %861 = vperm.xlu0 %860, %v460
        %v862 = vpop.permute.xlu0 %861
        %863 = vset.pattern.permute.xlu0 0
        %864 = vperm.xlu0 %863, %v461
        %v865 = vpop.permute.xlu0 %864
        %866 = vset.pattern.permute.xlu0 0
        %867 = vperm.xlu0 %866, %v462
        %v868 = vpop.permute.xlu0 %867
        %869 = vset.pattern.permute.xlu0 0
        %870 = vperm.xlu0 %869, %v463
        %v871 = vpop.permute.xlu0 %870
        %872 = vset.pattern.permute.xlu0 0
        %873 = vperm.xlu0 %872, %v464
        %v874 = vpop.permute.xlu0 %873
        %875 = vset.pattern.permute.xlu0 0
        %876 = vperm.xlu0 %875, %v465
        %v877 = vpop.permute.xlu0 %876
        %878 = vset.pattern.permute.xlu0 0
        %879 = vperm.xlu0 %878, %v466
        %v880 = vpop.permute.xlu0 %879
        %881 = vset.pattern.permute.xlu0 0
        %882 = vperm.xlu0 %881, %v467
        %v883 = vpop.permute.xlu0 %882
        %884 = vset.pattern.permute.xlu0 0
        %885 = vperm.xlu0 %884, %v468
        %v886 = vpop.permute.xlu0 %885
        %887 = vset.pattern.permute.xlu0 0
        %888 = vperm.xlu0 %887, %v469
        %v889 = vpop.permute.xlu0 %888
        %890 = vset.pattern.permute.xlu0 0
        %891 = vperm.xlu0 %890, %v470
        %v892 = vpop.permute.xlu0 %891
        %893 = vset.pattern.permute.xlu0 0
        %894 = vperm.xlu0 %893, %v471
        %v895 = vpop.permute.xlu0 %894
        %896 = vset.pattern.permute.xlu0 0
        %897 = vperm.xlu0 %896, %v472
        %v898 = vpop.permute.xlu0 %897
        %899 = vset.pattern.permute.xlu0 0
        %900 = vperm.xlu0 %899, %v473
        %v901 = vpop.permute.xlu0 %900
        %902 = vset.pattern.permute.xlu0 0
        %903 = vperm.xlu0 %902, %v474
        %v904 = vpop.permute.xlu0 %903
        %905 = vset.pattern.permute.xlu0 0
        %906 = vperm.xlu0 %905, %v475
        %v907 = vpop.permute.xlu0 %906
        %908 = vset.pattern.permute.xlu0 0
        %909 = vperm.xlu0 %908, %v476
        %v910 = vpop.permute.xlu0 %909
        %911 = vset.pattern.permute.xlu0 0
        %912 = vperm.xlu0 %911, %v477
        %v913 = vpop.permute.xlu0 %912
        %914 = vset.pattern.permute.xlu0 0
        %915 = vperm.xlu0 %914, %v478
        %v916 = vpop.permute.xlu0 %915
        %917 = vset.pattern.permute.xlu0 0
        %918 = vperm.xlu0 %917, %v479
        %v919 = vpop.permute.xlu0 %918
        %920 = vset.pattern.permute.xlu0 0
        %921 = vperm.xlu0 %920, %v480
        %v922 = vpop.permute.xlu0 %921
        %923 = vset.pattern.permute.xlu0 0
        %924 = vperm.xlu0 %923, %v481
        %v925 = vpop.permute.xlu0 %924
        %926 = vset.pattern.permute.xlu0 0
        %927 = vperm.xlu0 %926, %v482
        %v928 = vpop.permute.xlu0 %927
        %929 = vset.pattern.permute.xlu0 0
        %930 = vperm.xlu0 %929, %v483
        %v931 = vpop.permute.xlu0 %930
        %932 = vset.pattern.permute.xlu0 0
        %933 = vperm.xlu0 %932, %v484
        %v934 = vpop.permute.xlu0 %933
        %935 = vset.pattern.permute.xlu0 0
        %936 = vperm.xlu0 %935, %v485
        %v937 = vpop.permute.xlu0 %936
        %938 = vset.pattern.permute.xlu0 0
        %939 = vperm.xlu0 %938, %v486
        %v940 = vpop.permute.xlu0 %939
        %941 = vset.pattern.permute.xlu0 0
        %942 = vperm.xlu0 %941, %v487
        %v943 = vpop.permute.xlu0 %942
        %944 = vset.pattern.permute.xlu0 0
        %945 = vperm.xlu0 %944, %v488
        %v946 = vpop.permute.xlu0 %945
        %947 = vset.pattern.permute.xlu0 0
        %948 = vperm.xlu0 %947, %v489
        %v949 = vpop.permute.xlu0 %948
        %950 = vset.pattern.permute.xlu0 0
        %951 = vperm.xlu0 %950, %v490
        %v952 = vpop.permute.xlu0 %951
        %953 = vset.pattern.permute.xlu0 0
        %954 = vperm.xlu0 %953, %v491
        %v955 = vpop.permute.xlu0 %954
        %956 = vset.pattern.permute.xlu0 0
        %957 = vperm.xlu0 %956, %v492
        %v958 = vpop.permute.xlu0 %957
        %959 = vset.pattern.permute.xlu0 0
        %960 = vperm.xlu0 %959, %v493
        %v961 = vpop.permute.xlu0 %960
        %962 = vset.pattern.permute.xlu0 0
        %963 = vperm.xlu0 %962, %v494
        %v964 = vpop.permute.xlu0 %963
        %965 = vset.pattern.permute.xlu0 0
        %966 = vperm.xlu0 %965, %v495
        %v967 = vpop.permute.xlu0 %966
        %968 = vset.pattern.permute.xlu0 0
        %969 = vperm.xlu0 %968, %v496
        %v970 = vpop.permute.xlu0 %969
        %971 = vset.pattern.permute.xlu0 0
        %972 = vperm.xlu0 %971, %v497
        %v973 = vpop.permute.xlu0 %972
        %974 = vset.pattern.permute.xlu0 0
        %975 = vperm.xlu0 %974, %v498
        %v976 = vpop.permute.xlu0 %975
        %977 = vset.pattern.permute.xlu0 0
        %978 = vperm.xlu0 %977, %v499
        %v979 = vpop.permute.xlu0 %978
        %980 = vset.pattern.permute.xlu0 0
        %981 = vperm.xlu0 %980, %v500
        %v982 = vpop.permute.xlu0 %981
        %983 = vset.pattern.permute.xlu0 0
        %984 = vperm.xlu0 %983, %v501
        %v985 = vpop.permute.xlu0 %984
        %986 = vset.pattern.permute.xlu0 0
        %987 = vperm.xlu0 %986, %v502
        %v988 = vpop.permute.xlu0 %987
        %989 = vset.pattern.permute.xlu0 0
        %990 = vperm.xlu0 %989, %v503
        %v991 = vpop.permute.xlu0 %990
        %992 = vset.pattern.permute.xlu0 0
        %993 = vperm.xlu0 %992, %v504
        %v994 = vpop.permute.xlu0 %993
        %995 = vset.pattern.permute.xlu0 0
        %996 = vperm.xlu0 %995, %v505
        %v997 = vpop.permute.xlu0 %996
        %998 = vset.pattern.permute.xlu0 0
        %999 = vperm.xlu0 %998, %v506
        %v1000 = vpop.permute.xlu0 %999
        %1001 = vset.pattern.permute.xlu0 0
        %1002 = vperm.xlu0 %1001, %v507
        %v1003 = vpop.permute.xlu0 %1002
        %1004 = vset.pattern.permute.xlu0 0
        %1005 = vperm.xlu0 %1004, %v508
        %v1006 = vpop.permute.xlu0 %1005
        %1007 = vset.pattern.permute.xlu0 0
        %1008 = vperm.xlu0 %1007, %v509
        %v1009 = vpop.permute.xlu0 %1008
        %1010 = vset.pattern.permute.xlu0 0
        %1011 = vperm.xlu0 %1010, %v510
        %v1012 = vpop.permute.xlu0 %1011
        %1013 = vset.pattern.permute.xlu0 0
        %1014 = vperm.xlu0 %1013, %v511
        %v1015 = vpop.permute.xlu0 %1014
        %1016 = vset.pattern.permute.xlu0 0
        %1017 = vperm.xlu0 %1016, %v512
        %v1018 = vpop.permute.xlu0 %1017
        %1019 = vset.pattern.permute.xlu0 0
        %1020 = vperm.xlu0 %1019, %v513
        %v1021 = vpop.permute.xlu0 %1020
        %1022 = vset.pattern.permute.xlu0 0
        %1023 = vperm.xlu0 %1022, %v514
        %v1024 = vpop.permute.xlu0 %1023
        %1025 = vset.pattern.permute.xlu0 0
        %1026 = vperm.xlu0 %1025, %v515
        %v1027 = vpop.permute.xlu0 %1026
        %1028 = vset.pattern.permute.xlu0 0
        %1029 = vperm.xlu0 %1028, %v516
        %v1030 = vpop.permute.xlu0 %1029
        %vm1031 = vcmp.eq.s32.totalorder %v646, %v649
        %vm1032 = vcmp.eq.s32.totalorder %v646, %v652
        %vm1033 = vcmp.eq.s32.totalorder %v646, %v655
        %vm1034 = vcmp.eq.s32.totalorder %v646, %v658
        %vm1035 = vcmp.eq.s32.totalorder %v646, %v661
        %vm1036 = vcmp.eq.s32.totalorder %v646, %v664
        %vm1037 = vcmp.eq.s32.totalorder %v646, %v667
        %vm1038 = vcmp.eq.s32.totalorder %v646, %v670
        %vm1039 = vcmp.eq.s32.totalorder %v646, %v673
        %vm1040 = vcmp.eq.s32.totalorder %v646, %v676
        %vm1041 = vcmp.eq.s32.totalorder %v646, %v679
        %vm1042 = vcmp.eq.s32.totalorder %v646, %v682
        %vm1043 = vcmp.eq.s32.totalorder %v646, %v685
        %vm1044 = vcmp.eq.s32.totalorder %v646, %v688
        %vm1045 = vcmp.eq.s32.totalorder %v646, %v691
        %vm1046 = vcmp.eq.s32.totalorder %v646, %v694
        %vm1047 = vcmp.eq.s32.totalorder %v646, %v697
        %vm1048 = vcmp.eq.s32.totalorder %v646, %v700
        %vm1049 = vcmp.eq.s32.totalorder %v646, %v703
        %vm1050 = vcmp.eq.s32.totalorder %v646, %v706
        %vm1051 = vcmp.eq.s32.totalorder %v646, %v709
        %vm1052 = vcmp.eq.s32.totalorder %v646, %v712
        %vm1053 = vcmp.eq.s32.totalorder %v646, %v715
        %vm1054 = vcmp.eq.s32.totalorder %v646, %v718
        %vm1055 = vcmp.eq.s32.totalorder %v646, %v721
        %vm1056 = vcmp.eq.s32.totalorder %v646, %v724
        %vm1057 = vcmp.eq.s32.totalorder %v646, %v727
        %vm1058 = vcmp.eq.s32.totalorder %v646, %v730
        %vm1059 = vcmp.eq.s32.totalorder %v646, %v733
        %vm1060 = vcmp.eq.s32.totalorder %v646, %v736
        %vm1061 = vcmp.eq.s32.totalorder %v646, %v739
        %vm1062 = vcmp.eq.s32.totalorder %v646, %v742
        %vm1063 = vcmp.eq.s32.totalorder %v646, %v745
        %vm1064 = vcmp.eq.s32.totalorder %v646, %v748
        %vm1065 = vcmp.eq.s32.totalorder %v646, %v751
        %vm1066 = vcmp.eq.s32.totalorder %v646, %v754
        %vm1067 = vcmp.eq.s32.totalorder %v646, %v757
        %vm1068 = vcmp.eq.s32.totalorder %v646, %v760
        %vm1069 = vcmp.eq.s32.totalorder %v646, %v763
        %vm1070 = vcmp.eq.s32.totalorder %v646, %v766
        %vm1071 = vcmp.eq.s32.totalorder %v646, %v769
        %vm1072 = vcmp.eq.s32.totalorder %v646, %v772
        %vm1073 = vcmp.eq.s32.totalorder %v646, %v775
        %vm1074 = vcmp.eq.s32.totalorder %v646, %v778
        %vm1075 = vcmp.eq.s32.totalorder %v646, %v781
        %vm1076 = vcmp.eq.s32.totalorder %v646, %v784
        %vm1077 = vcmp.eq.s32.totalorder %v646, %v787
        %vm1078 = vcmp.eq.s32.totalorder %v646, %v790
        %vm1079 = vcmp.eq.s32.totalorder %v646, %v793
        %vm1080 = vcmp.eq.s32.totalorder %v646, %v796
        %vm1081 = vcmp.eq.s32.totalorder %v646, %v799
        %vm1082 = vcmp.eq.s32.totalorder %v646, %v802
        %vm1083 = vcmp.eq.s32.totalorder %v646, %v805
        %vm1084 = vcmp.eq.s32.totalorder %v646, %v808
        %vm1085 = vcmp.eq.s32.totalorder %v646, %v811
        %vm1086 = vcmp.eq.s32.totalorder %v646, %v814
        %vm1087 = vcmp.eq.s32.totalorder %v646, %v817
        %vm1088 = vcmp.eq.s32.totalorder %v646, %v820
        %vm1089 = vcmp.eq.s32.totalorder %v646, %v823
        %vm1090 = vcmp.eq.s32.totalorder %v646, %v826
        %vm1091 = vcmp.eq.s32.totalorder %v646, %v829
        %vm1092 = vcmp.eq.s32.totalorder %v646, %v832
        %vm1093 = vcmp.eq.s32.totalorder %v646, %v835
        %vm1094 = vcmp.eq.s32.totalorder %v646, %v838
        %vm1095 = vcmp.eq.s32.totalorder %v646, %v841
        %vm1096 = vcmp.eq.s32.totalorder %v646, %v844
        %vm1097 = vcmp.eq.s32.totalorder %v646, %v847
        %vm1098 = vcmp.eq.s32.totalorder %v646, %v850
        %vm1099 = vcmp.eq.s32.totalorder %v646, %v853
        %vm1100 = vcmp.eq.s32.totalorder %v646, %v856
        %vm1101 = vcmp.eq.s32.totalorder %v646, %v859
        %vm1102 = vcmp.eq.s32.totalorder %v646, %v862
        %vm1103 = vcmp.eq.s32.totalorder %v646, %v865
        %vm1104 = vcmp.eq.s32.totalorder %v646, %v868
        %vm1105 = vcmp.eq.s32.totalorder %v646, %v871
        %vm1106 = vcmp.eq.s32.totalorder %v646, %v874
        %vm1107 = vcmp.eq.s32.totalorder %v646, %v877
        %vm1108 = vcmp.eq.s32.totalorder %v646, %v880
        %vm1109 = vcmp.eq.s32.totalorder %v646, %v883
        %vm1110 = vcmp.eq.s32.totalorder %v646, %v886
        %vm1111 = vcmp.eq.s32.totalorder %v646, %v889
        %vm1112 = vcmp.eq.s32.totalorder %v646, %v892
        %vm1113 = vcmp.eq.s32.totalorder %v646, %v895
        %vm1114 = vcmp.eq.s32.totalorder %v646, %v898
        %vm1115 = vcmp.eq.s32.totalorder %v646, %v901
        %vm1116 = vcmp.eq.s32.totalorder %v646, %v904
        %vm1117 = vcmp.eq.s32.totalorder %v646, %v907
        %vm1118 = vcmp.eq.s32.totalorder %v646, %v910
        %vm1119 = vcmp.eq.s32.totalorder %v646, %v913
        %vm1120 = vcmp.eq.s32.totalorder %v646, %v916
        %vm1121 = vcmp.eq.s32.totalorder %v646, %v919
        %vm1122 = vcmp.eq.s32.totalorder %v646, %v922
        %vm1123 = vcmp.eq.s32.totalorder %v646, %v925
        %vm1124 = vcmp.eq.s32.totalorder %v646, %v928
        %vm1125 = vcmp.eq.s32.totalorder %v646, %v931
        %vm1126 = vcmp.eq.s32.totalorder %v646, %v934
        %vm1127 = vcmp.eq.s32.totalorder %v646, %v937
        %vm1128 = vcmp.eq.s32.totalorder %v646, %v940
        %vm1129 = vcmp.eq.s32.totalorder %v646, %v943
        %vm1130 = vcmp.eq.s32.totalorder %v646, %v946
        %vm1131 = vcmp.eq.s32.totalorder %v646, %v949
        %vm1132 = vcmp.eq.s32.totalorder %v646, %v952
        %vm1133 = vcmp.eq.s32.totalorder %v646, %v955
        %vm1134 = vcmp.eq.s32.totalorder %v646, %v958
        %vm1135 = vcmp.eq.s32.totalorder %v646, %v961
        %vm1136 = vcmp.eq.s32.totalorder %v646, %v964
        %vm1137 = vcmp.eq.s32.totalorder %v646, %v967
        %vm1138 = vcmp.eq.s32.totalorder %v646, %v970
        %vm1139 = vcmp.eq.s32.totalorder %v646, %v973
        %vm1140 = vcmp.eq.s32.totalorder %v646, %v976
        %vm1141 = vcmp.eq.s32.totalorder %v646, %v979
        %vm1142 = vcmp.eq.s32.totalorder %v646, %v982
        %vm1143 = vcmp.eq.s32.totalorder %v646, %v985
        %vm1144 = vcmp.eq.s32.totalorder %v646, %v988
        %vm1145 = vcmp.eq.s32.totalorder %v646, %v991
        %vm1146 = vcmp.eq.s32.totalorder %v646, %v994
        %vm1147 = vcmp.eq.s32.totalorder %v646, %v997
        %vm1148 = vcmp.eq.s32.totalorder %v646, %v1000
        %vm1149 = vcmp.eq.s32.totalorder %v646, %v1003
        %vm1150 = vcmp.eq.s32.totalorder %v646, %v1006
        %vm1151 = vcmp.eq.s32.totalorder %v646, %v1009
        %vm1152 = vcmp.eq.s32.totalorder %v646, %v1012
        %vm1153 = vcmp.eq.s32.totalorder %v646, %v1015
        %vm1154 = vcmp.eq.s32.totalorder %v646, %v1018
        %vm1155 = vcmp.eq.s32.totalorder %v646, %v1021
        %vm1156 = vcmp.eq.s32.totalorder %v646, %v1024
        %vm1157 = vcmp.eq.s32.totalorder %v646, %v1027
        %vm1158 = vcmp.eq.s32.totalorder %v646, %v1030
        %1159 = vset.pattern.permute.xlu0 0
        %1160 = vperm.xlu0 %1159, %v517
        %v1161 = vpop.permute.xlu0 %1160
        %1162 = vset.pattern.permute.xlu0 0
        %1163 = vperm.xlu0 %1162, %v518
        %v1164 = vpop.permute.xlu0 %1163
        %1165 = vset.pattern.permute.xlu0 0
        %1166 = vperm.xlu0 %1165, %v519
        %v1167 = vpop.permute.xlu0 %1166
        %1168 = vset.pattern.permute.xlu0 0
        %1169 = vperm.xlu0 %1168, %v520
        %v1170 = vpop.permute.xlu0 %1169
        %1171 = vset.pattern.permute.xlu0 0
        %1172 = vperm.xlu0 %1171, %v521
        %v1173 = vpop.permute.xlu0 %1172
        %1174 = vset.pattern.permute.xlu0 0
        %1175 = vperm.xlu0 %1174, %v522
        %v1176 = vpop.permute.xlu0 %1175
        %1177 = vset.pattern.permute.xlu0 0
        %1178 = vperm.xlu0 %1177, %v523
        %v1179 = vpop.permute.xlu0 %1178
        %1180 = vset.pattern.permute.xlu0 0
        %1181 = vperm.xlu0 %1180, %v524
        %v1182 = vpop.permute.xlu0 %1181
        %1183 = vset.pattern.permute.xlu0 0
        %1184 = vperm.xlu0 %1183, %v525
        %v1185 = vpop.permute.xlu0 %1184
        %1186 = vset.pattern.permute.xlu0 0
        %1187 = vperm.xlu0 %1186, %v526
        %v1188 = vpop.permute.xlu0 %1187
        %1189 = vset.pattern.permute.xlu0 0
        %1190 = vperm.xlu0 %1189, %v527
        %v1191 = vpop.permute.xlu0 %1190
        %1192 = vset.pattern.permute.xlu0 0
        %1193 = vperm.xlu0 %1192, %v528
        %v1194 = vpop.permute.xlu0 %1193
        %1195 = vset.pattern.permute.xlu0 0
        %1196 = vperm.xlu0 %1195, %v529
        %v1197 = vpop.permute.xlu0 %1196
        %1198 = vset.pattern.permute.xlu0 0
        %1199 = vperm.xlu0 %1198, %v530
        %v1200 = vpop.permute.xlu0 %1199
        %1201 = vset.pattern.permute.xlu0 0
        %1202 = vperm.xlu0 %1201, %v531
        %v1203 = vpop.permute.xlu0 %1202
        %1204 = vset.pattern.permute.xlu0 0
        %1205 = vperm.xlu0 %1204, %v532
        %v1206 = vpop.permute.xlu0 %1205
        %1207 = vset.pattern.permute.xlu0 0
        %1208 = vperm.xlu0 %1207, %v533
        %v1209 = vpop.permute.xlu0 %1208
        %1210 = vset.pattern.permute.xlu0 0
        %1211 = vperm.xlu0 %1210, %v534
        %v1212 = vpop.permute.xlu0 %1211
        %1213 = vset.pattern.permute.xlu0 0
        %1214 = vperm.xlu0 %1213, %v535
        %v1215 = vpop.permute.xlu0 %1214
        %1216 = vset.pattern.permute.xlu0 0
        %1217 = vperm.xlu0 %1216, %v536
        %v1218 = vpop.permute.xlu0 %1217
        %1219 = vset.pattern.permute.xlu0 0
        %1220 = vperm.xlu0 %1219, %v537
        %v1221 = vpop.permute.xlu0 %1220
        %1222 = vset.pattern.permute.xlu0 0
        %1223 = vperm.xlu0 %1222, %v538
        %v1224 = vpop.permute.xlu0 %1223
        %1225 = vset.pattern.permute.xlu0 0
        %1226 = vperm.xlu0 %1225, %v539
        %v1227 = vpop.permute.xlu0 %1226
        %1228 = vset.pattern.permute.xlu0 0
        %1229 = vperm.xlu0 %1228, %v540
        %v1230 = vpop.permute.xlu0 %1229
        %1231 = vset.pattern.permute.xlu0 0
        %1232 = vperm.xlu0 %1231, %v541
        %v1233 = vpop.permute.xlu0 %1232
        %1234 = vset.pattern.permute.xlu0 0
        %1235 = vperm.xlu0 %1234, %v542
        %v1236 = vpop.permute.xlu0 %1235
        %1237 = vset.pattern.permute.xlu0 0
        %1238 = vperm.xlu0 %1237, %v543
        %v1239 = vpop.permute.xlu0 %1238
        %1240 = vset.pattern.permute.xlu0 0
        %1241 = vperm.xlu0 %1240, %v544
        %v1242 = vpop.permute.xlu0 %1241
        %1243 = vset.pattern.permute.xlu0 0
        %1244 = vperm.xlu0 %1243, %v545
        %v1245 = vpop.permute.xlu0 %1244
        %1246 = vset.pattern.permute.xlu0 0
        %1247 = vperm.xlu0 %1246, %v546
        %v1248 = vpop.permute.xlu0 %1247
        %1249 = vset.pattern.permute.xlu0 0
        %1250 = vperm.xlu0 %1249, %v547
        %v1251 = vpop.permute.xlu0 %1250
        %1252 = vset.pattern.permute.xlu0 0
        %1253 = vperm.xlu0 %1252, %v548
        %v1254 = vpop.permute.xlu0 %1253
        %1255 = vset.pattern.permute.xlu0 0
        %1256 = vperm.xlu0 %1255, %v549
        %v1257 = vpop.permute.xlu0 %1256
        %1258 = vset.pattern.permute.xlu0 0
        %1259 = vperm.xlu0 %1258, %v550
        %v1260 = vpop.permute.xlu0 %1259
        %1261 = vset.pattern.permute.xlu0 0
        %1262 = vperm.xlu0 %1261, %v551
        %v1263 = vpop.permute.xlu0 %1262
        %1264 = vset.pattern.permute.xlu0 0
        %1265 = vperm.xlu0 %1264, %v552
        %v1266 = vpop.permute.xlu0 %1265
        %1267 = vset.pattern.permute.xlu0 0
        %1268 = vperm.xlu0 %1267, %v553
        %v1269 = vpop.permute.xlu0 %1268
        %1270 = vset.pattern.permute.xlu0 0
        %1271 = vperm.xlu0 %1270, %v554
        %v1272 = vpop.permute.xlu0 %1271
        %1273 = vset.pattern.permute.xlu0 0
        %1274 = vperm.xlu0 %1273, %v555
        %v1275 = vpop.permute.xlu0 %1274
        %1276 = vset.pattern.permute.xlu0 0
        %1277 = vperm.xlu0 %1276, %v556
        %v1278 = vpop.permute.xlu0 %1277
        %1279 = vset.pattern.permute.xlu0 0
        %1280 = vperm.xlu0 %1279, %v557
        %v1281 = vpop.permute.xlu0 %1280
        %1282 = vset.pattern.permute.xlu0 0
        %1283 = vperm.xlu0 %1282, %v558
        %v1284 = vpop.permute.xlu0 %1283
        %1285 = vset.pattern.permute.xlu0 0
        %1286 = vperm.xlu0 %1285, %v559
        %v1287 = vpop.permute.xlu0 %1286
        %1288 = vset.pattern.permute.xlu0 0
        %1289 = vperm.xlu0 %1288, %v560
        %v1290 = vpop.permute.xlu0 %1289
        %1291 = vset.pattern.permute.xlu0 0
        %1292 = vperm.xlu0 %1291, %v561
        %v1293 = vpop.permute.xlu0 %1292
        %1294 = vset.pattern.permute.xlu0 0
        %1295 = vperm.xlu0 %1294, %v562
        %v1296 = vpop.permute.xlu0 %1295
        %1297 = vset.pattern.permute.xlu0 0
        %1298 = vperm.xlu0 %1297, %v563
        %v1299 = vpop.permute.xlu0 %1298
        %1300 = vset.pattern.permute.xlu0 0
        %1301 = vperm.xlu0 %1300, %v564
        %v1302 = vpop.permute.xlu0 %1301
        %1303 = vset.pattern.permute.xlu0 0
        %1304 = vperm.xlu0 %1303, %v565
        %v1305 = vpop.permute.xlu0 %1304
        %1306 = vset.pattern.permute.xlu0 0
        %1307 = vperm.xlu0 %1306, %v566
        %v1308 = vpop.permute.xlu0 %1307
        %1309 = vset.pattern.permute.xlu0 0
        %1310 = vperm.xlu0 %1309, %v567
        %v1311 = vpop.permute.xlu0 %1310
        %1312 = vset.pattern.permute.xlu0 0
        %1313 = vperm.xlu0 %1312, %v568
        %v1314 = vpop.permute.xlu0 %1313
        %1315 = vset.pattern.permute.xlu0 0
        %1316 = vperm.xlu0 %1315, %v569
        %v1317 = vpop.permute.xlu0 %1316
        %1318 = vset.pattern.permute.xlu0 0
        %1319 = vperm.xlu0 %1318, %v570
        %v1320 = vpop.permute.xlu0 %1319
        %1321 = vset.pattern.permute.xlu0 0
        %1322 = vperm.xlu0 %1321, %v571
        %v1323 = vpop.permute.xlu0 %1322
        %1324 = vset.pattern.permute.xlu0 0
        %1325 = vperm.xlu0 %1324, %v572
        %v1326 = vpop.permute.xlu0 %1325
        %1327 = vset.pattern.permute.xlu0 0
        %1328 = vperm.xlu0 %1327, %v573
        %v1329 = vpop.permute.xlu0 %1328
        %1330 = vset.pattern.permute.xlu0 0
        %1331 = vperm.xlu0 %1330, %v574
        %v1332 = vpop.permute.xlu0 %1331
        %1333 = vset.pattern.permute.xlu0 0
        %1334 = vperm.xlu0 %1333, %v575
        %v1335 = vpop.permute.xlu0 %1334
        %1336 = vset.pattern.permute.xlu0 0
        %1337 = vperm.xlu0 %1336, %v576
        %v1338 = vpop.permute.xlu0 %1337
        %1339 = vset.pattern.permute.xlu0 0
        %1340 = vperm.xlu0 %1339, %v577
        %v1341 = vpop.permute.xlu0 %1340
        %1342 = vset.pattern.permute.xlu0 0
        %1343 = vperm.xlu0 %1342, %v578
        %v1344 = vpop.permute.xlu0 %1343
        %1345 = vset.pattern.permute.xlu0 0
        %1346 = vperm.xlu0 %1345, %v579
        %v1347 = vpop.permute.xlu0 %1346
        %1348 = vset.pattern.permute.xlu0 0
        %1349 = vperm.xlu0 %1348, %v580
        %v1350 = vpop.permute.xlu0 %1349
        %1351 = vset.pattern.permute.xlu0 0
        %1352 = vperm.xlu0 %1351, %v581
        %v1353 = vpop.permute.xlu0 %1352
        %1354 = vset.pattern.permute.xlu0 0
        %1355 = vperm.xlu0 %1354, %v582
        %v1356 = vpop.permute.xlu0 %1355
        %1357 = vset.pattern.permute.xlu0 0
        %1358 = vperm.xlu0 %1357, %v583
        %v1359 = vpop.permute.xlu0 %1358
        %1360 = vset.pattern.permute.xlu0 0
        %1361 = vperm.xlu0 %1360, %v584
        %v1362 = vpop.permute.xlu0 %1361
        %1363 = vset.pattern.permute.xlu0 0
        %1364 = vperm.xlu0 %1363, %v585
        %v1365 = vpop.permute.xlu0 %1364
        %1366 = vset.pattern.permute.xlu0 0
        %1367 = vperm.xlu0 %1366, %v586
        %v1368 = vpop.permute.xlu0 %1367
        %1369 = vset.pattern.permute.xlu0 0
        %1370 = vperm.xlu0 %1369, %v587
        %v1371 = vpop.permute.xlu0 %1370
        %1372 = vset.pattern.permute.xlu0 0
        %1373 = vperm.xlu0 %1372, %v588
        %v1374 = vpop.permute.xlu0 %1373
        %1375 = vset.pattern.permute.xlu0 0
        %1376 = vperm.xlu0 %1375, %v589
        %v1377 = vpop.permute.xlu0 %1376
        %1378 = vset.pattern.permute.xlu0 0
        %1379 = vperm.xlu0 %1378, %v590
        %v1380 = vpop.permute.xlu0 %1379
        %1381 = vset.pattern.permute.xlu0 0
        %1382 = vperm.xlu0 %1381, %v591
        %v1383 = vpop.permute.xlu0 %1382
        %1384 = vset.pattern.permute.xlu0 0
        %1385 = vperm.xlu0 %1384, %v592
        %v1386 = vpop.permute.xlu0 %1385
        %1387 = vset.pattern.permute.xlu0 0
        %1388 = vperm.xlu0 %1387, %v593
        %v1389 = vpop.permute.xlu0 %1388
        %1390 = vset.pattern.permute.xlu0 0
        %1391 = vperm.xlu0 %1390, %v594
        %v1392 = vpop.permute.xlu0 %1391
        %1393 = vset.pattern.permute.xlu0 0
        %1394 = vperm.xlu0 %1393, %v595
        %v1395 = vpop.permute.xlu0 %1394
        %1396 = vset.pattern.permute.xlu0 0
        %1397 = vperm.xlu0 %1396, %v596
        %v1398 = vpop.permute.xlu0 %1397
        %1399 = vset.pattern.permute.xlu0 0
        %1400 = vperm.xlu0 %1399, %v597
        %v1401 = vpop.permute.xlu0 %1400
        %1402 = vset.pattern.permute.xlu0 0
        %1403 = vperm.xlu0 %1402, %v598
        %v1404 = vpop.permute.xlu0 %1403
        %1405 = vset.pattern.permute.xlu0 0
        %1406 = vperm.xlu0 %1405, %v599
        %v1407 = vpop.permute.xlu0 %1406
        %1408 = vset.pattern.permute.xlu0 0
        %1409 = vperm.xlu0 %1408, %v600
        %v1410 = vpop.permute.xlu0 %1409
        %1411 = vset.pattern.permute.xlu0 0
        %1412 = vperm.xlu0 %1411, %v601
        %v1413 = vpop.permute.xlu0 %1412
        %1414 = vset.pattern.permute.xlu0 0
        %1415 = vperm.xlu0 %1414, %v602
        %v1416 = vpop.permute.xlu0 %1415
        %1417 = vset.pattern.permute.xlu0 0
        %1418 = vperm.xlu0 %1417, %v603
        %v1419 = vpop.permute.xlu0 %1418
        %1420 = vset.pattern.permute.xlu0 0
        %1421 = vperm.xlu0 %1420, %v604
        %v1422 = vpop.permute.xlu0 %1421
        %1423 = vset.pattern.permute.xlu0 0
        %1424 = vperm.xlu0 %1423, %v605
        %v1425 = vpop.permute.xlu0 %1424
        %1426 = vset.pattern.permute.xlu0 0
        %1427 = vperm.xlu0 %1426, %v606
        %v1428 = vpop.permute.xlu0 %1427
        %1429 = vset.pattern.permute.xlu0 0
        %1430 = vperm.xlu0 %1429, %v607
        %v1431 = vpop.permute.xlu0 %1430
        %1432 = vset.pattern.permute.xlu0 0
        %1433 = vperm.xlu0 %1432, %v608
        %v1434 = vpop.permute.xlu0 %1433
        %1435 = vset.pattern.permute.xlu0 0
        %1436 = vperm.xlu0 %1435, %v609
        %v1437 = vpop.permute.xlu0 %1436
        %1438 = vset.pattern.permute.xlu0 0
        %1439 = vperm.xlu0 %1438, %v610
        %v1440 = vpop.permute.xlu0 %1439
        %1441 = vset.pattern.permute.xlu0 0
        %1442 = vperm.xlu0 %1441, %v611
        %v1443 = vpop.permute.xlu0 %1442
        %1444 = vset.pattern.permute.xlu0 0
        %1445 = vperm.xlu0 %1444, %v612
        %v1446 = vpop.permute.xlu0 %1445
        %1447 = vset.pattern.permute.xlu0 0
        %1448 = vperm.xlu0 %1447, %v613
        %v1449 = vpop.permute.xlu0 %1448
        %1450 = vset.pattern.permute.xlu0 0
        %1451 = vperm.xlu0 %1450, %v614
        %v1452 = vpop.permute.xlu0 %1451
        %1453 = vset.pattern.permute.xlu0 0
        %1454 = vperm.xlu0 %1453, %v615
        %v1455 = vpop.permute.xlu0 %1454
        %1456 = vset.pattern.permute.xlu0 0
        %1457 = vperm.xlu0 %1456, %v616
        %v1458 = vpop.permute.xlu0 %1457
        %1459 = vset.pattern.permute.xlu0 0
        %1460 = vperm.xlu0 %1459, %v617
        %v1461 = vpop.permute.xlu0 %1460
        %1462 = vset.pattern.permute.xlu0 0
        %1463 = vperm.xlu0 %1462, %v618
        %v1464 = vpop.permute.xlu0 %1463
        %1465 = vset.pattern.permute.xlu0 0
        %1466 = vperm.xlu0 %1465, %v619
        %v1467 = vpop.permute.xlu0 %1466
        %1468 = vset.pattern.permute.xlu0 0
        %1469 = vperm.xlu0 %1468, %v620
        %v1470 = vpop.permute.xlu0 %1469
        %1471 = vset.pattern.permute.xlu0 0
        %1472 = vperm.xlu0 %1471, %v621
        %v1473 = vpop.permute.xlu0 %1472
        %1474 = vset.pattern.permute.xlu0 0
        %1475 = vperm.xlu0 %1474, %v622
        %v1476 = vpop.permute.xlu0 %1475
        %1477 = vset.pattern.permute.xlu0 0
        %1478 = vperm.xlu0 %1477, %v623
        %v1479 = vpop.permute.xlu0 %1478
        %1480 = vset.pattern.permute.xlu0 0
        %1481 = vperm.xlu0 %1480, %v624
        %v1482 = vpop.permute.xlu0 %1481
        %1483 = vset.pattern.permute.xlu0 0
        %1484 = vperm.xlu0 %1483, %v625
        %v1485 = vpop.permute.xlu0 %1484
        %1486 = vset.pattern.permute.xlu0 0
        %1487 = vperm.xlu0 %1486, %v626
        %v1488 = vpop.permute.xlu0 %1487
        %1489 = vset.pattern.permute.xlu0 0
        %1490 = vperm.xlu0 %1489, %v627
        %v1491 = vpop.permute.xlu0 %1490
        %1492 = vset.pattern.permute.xlu0 0
        %1493 = vperm.xlu0 %1492, %v628
        %v1494 = vpop.permute.xlu0 %1493
        %1495 = vset.pattern.permute.xlu0 0
        %1496 = vperm.xlu0 %1495, %v629
        %v1497 = vpop.permute.xlu0 %1496
        %1498 = vset.pattern.permute.xlu0 0
        %1499 = vperm.xlu0 %1498, %v630
        %v1500 = vpop.permute.xlu0 %1499
        %1501 = vset.pattern.permute.xlu0 0
        %1502 = vperm.xlu0 %1501, %v631
        %v1503 = vpop.permute.xlu0 %1502
        %1504 = vset.pattern.permute.xlu0 0
        %1505 = vperm.xlu0 %1504, %v632
        %v1506 = vpop.permute.xlu0 %1505
        %1507 = vset.pattern.permute.xlu0 0
        %1508 = vperm.xlu0 %1507, %v633
        %v1509 = vpop.permute.xlu0 %1508
        %1510 = vset.pattern.permute.xlu0 0
        %1511 = vperm.xlu0 %1510, %v634
        %v1512 = vpop.permute.xlu0 %1511
        %1513 = vset.pattern.permute.xlu0 0
        %1514 = vperm.xlu0 %1513, %v635
        %v1515 = vpop.permute.xlu0 %1514
        %1516 = vset.pattern.permute.xlu0 0
        %1517 = vperm.xlu0 %1516, %v636
        %v1518 = vpop.permute.xlu0 %1517
        %1519 = vset.pattern.permute.xlu0 0
        %1520 = vperm.xlu0 %1519, %v637
        %v1521 = vpop.permute.xlu0 %1520
        %1522 = vset.pattern.permute.xlu0 0
        %1523 = vperm.xlu0 %1522, %v638
        %v1524 = vpop.permute.xlu0 %1523
        %1525 = vset.pattern.permute.xlu0 0
        %1526 = vperm.xlu0 %1525, %v639
        %v1527 = vpop.permute.xlu0 %1526
        %1528 = vset.pattern.permute.xlu0 0
        %1529 = vperm.xlu0 %1528, %v640
        %v1530 = vpop.permute.xlu0 %1529
        %1531 = vset.pattern.permute.xlu0 0
        %1532 = vperm.xlu0 %1531, %v641
        %v1533 = vpop.permute.xlu0 %1532
        %1534 = vset.pattern.permute.xlu0 0
        %1535 = vperm.xlu0 %1534, %v642
        %v1536 = vpop.permute.xlu0 %1535
        %1537 = vset.pattern.permute.xlu0 0
        %1538 = vperm.xlu0 %1537, %v643
        %v1539 = vpop.permute.xlu0 %1538
        %1540 = vset.pattern.permute.xlu0 0
        %1541 = vperm.xlu0 %1540, %v644
        %v1542 = vpop.permute.xlu0 %1541
        %vm1543 = vcmp.eq.s32.totalorder %v646, %v1161
        %vm1544 = vcmp.eq.s32.totalorder %v646, %v1164
        %vm1545 = vcmp.eq.s32.totalorder %v646, %v1167
        %vm1546 = vcmp.eq.s32.totalorder %v646, %v1170
        %vm1547 = vcmp.eq.s32.totalorder %v646, %v1173
        %vm1548 = vcmp.eq.s32.totalorder %v646, %v1176
        %vm1549 = vcmp.eq.s32.totalorder %v646, %v1179
        %vm1550 = vcmp.eq.s32.totalorder %v646, %v1182
        %vm1551 = vcmp.eq.s32.totalorder %v646, %v1185
        %vm1552 = vcmp.eq.s32.totalorder %v646, %v1188
        %vm1553 = vcmp.eq.s32.totalorder %v646, %v1191
        %vm1554 = vcmp.eq.s32.totalorder %v646, %v1194
        %vm1555 = vcmp.eq.s32.totalorder %v646, %v1197
        %vm1556 = vcmp.eq.s32.totalorder %v646, %v1200
        %vm1557 = vcmp.eq.s32.totalorder %v646, %v1203
        %vm1558 = vcmp.eq.s32.totalorder %v646, %v1206
        %vm1559 = vcmp.eq.s32.totalorder %v646, %v1209
        %vm1560 = vcmp.eq.s32.totalorder %v646, %v1212
        %vm1561 = vcmp.eq.s32.totalorder %v646, %v1215
        %vm1562 = vcmp.eq.s32.totalorder %v646, %v1218
        %vm1563 = vcmp.eq.s32.totalorder %v646, %v1221
        %vm1564 = vcmp.eq.s32.totalorder %v646, %v1224
        %vm1565 = vcmp.eq.s32.totalorder %v646, %v1227
        %vm1566 = vcmp.eq.s32.totalorder %v646, %v1230
        %vm1567 = vcmp.eq.s32.totalorder %v646, %v1233
        %vm1568 = vcmp.eq.s32.totalorder %v646, %v1236
        %vm1569 = vcmp.eq.s32.totalorder %v646, %v1239
        %vm1570 = vcmp.eq.s32.totalorder %v646, %v1242
        %vm1571 = vcmp.eq.s32.totalorder %v646, %v1245
        %vm1572 = vcmp.eq.s32.totalorder %v646, %v1248
        %vm1573 = vcmp.eq.s32.totalorder %v646, %v1251
        %vm1574 = vcmp.eq.s32.totalorder %v646, %v1254
        %vm1575 = vcmp.eq.s32.totalorder %v646, %v1257
        %vm1576 = vcmp.eq.s32.totalorder %v646, %v1260
        %vm1577 = vcmp.eq.s32.totalorder %v646, %v1263
        %vm1578 = vcmp.eq.s32.totalorder %v646, %v1266
        %vm1579 = vcmp.eq.s32.totalorder %v646, %v1269
        %vm1580 = vcmp.eq.s32.totalorder %v646, %v1272
        %vm1581 = vcmp.eq.s32.totalorder %v646, %v1275
        %vm1582 = vcmp.eq.s32.totalorder %v646, %v1278
        %vm1583 = vcmp.eq.s32.totalorder %v646, %v1281
        %vm1584 = vcmp.eq.s32.totalorder %v646, %v1284
        %vm1585 = vcmp.eq.s32.totalorder %v646, %v1287
        %vm1586 = vcmp.eq.s32.totalorder %v646, %v1290
        %vm1587 = vcmp.eq.s32.totalorder %v646, %v1293
        %vm1588 = vcmp.eq.s32.totalorder %v646, %v1296
        %vm1589 = vcmp.eq.s32.totalorder %v646, %v1299
        %vm1590 = vcmp.eq.s32.totalorder %v646, %v1302
        %vm1591 = vcmp.eq.s32.totalorder %v646, %v1305
        %vm1592 = vcmp.eq.s32.totalorder %v646, %v1308
        %vm1593 = vcmp.eq.s32.totalorder %v646, %v1311
        %vm1594 = vcmp.eq.s32.totalorder %v646, %v1314
        %vm1595 = vcmp.eq.s32.totalorder %v646, %v1317
        %vm1596 = vcmp.eq.s32.totalorder %v646, %v1320
        %vm1597 = vcmp.eq.s32.totalorder %v646, %v1323
        %vm1598 = vcmp.eq.s32.totalorder %v646, %v1326
        %vm1599 = vcmp.eq.s32.totalorder %v646, %v1329
        %vm1600 = vcmp.eq.s32.totalorder %v646, %v1332
        %vm1601 = vcmp.eq.s32.totalorder %v646, %v1335
        %vm1602 = vcmp.eq.s32.totalorder %v646, %v1338
        %vm1603 = vcmp.eq.s32.totalorder %v646, %v1341
        %vm1604 = vcmp.eq.s32.totalorder %v646, %v1344
        %vm1605 = vcmp.eq.s32.totalorder %v646, %v1347
        %vm1606 = vcmp.eq.s32.totalorder %v646, %v1350
        %vm1607 = vcmp.eq.s32.totalorder %v646, %v1353
        %vm1608 = vcmp.eq.s32.totalorder %v646, %v1356
        %vm1609 = vcmp.eq.s32.totalorder %v646, %v1359
        %vm1610 = vcmp.eq.s32.totalorder %v646, %v1362
        %vm1611 = vcmp.eq.s32.totalorder %v646, %v1365
        %vm1612 = vcmp.eq.s32.totalorder %v646, %v1368
        %vm1613 = vcmp.eq.s32.totalorder %v646, %v1371
        %vm1614 = vcmp.eq.s32.totalorder %v646, %v1374
        %vm1615 = vcmp.eq.s32.totalorder %v646, %v1377
        %vm1616 = vcmp.eq.s32.totalorder %v646, %v1380
        %vm1617 = vcmp.eq.s32.totalorder %v646, %v1383
        %vm1618 = vcmp.eq.s32.totalorder %v646, %v1386
        %vm1619 = vcmp.eq.s32.totalorder %v646, %v1389
        %vm1620 = vcmp.eq.s32.totalorder %v646, %v1392
        %vm1621 = vcmp.eq.s32.totalorder %v646, %v1395
        %vm1622 = vcmp.eq.s32.totalorder %v646, %v1398
        %vm1623 = vcmp.eq.s32.totalorder %v646, %v1401
        %vm1624 = vcmp.eq.s32.totalorder %v646, %v1404
        %vm1625 = vcmp.eq.s32.totalorder %v646, %v1407
        %vm1626 = vcmp.eq.s32.totalorder %v646, %v1410
        %vm1627 = vcmp.eq.s32.totalorder %v646, %v1413
        %vm1628 = vcmp.eq.s32.totalorder %v646, %v1416
        %vm1629 = vcmp.eq.s32.totalorder %v646, %v1419
        %vm1630 = vcmp.eq.s32.totalorder %v646, %v1422
        %vm1631 = vcmp.eq.s32.totalorder %v646, %v1425
        %vm1632 = vcmp.eq.s32.totalorder %v646, %v1428
        %vm1633 = vcmp.eq.s32.totalorder %v646, %v1431
        %vm1634 = vcmp.eq.s32.totalorder %v646, %v1434
        %vm1635 = vcmp.eq.s32.totalorder %v646, %v1437
        %vm1636 = vcmp.eq.s32.totalorder %v646, %v1440
        %vm1637 = vcmp.eq.s32.totalorder %v646, %v1443
        %vm1638 = vcmp.eq.s32.totalorder %v646, %v1446
        %vm1639 = vcmp.eq.s32.totalorder %v646, %v1449
        %vm1640 = vcmp.eq.s32.totalorder %v646, %v1452
        %vm1641 = vcmp.eq.s32.totalorder %v646, %v1455
        %vm1642 = vcmp.eq.s32.totalorder %v646, %v1458
        %vm1643 = vcmp.eq.s32.totalorder %v646, %v1461
        %vm1644 = vcmp.eq.s32.totalorder %v646, %v1464
        %vm1645 = vcmp.eq.s32.totalorder %v646, %v1467
        %vm1646 = vcmp.eq.s32.totalorder %v646, %v1470
        %vm1647 = vcmp.eq.s32.totalorder %v646, %v1473
        %vm1648 = vcmp.eq.s32.totalorder %v646, %v1476
        %vm1649 = vcmp.eq.s32.totalorder %v646, %v1479
        %vm1650 = vcmp.eq.s32.totalorder %v646, %v1482
        %vm1651 = vcmp.eq.s32.totalorder %v646, %v1485
        %vm1652 = vcmp.eq.s32.totalorder %v646, %v1488
        %vm1653 = vcmp.eq.s32.totalorder %v646, %v1491
        %vm1654 = vcmp.eq.s32.totalorder %v646, %v1494
        %vm1655 = vcmp.eq.s32.totalorder %v646, %v1497
        %vm1656 = vcmp.eq.s32.totalorder %v646, %v1500
        %vm1657 = vcmp.eq.s32.totalorder %v646, %v1503
        %vm1658 = vcmp.eq.s32.totalorder %v646, %v1506
        %vm1659 = vcmp.eq.s32.totalorder %v646, %v1509
        %vm1660 = vcmp.eq.s32.totalorder %v646, %v1512
        %vm1661 = vcmp.eq.s32.totalorder %v646, %v1515
        %vm1662 = vcmp.eq.s32.totalorder %v646, %v1518
        %vm1663 = vcmp.eq.s32.totalorder %v646, %v1521
        %vm1664 = vcmp.eq.s32.totalorder %v646, %v1524
        %vm1665 = vcmp.eq.s32.totalorder %v646, %v1527
        %vm1666 = vcmp.eq.s32.totalorder %v646, %v1530
        %vm1667 = vcmp.eq.s32.totalorder %v646, %v1533
        %vm1668 = vcmp.eq.s32.totalorder %v646, %v1536
        %vm1669 = vcmp.eq.s32.totalorder %v646, %v1539
        %vm1670 = vcmp.eq.s32.totalorder %v646, %v1542
        %vm1671 = vmor %vm1031, %vm1543
        %vm1672 = vmor %vm1032, %vm1544
        %vm1673 = vmor %vm1033, %vm1545
        %vm1674 = vmor %vm1034, %vm1546
        %vm1675 = vmor %vm1035, %vm1547
        %vm1676 = vmor %vm1036, %vm1548
        %vm1677 = vmor %vm1037, %vm1549
        %vm1678 = vmor %vm1038, %vm1550
        %vm1679 = vmor %vm1039, %vm1551
        %vm1680 = vmor %vm1040, %vm1552
        %vm1681 = vmor %vm1041, %vm1553
        %vm1682 = vmor %vm1042, %vm1554
        %vm1683 = vmor %vm1043, %vm1555
        %vm1684 = vmor %vm1044, %vm1556
        %vm1685 = vmor %vm1045, %vm1557
        %vm1686 = vmor %vm1046, %vm1558
        %vm1687 = vmor %vm1047, %vm1559
        %vm1688 = vmor %vm1048, %vm1560
        %vm1689 = vmor %vm1049, %vm1561
        %vm1690 = vmor %vm1050, %vm1562
        %vm1691 = vmor %vm1051, %vm1563
        %vm1692 = vmor %vm1052, %vm1564
        %vm1693 = vmor %vm1053, %vm1565
        %vm1694 = vmor %vm1054, %vm1566
        %vm1695 = vmor %vm1055, %vm1567
        %vm1696 = vmor %vm1056, %vm1568
        %vm1697 = vmor %vm1057, %vm1569
        %vm1698 = vmor %vm1058, %vm1570
        %vm1699 = vmor %vm1059, %vm1571
        %vm1700 = vmor %vm1060, %vm1572
        %vm1701 = vmor %vm1061, %vm1573
        %vm1702 = vmor %vm1062, %vm1574
        %vm1703 = vmor %vm1063, %vm1575
        %vm1704 = vmor %vm1064, %vm1576
        %vm1705 = vmor %vm1065, %vm1577
        %vm1706 = vmor %vm1066, %vm1578
        %vm1707 = vmor %vm1067, %vm1579
        %vm1708 = vmor %vm1068, %vm1580
        %vm1709 = vmor %vm1069, %vm1581
        %vm1710 = vmor %vm1070, %vm1582
        %vm1711 = vmor %vm1071, %vm1583
        %vm1712 = vmor %vm1072, %vm1584
        %vm1713 = vmor %vm1073, %vm1585
        %vm1714 = vmor %vm1074, %vm1586
        %vm1715 = vmor %vm1075, %vm1587
        %vm1716 = vmor %vm1076, %vm1588
        %vm1717 = vmor %vm1077, %vm1589
        %vm1718 = vmor %vm1078, %vm1590
        %vm1719 = vmor %vm1079, %vm1591
        %vm1720 = vmor %vm1080, %vm1592
        %vm1721 = vmor %vm1081, %vm1593
        %vm1722 = vmor %vm1082, %vm1594
        %vm1723 = vmor %vm1083, %vm1595
        %vm1724 = vmor %vm1084, %vm1596
        %vm1725 = vmor %vm1085, %vm1597
        %vm1726 = vmor %vm1086, %vm1598
        %vm1727 = vmor %vm1087, %vm1599
        %vm1728 = vmor %vm1088, %vm1600
        %vm1729 = vmor %vm1089, %vm1601
        %vm1730 = vmor %vm1090, %vm1602
        %vm1731 = vmor %vm1091, %vm1603
        %vm1732 = vmor %vm1092, %vm1604
        %vm1733 = vmor %vm1093, %vm1605
        %vm1734 = vmor %vm1094, %vm1606
        %vm1735 = vmor %vm1095, %vm1607
        %vm1736 = vmor %vm1096, %vm1608
        %vm1737 = vmor %vm1097, %vm1609
        %vm1738 = vmor %vm1098, %vm1610
        %vm1739 = vmor %vm1099, %vm1611
        %vm1740 = vmor %vm1100, %vm1612
        %vm1741 = vmor %vm1101, %vm1613
        %vm1742 = vmor %vm1102, %vm1614
        %vm1743 = vmor %vm1103, %vm1615
        %vm1744 = vmor %vm1104, %vm1616
        %vm1745 = vmor %vm1105, %vm1617
        %vm1746 = vmor %vm1106, %vm1618
        %vm1747 = vmor %vm1107, %vm1619
        %vm1748 = vmor %vm1108, %vm1620
        %vm1749 = vmor %vm1109, %vm1621
        %vm1750 = vmor %vm1110, %vm1622
        %vm1751 = vmor %vm1111, %vm1623
        %vm1752 = vmor %vm1112, %vm1624
        %vm1753 = vmor %vm1113, %vm1625
        %vm1754 = vmor %vm1114, %vm1626
        %vm1755 = vmor %vm1115, %vm1627
        %vm1756 = vmor %vm1116, %vm1628
        %vm1757 = vmor %vm1117, %vm1629
        %vm1758 = vmor %vm1118, %vm1630
        %vm1759 = vmor %vm1119, %vm1631
        %vm1760 = vmor %vm1120, %vm1632
        %vm1761 = vmor %vm1121, %vm1633
        %vm1762 = vmor %vm1122, %vm1634
        %vm1763 = vmor %vm1123, %vm1635
        %vm1764 = vmor %vm1124, %vm1636
        %vm1765 = vmor %vm1125, %vm1637
        %vm1766 = vmor %vm1126, %vm1638
        %vm1767 = vmor %vm1127, %vm1639
        %vm1768 = vmor %vm1128, %vm1640
        %vm1769 = vmor %vm1129, %vm1641
        %vm1770 = vmor %vm1130, %vm1642
        %vm1771 = vmor %vm1131, %vm1643
        %vm1772 = vmor %vm1132, %vm1644
        %vm1773 = vmor %vm1133, %vm1645
        %vm1774 = vmor %vm1134, %vm1646
        %vm1775 = vmor %vm1135, %vm1647
        %vm1776 = vmor %vm1136, %vm1648
        %vm1777 = vmor %vm1137, %vm1649
        %vm1778 = vmor %vm1138, %vm1650
        %vm1779 = vmor %vm1139, %vm1651
        %vm1780 = vmor %vm1140, %vm1652
        %vm1781 = vmor %vm1141, %vm1653
        %vm1782 = vmor %vm1142, %vm1654
        %vm1783 = vmor %vm1143, %vm1655
        %vm1784 = vmor %vm1144, %vm1656
        %vm1785 = vmor %vm1145, %vm1657
        %vm1786 = vmor %vm1146, %vm1658
        %vm1787 = vmor %vm1147, %vm1659
        %vm1788 = vmor %vm1148, %vm1660
        %vm1789 = vmor %vm1149, %vm1661
        %vm1790 = vmor %vm1150, %vm1662
        %vm1791 = vmor %vm1151, %vm1663
        %vm1792 = vmor %vm1152, %vm1664
        %vm1793 = vmor %vm1153, %vm1665
        %vm1794 = vmor %vm1154, %vm1666
        %vm1795 = vmor %vm1155, %vm1667
        %vm1796 = vmor %vm1156, %vm1668
        %vm1797 = vmor %vm1157, %vm1669
        %vm1798 = vmor %vm1158, %vm1670
        %v1799 = vsel %vm1671, 1.0, 0.0
        %v1800 = vsel %vm1672, 1.0, 0.0
        %v1801 = vsel %vm1673, 1.0, 0.0
        %v1802 = vsel %vm1674, 1.0, 0.0
        %v1803 = vsel %vm1675, 1.0, 0.0
        %v1804 = vsel %vm1676, 1.0, 0.0
        %v1805 = vsel %vm1677, 1.0, 0.0
        %v1806 = vsel %vm1678, 1.0, 0.0
        %v1807 = vsel %vm1679, 1.0, 0.0
        %v1808 = vsel %vm1680, 1.0, 0.0
        %v1809 = vsel %vm1681, 1.0, 0.0
        %v1810 = vsel %vm1682, 1.0, 0.0
        %v1811 = vsel %vm1683, 1.0, 0.0
        %v1812 = vsel %vm1684, 1.0, 0.0
        %v1813 = vsel %vm1685, 1.0, 0.0
        %v1814 = vsel %vm1686, 1.0, 0.0
        %v1815 = vsel %vm1687, 1.0, 0.0
        %v1816 = vsel %vm1688, 1.0, 0.0
        %v1817 = vsel %vm1689, 1.0, 0.0
        %v1818 = vsel %vm1690, 1.0, 0.0
        %v1819 = vsel %vm1691, 1.0, 0.0
        %v1820 = vsel %vm1692, 1.0, 0.0
        %v1821 = vsel %vm1693, 1.0, 0.0
        %v1822 = vsel %vm1694, 1.0, 0.0
        %v1823 = vsel %vm1695, 1.0, 0.0
        %v1824 = vsel %vm1696, 1.0, 0.0
        %v1825 = vsel %vm1697, 1.0, 0.0
        %v1826 = vsel %vm1698, 1.0, 0.0
        %v1827 = vsel %vm1699, 1.0, 0.0
        %v1828 = vsel %vm1700, 1.0, 0.0
        %v1829 = vsel %vm1701, 1.0, 0.0
        %v1830 = vsel %vm1702, 1.0, 0.0
        %v1831 = vsel %vm1703, 1.0, 0.0
        %v1832 = vsel %vm1704, 1.0, 0.0
        %v1833 = vsel %vm1705, 1.0, 0.0
        %v1834 = vsel %vm1706, 1.0, 0.0
        %v1835 = vsel %vm1707, 1.0, 0.0
        %v1836 = vsel %vm1708, 1.0, 0.0
        %v1837 = vsel %vm1709, 1.0, 0.0
        %v1838 = vsel %vm1710, 1.0, 0.0
        %v1839 = vsel %vm1711, 1.0, 0.0
        %v1840 = vsel %vm1712, 1.0, 0.0
        %v1841 = vsel %vm1713, 1.0, 0.0
        %v1842 = vsel %vm1714, 1.0, 0.0
        %v1843 = vsel %vm1715, 1.0, 0.0
        %v1844 = vsel %vm1716, 1.0, 0.0
        %v1845 = vsel %vm1717, 1.0, 0.0
        %v1846 = vsel %vm1718, 1.0, 0.0
        %v1847 = vsel %vm1719, 1.0, 0.0
        %v1848 = vsel %vm1720, 1.0, 0.0
        %v1849 = vsel %vm1721, 1.0, 0.0
        %v1850 = vsel %vm1722, 1.0, 0.0
        %v1851 = vsel %vm1723, 1.0, 0.0
        %v1852 = vsel %vm1724, 1.0, 0.0
        %v1853 = vsel %vm1725, 1.0, 0.0
        %v1854 = vsel %vm1726, 1.0, 0.0
        %v1855 = vsel %vm1727, 1.0, 0.0
        %v1856 = vsel %vm1728, 1.0, 0.0
        %v1857 = vsel %vm1729, 1.0, 0.0
        %v1858 = vsel %vm1730, 1.0, 0.0
        %v1859 = vsel %vm1731, 1.0, 0.0
        %v1860 = vsel %vm1732, 1.0, 0.0
        %v1861 = vsel %vm1733, 1.0, 0.0
        %v1862 = vsel %vm1734, 1.0, 0.0
        %v1863 = vsel %vm1735, 1.0, 0.0
        %v1864 = vsel %vm1736, 1.0, 0.0
        %v1865 = vsel %vm1737, 1.0, 0.0
        %v1866 = vsel %vm1738, 1.0, 0.0
        %v1867 = vsel %vm1739, 1.0, 0.0
        %v1868 = vsel %vm1740, 1.0, 0.0
        %v1869 = vsel %vm1741, 1.0, 0.0
        %v1870 = vsel %vm1742, 1.0, 0.0
        %v1871 = vsel %vm1743, 1.0, 0.0
        %v1872 = vsel %vm1744, 1.0, 0.0
        %v1873 = vsel %vm1745, 1.0, 0.0
        %v1874 = vsel %vm1746, 1.0, 0.0
        %v1875 = vsel %vm1747, 1.0, 0.0
        %v1876 = vsel %vm1748, 1.0, 0.0
        %v1877 = vsel %vm1749, 1.0, 0.0
        %v1878 = vsel %vm1750, 1.0, 0.0
        %v1879 = vsel %vm1751, 1.0, 0.0
        %v1880 = vsel %vm1752, 1.0, 0.0
        %v1881 = vsel %vm1753, 1.0, 0.0
        %v1882 = vsel %vm1754, 1.0, 0.0
        %v1883 = vsel %vm1755, 1.0, 0.0
        %v1884 = vsel %vm1756, 1.0, 0.0
        %v1885 = vsel %vm1757, 1.0, 0.0
        %v1886 = vsel %vm1758, 1.0, 0.0
        %v1887 = vsel %vm1759, 1.0, 0.0
        %v1888 = vsel %vm1760, 1.0, 0.0
        %v1889 = vsel %vm1761, 1.0, 0.0
        %v1890 = vsel %vm1762, 1.0, 0.0
        %v1891 = vsel %vm1763, 1.0, 0.0
        %v1892 = vsel %vm1764, 1.0, 0.0
        %v1893 = vsel %vm1765, 1.0, 0.0
        %v1894 = vsel %vm1766, 1.0, 0.0
        %v1895 = vsel %vm1767, 1.0, 0.0
        %v1896 = vsel %vm1768, 1.0, 0.0
        %v1897 = vsel %vm1769, 1.0, 0.0
        %v1898 = vsel %vm1770, 1.0, 0.0
        %v1899 = vsel %vm1771, 1.0, 0.0
        %v1900 = vsel %vm1772, 1.0, 0.0
        %v1901 = vsel %vm1773, 1.0, 0.0
        %v1902 = vsel %vm1774, 1.0, 0.0
        %v1903 = vsel %vm1775, 1.0, 0.0
        %v1904 = vsel %vm1776, 1.0, 0.0
        %v1905 = vsel %vm1777, 1.0, 0.0
        %v1906 = vsel %vm1778, 1.0, 0.0
        %v1907 = vsel %vm1779, 1.0, 0.0
        %v1908 = vsel %vm1780, 1.0, 0.0
        %v1909 = vsel %vm1781, 1.0, 0.0
        %v1910 = vsel %vm1782, 1.0, 0.0
        %v1911 = vsel %vm1783, 1.0, 0.0
        %v1912 = vsel %vm1784, 1.0, 0.0
        %v1913 = vsel %vm1785, 1.0, 0.0
        %v1914 = vsel %vm1786, 1.0, 0.0
        %v1915 = vsel %vm1787, 1.0, 0.0
        %v1916 = vsel %vm1788, 1.0, 0.0
        %v1917 = vsel %vm1789, 1.0, 0.0
        %v1918 = vsel %vm1790, 1.0, 0.0
        %v1919 = vsel %vm1791, 1.0, 0.0
        %v1920 = vsel %vm1792, 1.0, 0.0
        %v1921 = vsel %vm1793, 1.0, 0.0
        %v1922 = vsel %vm1794, 1.0, 0.0
        %v1923 = vsel %vm1795, 1.0, 0.0
        %v1924 = vsel %vm1796, 1.0, 0.0
        %v1925 = vsel %vm1797, 1.0, 0.0
        %v1926 = vsel %vm1798, 1.0, 0.0
        %v1927 = vld [vmem:[%s236] sm:$0xff]
        %v1928 = vld [vmem:[%s236 + $0x8] sm:$0xff]
        %v1929 = vld [vmem:[%s236 + $0x10] sm:$0xff]
        %v1930 = vld [vmem:[%s236 + $0x18] sm:$0xff]
        %v1931 = vld [vmem:[%s236 + $0x20] sm:$0xff]
        %v1932 = vld [vmem:[%s236 + $0x28] sm:$0xff]
        %v1933 = vld [vmem:[%s236 + $0x30] sm:$0xff]
        %v1934 = vld [vmem:[%s236 + $0x38] sm:$0xff]
        %v1935 = vld [vmem:[%s236 + $0x40] sm:$0xff]
        %v1936 = vld [vmem:[%s236 + $0x48] sm:$0xff]
        %v1937 = vld [vmem:[%s236 + $0x50] sm:$0xff]
        %v1938 = vld [vmem:[%s236 + $0x58] sm:$0xff]
        %v1939 = vld [vmem:[%s236 + $0x60] sm:$0xff]
        %v1940 = vld [vmem:[%s236 + $0x68] sm:$0xff]
        %v1941 = vld [vmem:[%s236 + $0x70] sm:$0xff]
        %v1942 = vld [vmem:[%s236 + $0x78] sm:$0xff]
        %v1943 = vld [vmem:[%s236 + $0x80] sm:$0xff]
        %v1944 = vld [vmem:[%s236 + $0x88] sm:$0xff]
        %v1945 = vld [vmem:[%s236 + $0x90] sm:$0xff]
        %v1946 = vld [vmem:[%s236 + $0x98] sm:$0xff]
        %v1947 = vld [vmem:[%s236 + $0xa0] sm:$0xff]
        %v1948 = vld [vmem:[%s236 + $0xa8] sm:$0xff]
        %v1949 = vld [vmem:[%s236 + $0xb0] sm:$0xff]
        %v1950 = vld [vmem:[%s236 + $0xb8] sm:$0xff]
        %v1951 = vld [vmem:[%s236 + $0xc0] sm:$0xff]
        %v1952 = vld [vmem:[%s236 + $0xc8] sm:$0xff]
        %v1953 = vld [vmem:[%s236 + $0xd0] sm:$0xff]
        %v1954 = vld [vmem:[%s236 + $0xd8] sm:$0xff]
        %v1955 = vld [vmem:[%s236 + $0xe0] sm:$0xff]
        %v1956 = vld [vmem:[%s236 + $0xe8] sm:$0xff]
        %v1957 = vld [vmem:[%s236 + $0xf0] sm:$0xff]
        %v1958 = vld [vmem:[%s236 + $0xf8] sm:$0xff]
        %v1959 = vld [vmem:[%s236 + $0x100] sm:$0xff]
        %v1960 = vld [vmem:[%s236 + $0x108] sm:$0xff]
        %v1961 = vld [vmem:[%s236 + $0x110] sm:$0xff]
        %v1962 = vld [vmem:[%s236 + $0x118] sm:$0xff]
        %v1963 = vld [vmem:[%s236 + $0x120] sm:$0xff]
        %v1964 = vld [vmem:[%s236 + $0x128] sm:$0xff]
        %v1965 = vld [vmem:[%s236 + $0x130] sm:$0xff]
        %v1966 = vld [vmem:[%s236 + $0x138] sm:$0xff]
        %v1967 = vld [vmem:[%s236 + $0x140] sm:$0xff]
        %v1968 = vld [vmem:[%s236 + $0x148] sm:$0xff]
        %v1969 = vld [vmem:[%s236 + $0x150] sm:$0xff]
        %v1970 = vld [vmem:[%s236 + $0x158] sm:$0xff]
        %v1971 = vld [vmem:[%s236 + $0x160] sm:$0xff]
        %v1972 = vld [vmem:[%s236 + $0x168] sm:$0xff]
        %v1973 = vld [vmem:[%s236 + $0x170] sm:$0xff]
        %v1974 = vld [vmem:[%s236 + $0x178] sm:$0xff]
        %v1975 = vld [vmem:[%s236 + $0x180] sm:$0xff]
        %v1976 = vld [vmem:[%s236 + $0x188] sm:$0xff]
        %v1977 = vld [vmem:[%s236 + $0x190] sm:$0xff]
        %v1978 = vld [vmem:[%s236 + $0x198] sm:$0xff]
        %v1979 = vld [vmem:[%s236 + $0x1a0] sm:$0xff]
        %v1980 = vld [vmem:[%s236 + $0x1a8] sm:$0xff]
        %v1981 = vld [vmem:[%s236 + $0x1b0] sm:$0xff]
        %v1982 = vld [vmem:[%s236 + $0x1b8] sm:$0xff]
        %v1983 = vld [vmem:[%s236 + $0x1c0] sm:$0xff]
        %v1984 = vld [vmem:[%s236 + $0x1c8] sm:$0xff]
        %v1985 = vld [vmem:[%s236 + $0x1d0] sm:$0xff]
        %v1986 = vld [vmem:[%s236 + $0x1d8] sm:$0xff]
        %v1987 = vld [vmem:[%s236 + $0x1e0] sm:$0xff]
        %v1988 = vld [vmem:[%s236 + $0x1e8] sm:$0xff]
        %v1989 = vld [vmem:[%s236 + $0x1f0] sm:$0xff]
        %v1990 = vld [vmem:[%s236 + $0x1f8] sm:$0xff]
        %v1991 = vld [vmem:[%s236 + $0x200] sm:$0xff]
        %v1992 = vld [vmem:[%s236 + $0x208] sm:$0xff]
        %v1993 = vld [vmem:[%s236 + $0x210] sm:$0xff]
        %v1994 = vld [vmem:[%s236 + $0x218] sm:$0xff]
        %v1995 = vld [vmem:[%s236 + $0x220] sm:$0xff]
        %v1996 = vld [vmem:[%s236 + $0x228] sm:$0xff]
        %v1997 = vld [vmem:[%s236 + $0x230] sm:$0xff]
        %v1998 = vld [vmem:[%s236 + $0x238] sm:$0xff]
        %v1999 = vld [vmem:[%s236 + $0x240] sm:$0xff]
        %v2000 = vld [vmem:[%s236 + $0x248] sm:$0xff]
        %v2001 = vld [vmem:[%s236 + $0x250] sm:$0xff]
        %v2002 = vld [vmem:[%s236 + $0x258] sm:$0xff]
        %v2003 = vld [vmem:[%s236 + $0x260] sm:$0xff]
        %v2004 = vld [vmem:[%s236 + $0x268] sm:$0xff]
        %v2005 = vld [vmem:[%s236 + $0x270] sm:$0xff]
        %v2006 = vld [vmem:[%s236 + $0x278] sm:$0xff]
        %v2007 = vld [vmem:[%s236 + $0x280] sm:$0xff]
        %v2008 = vld [vmem:[%s236 + $0x288] sm:$0xff]
        %v2009 = vld [vmem:[%s236 + $0x290] sm:$0xff]
        %v2010 = vld [vmem:[%s236 + $0x298] sm:$0xff]
        %v2011 = vld [vmem:[%s236 + $0x2a0] sm:$0xff]
        %v2012 = vld [vmem:[%s236 + $0x2a8] sm:$0xff]
        %v2013 = vld [vmem:[%s236 + $0x2b0] sm:$0xff]
        %v2014 = vld [vmem:[%s236 + $0x2b8] sm:$0xff]
        %v2015 = vld [vmem:[%s236 + $0x2c0] sm:$0xff]
        %v2016 = vld [vmem:[%s236 + $0x2c8] sm:$0xff]
        %v2017 = vld [vmem:[%s236 + $0x2d0] sm:$0xff]
        %v2018 = vld [vmem:[%s236 + $0x2d8] sm:$0xff]
        %v2019 = vld [vmem:[%s236 + $0x2e0] sm:$0xff]
        %v2020 = vld [vmem:[%s236 + $0x2e8] sm:$0xff]
        %v2021 = vld [vmem:[%s236 + $0x2f0] sm:$0xff]
        %v2022 = vld [vmem:[%s236 + $0x2f8] sm:$0xff]
        %v2023 = vld [vmem:[%s236 + $0x300] sm:$0xff]
        %v2024 = vld [vmem:[%s236 + $0x308] sm:$0xff]
        %v2025 = vld [vmem:[%s236 + $0x310] sm:$0xff]
        %v2026 = vld [vmem:[%s236 + $0x318] sm:$0xff]
        %v2027 = vld [vmem:[%s236 + $0x320] sm:$0xff]
        %v2028 = vld [vmem:[%s236 + $0x328] sm:$0xff]
        %v2029 = vld [vmem:[%s236 + $0x330] sm:$0xff]
        %v2030 = vld [vmem:[%s236 + $0x338] sm:$0xff]
        %v2031 = vld [vmem:[%s236 + $0x340] sm:$0xff]
        %v2032 = vld [vmem:[%s236 + $0x348] sm:$0xff]
        %v2033 = vld [vmem:[%s236 + $0x350] sm:$0xff]
        %v2034 = vld [vmem:[%s236 + $0x358] sm:$0xff]
        %v2035 = vld [vmem:[%s236 + $0x360] sm:$0xff]
        %v2036 = vld [vmem:[%s236 + $0x368] sm:$0xff]
        %v2037 = vld [vmem:[%s236 + $0x370] sm:$0xff]
        %v2038 = vld [vmem:[%s236 + $0x378] sm:$0xff]
        %v2039 = vld [vmem:[%s236 + $0x380] sm:$0xff]
        %v2040 = vld [vmem:[%s236 + $0x388] sm:$0xff]
        %v2041 = vld [vmem:[%s236 + $0x390] sm:$0xff]
        %v2042 = vld [vmem:[%s236 + $0x398] sm:$0xff]
        %v2043 = vld [vmem:[%s236 + $0x3a0] sm:$0xff]
        %v2044 = vld [vmem:[%s236 + $0x3a8] sm:$0xff]
        %v2045 = vld [vmem:[%s236 + $0x3b0] sm:$0xff]
        %v2046 = vld [vmem:[%s236 + $0x3b8] sm:$0xff]
        %v2047 = vld [vmem:[%s236 + $0x3c0] sm:$0xff]
        %v2048 = vld [vmem:[%s236 + $0x3c8] sm:$0xff]
        %v2049 = vld [vmem:[%s236 + $0x3d0] sm:$0xff]
        %v2050 = vld [vmem:[%s236 + $0x3d8] sm:$0xff]
        %v2051 = vld [vmem:[%s236 + $0x3e0] sm:$0xff]
        %v2052 = vld [vmem:[%s236 + $0x3e8] sm:$0xff]
        %v2053 = vld [vmem:[%s236 + $0x3f0] sm:$0xff]
        %v2054 = vld [vmem:[%s236 + $0x3f8] sm:$0xff]
        %v2055 = vld [vmem:[%s2] sm:$0xff]
        %v2056 = vld [vmem:[%s2 + $0x8] sm:$0xff]
        %v2057 = vld [vmem:[%s2 + $0x10] sm:$0xff]
        %v2058 = vld [vmem:[%s2 + $0x18] sm:$0xff]
        %v2059 = vld [vmem:[%s3] sm:$0xff]
        %v2060 = vld [vmem:[%s3 + $0x8] sm:$0xff]
        %v2061 = vld [vmem:[%s3 + $0x10] sm:$0xff]
        %v2062 = vld [vmem:[%s3 + $0x18] sm:$0xff]
        %v2063 = vld [vmem:[%s3 + $0x20] sm:$0xff]
        %v2064 = vld [vmem:[%s3 + $0x28] sm:$0xff]
        %v2065 = vld [vmem:[%s3 + $0x30] sm:$0xff]
        %v2066 = vld [vmem:[%s3 + $0x38] sm:$0xff]
        %v2067 = vld [vmem:[%s3 + $0x40] sm:$0xff]
        %vm2068 = vcmask 588800
        %v2070 = vsel %vm2068, %v1799, 0
        %v2073 = vsel %vm2068, %v1800, 0
        %v2076 = vsel %vm2068, %v1801, 0
        %v2079 = vsel %vm2068, %v1802, 0
        %v2082 = vsel %vm2068, %v1803, 0
        %v2085 = vsel %vm2068, %v1804, 0
        %v2088 = vsel %vm2068, %v1805, 0
        %v2091 = vsel %vm2068, %v1806, 0
        %v2094 = vsel %vm2068, %v1807, 0
        %v2097 = vsel %vm2068, %v1808, 0
        %v2100 = vsel %vm2068, %v1809, 0
        %v2103 = vsel %vm2068, %v1810, 0
        %v2106 = vsel %vm2068, %v1811, 0
        %v2109 = vsel %vm2068, %v1812, 0
        %v2112 = vsel %vm2068, %v1813, 0
        %v2115 = vsel %vm2068, %v1814, 0
        %v2118 = vsel %vm2068, %v1815, 0
        %v2121 = vsel %vm2068, %v1816, 0
        %v2124 = vsel %vm2068, %v1817, 0
        %v2127 = vsel %vm2068, %v1818, 0
        %v2130 = vsel %vm2068, %v1819, 0
        %v2133 = vsel %vm2068, %v1820, 0
        %v2136 = vsel %vm2068, %v1821, 0
        %v2139 = vsel %vm2068, %v1822, 0
        %v2142 = vsel %vm2068, %v1823, 0
        %v2145 = vsel %vm2068, %v1824, 0
        %v2148 = vsel %vm2068, %v1825, 0
        %v2151 = vsel %vm2068, %v1826, 0
        %v2154 = vsel %vm2068, %v1827, 0
        %v2157 = vsel %vm2068, %v1828, 0
        %v2160 = vsel %vm2068, %v1829, 0
        %v2163 = vsel %vm2068, %v1830, 0
        %v2166 = vsel %vm2068, %v1831, 0
        %v2169 = vsel %vm2068, %v1832, 0
        %v2172 = vsel %vm2068, %v1833, 0
        %v2175 = vsel %vm2068, %v1834, 0
        %v2178 = vsel %vm2068, %v1835, 0
        %v2181 = vsel %vm2068, %v1836, 0
        %v2184 = vsel %vm2068, %v1837, 0
        %v2187 = vsel %vm2068, %v1838, 0
        %v2190 = vsel %vm2068, %v1839, 0
        %v2193 = vsel %vm2068, %v1840, 0
        %v2196 = vsel %vm2068, %v1841, 0
        %v2199 = vsel %vm2068, %v1842, 0
        %v2202 = vsel %vm2068, %v1843, 0
        %v2205 = vsel %vm2068, %v1844, 0
        %v2208 = vsel %vm2068, %v1845, 0
        %v2211 = vsel %vm2068, %v1846, 0
        %v2214 = vsel %vm2068, %v1847, 0
        %v2217 = vsel %vm2068, %v1848, 0
        %v2220 = vsel %vm2068, %v1849, 0
        %v2223 = vsel %vm2068, %v1850, 0
        %v2226 = vsel %vm2068, %v1851, 0
        %v2229 = vsel %vm2068, %v1852, 0
        %v2232 = vsel %vm2068, %v1853, 0
        %v2235 = vsel %vm2068, %v1854, 0
        %v2238 = vsel %vm2068, %v1855, 0
        %v2241 = vsel %vm2068, %v1856, 0
        %v2244 = vsel %vm2068, %v1857, 0
        %v2247 = vsel %vm2068, %v1858, 0
        %v2250 = vsel %vm2068, %v1859, 0
        %v2253 = vsel %vm2068, %v1860, 0
        %v2256 = vsel %vm2068, %v1861, 0
        %v2259 = vsel %vm2068, %v1862, 0
        %v2262 = vsel %vm2068, %v1863, 0
        %v2265 = vsel %vm2068, %v1864, 0
        %v2268 = vsel %vm2068, %v1865, 0
        %v2271 = vsel %vm2068, %v1866, 0
        %v2274 = vsel %vm2068, %v1867, 0
        %v2277 = vsel %vm2068, %v1868, 0
        %v2280 = vsel %vm2068, %v1869, 0
        %v2283 = vsel %vm2068, %v1870, 0
        %v2286 = vsel %vm2068, %v1871, 0
        %v2289 = vsel %vm2068, %v1872, 0
        %v2292 = vsel %vm2068, %v1873, 0
        %v2295 = vsel %vm2068, %v1874, 0
        %v2298 = vsel %vm2068, %v1875, 0
        %v2301 = vsel %vm2068, %v1876, 0
        %v2304 = vsel %vm2068, %v1877, 0
        %v2307 = vsel %vm2068, %v1878, 0
        %v2310 = vsel %vm2068, %v1879, 0
        %v2313 = vsel %vm2068, %v1880, 0
        %v2316 = vsel %vm2068, %v1881, 0
        %v2319 = vsel %vm2068, %v1882, 0
        %v2322 = vsel %vm2068, %v1883, 0
        %v2325 = vsel %vm2068, %v1884, 0
        %v2328 = vsel %vm2068, %v1885, 0
        %v2331 = vsel %vm2068, %v1886, 0
        %v2334 = vsel %vm2068, %v1887, 0
        %v2337 = vsel %vm2068, %v1888, 0
        %v2340 = vsel %vm2068, %v1889, 0
        %v2343 = vsel %vm2068, %v1890, 0
        %v2346 = vsel %vm2068, %v1891, 0
        %v2349 = vsel %vm2068, %v1892, 0
        %v2352 = vsel %vm2068, %v1893, 0
        %v2355 = vsel %vm2068, %v1894, 0
        %v2358 = vsel %vm2068, %v1895, 0
        %v2361 = vsel %vm2068, %v1896, 0
        %v2364 = vsel %vm2068, %v1897, 0
        %v2367 = vsel %vm2068, %v1898, 0
        %v2370 = vsel %vm2068, %v1899, 0
        %v2373 = vsel %vm2068, %v1900, 0
        %v2376 = vsel %vm2068, %v1901, 0
        %v2379 = vsel %vm2068, %v1902, 0
        %v2382 = vsel %vm2068, %v1903, 0
        %v2385 = vsel %vm2068, %v1904, 0
        %v2388 = vsel %vm2068, %v1905, 0
        %v2391 = vsel %vm2068, %v1906, 0
        %v2394 = vsel %vm2068, %v1907, 0
        %v2397 = vsel %vm2068, %v1908, 0
        %v2400 = vsel %vm2068, %v1909, 0
        %v2403 = vsel %vm2068, %v1910, 0
        %v2406 = vsel %vm2068, %v1911, 0
        %v2409 = vsel %vm2068, %v1912, 0
        %v2412 = vsel %vm2068, %v1913, 0
        %v2415 = vsel %vm2068, %v1914, 0
        %v2418 = vsel %vm2068, %v1915, 0
        %v2421 = vsel %vm2068, %v1916, 0
        %v2424 = vsel %vm2068, %v1917, 0
        %v2427 = vsel %vm2068, %v1918, 0
        %v2430 = vsel %vm2068, %v1919, 0
        %v2433 = vsel %vm2068, %v1920, 0
        %v2436 = vsel %vm2068, %v1921, 0
        %v2439 = vsel %vm2068, %v1922, 0
        %v2442 = vsel %vm2068, %v1923, 0
        %v2445 = vsel %vm2068, %v1924, 0
        %v2448 = vsel %vm2068, %v1925, 0
        %v2451 = vsel %vm2068, %v1926, 0
        %2453 = vmatprep.subr.mxu0 0.0
        %2454 = vmatpush1.msra.mxu0 0.0
        %2455 = vmatprep.subr.mxu0 0.0
        %2456 = vmatpush1.msra.mxu0 0.0
        %2457 = vmatprep.subr.mxu0 0.0
        %2458 = vmatpush1.msra.mxu0 0.0
        %2459 = vmatprep.subr.mxu0 0.0
        %2460 = vmatpush1.msra.mxu0 0.0
        %2461 = vmatprep.subr.mxu0 0.0
        %2462 = vmatpush1.msra.mxu0 0.0
        %2463 = vmatprep.subr.mxu0 0.0
        %2464 = vmatpush1.msra.mxu0 0.0
        %2465 = vmatprep.subr.mxu0 0.0
        %2466 = vmatpush1.msra.mxu0 0.0
        %2467 = vmatprep.subr.mxu0 0.0
        %2468 = vmatpush1.msra.mxu0 %v2067
        %2469 = vmatprep.subr.mxu0 0.0
        %2470 = vmatpush1.msra.mxu0 %v2066
        %2471 = vmatprep.subr.mxu0 0.0
        %2472 = vmatpush1.msra.mxu0 %v2065
        %2473 = vmatprep.subr.mxu0 0.0
        %2474 = vmatpush1.msra.mxu0 %v2064
        %2475 = vmatprep.subr.mxu0 0.0
        %2476 = vmatpush1.msra.mxu0 %v2063
        %2477 = vmatprep.subr.mxu0 0.0
        %2478 = vmatpush1.msra.mxu0 %v2062
        %2479 = vmatprep.subr.mxu0 0.0
        %2480 = vmatpush1.msra.mxu0 %v2061
        %2481 = vmatprep.subr.mxu0 0.0
        %2482 = vmatpush1.msra.mxu0 %v2060
        %2483 = vmatprep.subr.mxu0 0.0
        %2484 = vmatpush1.msra.mxu0 %v2059
        %2485 = vmatprep.subr.mxu0 0.0
        %2486 = vmatpush2.msra.mxu0 0.0
        %2487 = vmatprep.subr.mxu0 0.0
        %2488 = vmatpush2.msra.mxu0 0.0
        %2489 = vmatprep.subr.mxu0 0.0
        %2490 = vmatpush2.msra.mxu0 0.0
        %2491 = vmatprep.subr.mxu0 0.0
        %2492 = vmatpush2.msra.mxu0 0.0
        %2493 = vmatprep.subr.mxu0 0.0
        %2494 = vmatpush2.msra.mxu0 0.0
        %2495 = vmatprep.subr.mxu0 0.0
        %2496 = vmatpush2.msra.mxu0 0.0
        %2497 = vmatprep.subr.mxu0 0.0
        %2498 = vmatpush2.msra.mxu0 0.0
        %2499 = vmatprep.subr.mxu0 0.0
        %2500 = vmatpush2.msra.mxu0 0.0
        %2501 = vmatprep.subr.mxu0 0.0
        %2502 = vmatpush2.msra.mxu0 0.0
        %2503 = vmatprep.subr.mxu0 0.0
        %2504 = vmatpush2.msra.mxu0 0.0
        %2505 = vmatprep.subr.mxu0 0.0
        %2506 = vmatpush2.msra.mxu0 0.0
        %2507 = vmatprep.subr.mxu0 0.0
        %2508 = vmatpush2.msra.mxu0 0.0
        %2509 = vmatprep.subr.mxu0 0.0
        %2510 = vmatpush2.msra.mxu0 0.0
        %2511 = vmatprep.subr.mxu0 0.0
        %2512 = vmatpush2.msra.mxu0 0.0
        %2513 = vmatprep.subr.mxu0 0.0
        %2514 = vmatpush2.msra.mxu0 0.0
        %2515 = vmatprep.subr.mxu0 0.0
        %2516 = vmatpush2.msra.mxu0 0.0
        %2517 = vmatprep.mubr.f32.mxu0 0.0
        %2518 = vmatmul.mubr.f32.gmra.mxu0 %v2070
        %v2519 = vpop.f32.mrf.mxu0
        %v2520 = vadd.f32 0.0, %v2519
        %v2521 = vpop.f32.mrf.mxu0
        %2522 = vmatprep.mubr.f32.mxu0 0.0
        %2523 = vmatmul.mubr.f32.gmra.mxu0 %v2073
        %v2524 = vpop.f32.mrf.mxu0
        %v2525 = vadd.f32 0.0, %v2524
        %v2526 = vpop.f32.mrf.mxu0
        %2527 = vmatprep.mubr.f32.mxu0 0.0
        %2528 = vmatmul.mubr.f32.gmra.mxu0 %v2076
        %v2529 = vpop.f32.mrf.mxu0
        %v2530 = vadd.f32 0.0, %v2529
        %v2531 = vpop.f32.mrf.mxu0
        %2532 = vmatprep.mubr.f32.mxu0 0.0
        %2533 = vmatmul.mubr.f32.gmra.mxu0 %v2079
        %v2534 = vpop.f32.mrf.mxu0
        %v2535 = vadd.f32 0.0, %v2534
        %v2536 = vpop.f32.mrf.mxu0
        %2537 = vmatprep.mubr.f32.mxu0 0.0
        %2538 = vmatmul.mubr.f32.gmra.mxu0 %v2082
        %v2539 = vpop.f32.mrf.mxu0
        %v2540 = vadd.f32 0.0, %v2539
        %v2541 = vpop.f32.mrf.mxu0
        %2542 = vmatprep.mubr.f32.mxu0 0.0
        %2543 = vmatmul.mubr.f32.gmra.mxu0 %v2085
        %v2544 = vpop.f32.mrf.mxu0
        %v2545 = vadd.f32 0.0, %v2544
        %v2546 = vpop.f32.mrf.mxu0
        %2547 = vmatprep.mubr.f32.mxu0 0.0
        %2548 = vmatmul.mubr.f32.gmra.mxu0 %v2088
        %v2549 = vpop.f32.mrf.mxu0
        %v2550 = vadd.f32 0.0, %v2549
        %v2551 = vpop.f32.mrf.mxu0
        %2552 = vmatprep.mubr.f32.mxu0 0.0
        %2553 = vmatmul.mubr.f32.gmra.mxu0 %v2091
        %v2554 = vpop.f32.mrf.mxu0
        %v2555 = vadd.f32 0.0, %v2554
        %v2556 = vpop.f32.mrf.mxu0
        %2557 = vmatprep.mubr.f32.mxu0 0.0
        %2558 = vmatmul.mubr.f32.gmra.mxu0 %v2094
        %v2559 = vpop.f32.mrf.mxu0
        %v2560 = vadd.f32 0.0, %v2559
        %v2561 = vpop.f32.mrf.mxu0
        %2562 = vmatprep.mubr.f32.mxu0 0.0
        %2563 = vmatmul.mubr.f32.gmra.mxu0 %v2097
        %v2564 = vpop.f32.mrf.mxu0
        %v2565 = vadd.f32 0.0, %v2564
        %v2566 = vpop.f32.mrf.mxu0
        %2567 = vmatprep.mubr.f32.mxu0 0.0
        %2568 = vmatmul.mubr.f32.gmra.mxu0 %v2100
        %v2569 = vpop.f32.mrf.mxu0
        %v2570 = vadd.f32 0.0, %v2569
        %v2571 = vpop.f32.mrf.mxu0
        %2572 = vmatprep.mubr.f32.mxu0 0.0
        %2573 = vmatmul.mubr.f32.gmra.mxu0 %v2103
        %v2574 = vpop.f32.mrf.mxu0
        %v2575 = vadd.f32 0.0, %v2574
        %v2576 = vpop.f32.mrf.mxu0
        %2577 = vmatprep.mubr.f32.mxu0 0.0
        %2578 = vmatmul.mubr.f32.gmra.mxu0 %v2106
        %v2579 = vpop.f32.mrf.mxu0
        %v2580 = vadd.f32 0.0, %v2579
        %v2581 = vpop.f32.mrf.mxu0
        %2582 = vmatprep.mubr.f32.mxu0 0.0
        %2583 = vmatmul.mubr.f32.gmra.mxu0 %v2109
        %v2584 = vpop.f32.mrf.mxu0
        %v2585 = vadd.f32 0.0, %v2584
        %v2586 = vpop.f32.mrf.mxu0
        %2587 = vmatprep.mubr.f32.mxu0 0.0
        %2588 = vmatmul.mubr.f32.gmra.mxu0 %v2112
        %v2589 = vpop.f32.mrf.mxu0
        %v2590 = vadd.f32 0.0, %v2589
        %v2591 = vpop.f32.mrf.mxu0
        %2592 = vmatprep.mubr.f32.mxu0 0.0
        %2593 = vmatmul.mubr.f32.gmra.mxu0 %v2115
        %v2594 = vpop.f32.mrf.mxu0
        %v2595 = vadd.f32 0.0, %v2594
        %v2596 = vpop.f32.mrf.mxu0
        %2597 = vmatprep.mubr.f32.mxu0 0.0
        %2598 = vmatmul.mubr.f32.gmra.mxu0 %v2118
        %v2599 = vpop.f32.mrf.mxu0
        %v2600 = vadd.f32 0.0, %v2599
        %v2601 = vpop.f32.mrf.mxu0
        %2602 = vmatprep.mubr.f32.mxu0 0.0
        %2603 = vmatmul.mubr.f32.gmra.mxu0 %v2121
        %v2604 = vpop.f32.mrf.mxu0
        %v2605 = vadd.f32 0.0, %v2604
        %v2606 = vpop.f32.mrf.mxu0
        %2607 = vmatprep.mubr.f32.mxu0 0.0
        %2608 = vmatmul.mubr.f32.gmra.mxu0 %v2124
        %v2609 = vpop.f32.mrf.mxu0
        %v2610 = vadd.f32 0.0, %v2609
        %v2611 = vpop.f32.mrf.mxu0
        %2612 = vmatprep.mubr.f32.mxu0 0.0
        %2613 = vmatmul.mubr.f32.gmra.mxu0 %v2127
        %v2614 = vpop.f32.mrf.mxu0
        %v2615 = vadd.f32 0.0, %v2614
        %v2616 = vpop.f32.mrf.mxu0
        %2617 = vmatprep.mubr.f32.mxu0 0.0
        %2618 = vmatmul.mubr.f32.gmra.mxu0 %v2130
        %v2619 = vpop.f32.mrf.mxu0
        %v2620 = vadd.f32 0.0, %v2619
        %v2621 = vpop.f32.mrf.mxu0
        %2622 = vmatprep.mubr.f32.mxu0 0.0
        %2623 = vmatmul.mubr.f32.gmra.mxu0 %v2133
        %v2624 = vpop.f32.mrf.mxu0
        %v2625 = vadd.f32 0.0, %v2624
        %v2626 = vpop.f32.mrf.mxu0
        %2627 = vmatprep.mubr.f32.mxu0 0.0
        %2628 = vmatmul.mubr.f32.gmra.mxu0 %v2136
        %v2629 = vpop.f32.mrf.mxu0
        %v2630 = vadd.f32 0.0, %v2629
        %v2631 = vpop.f32.mrf.mxu0
        %2632 = vmatprep.mubr.f32.mxu0 0.0
        %2633 = vmatmul.mubr.f32.gmra.mxu0 %v2139
        %v2634 = vpop.f32.mrf.mxu0
        %v2635 = vadd.f32 0.0, %v2634
        %v2636 = vpop.f32.mrf.mxu0
        %2637 = vmatprep.mubr.f32.mxu0 0.0
        %2638 = vmatmul.mubr.f32.gmra.mxu0 %v2142
        %v2639 = vpop.f32.mrf.mxu0
        %v2640 = vadd.f32 0.0, %v2639
        %v2641 = vpop.f32.mrf.mxu0
        %2642 = vmatprep.mubr.f32.mxu0 0.0
        %2643 = vmatmul.mubr.f32.gmra.mxu0 %v2145
        %v2644 = vpop.f32.mrf.mxu0
        %v2645 = vadd.f32 0.0, %v2644
        %v2646 = vpop.f32.mrf.mxu0
        %2647 = vmatprep.mubr.f32.mxu0 0.0
        %2648 = vmatmul.mubr.f32.gmra.mxu0 %v2148
        %v2649 = vpop.f32.mrf.mxu0
        %v2650 = vadd.f32 0.0, %v2649
        %v2651 = vpop.f32.mrf.mxu0
        %2652 = vmatprep.mubr.f32.mxu0 0.0
        %2653 = vmatmul.mubr.f32.gmra.mxu0 %v2151
        %v2654 = vpop.f32.mrf.mxu0
        %v2655 = vadd.f32 0.0, %v2654
        %v2656 = vpop.f32.mrf.mxu0
        %2657 = vmatprep.mubr.f32.mxu0 0.0
        %2658 = vmatmul.mubr.f32.gmra.mxu0 %v2154
        %v2659 = vpop.f32.mrf.mxu0
        %v2660 = vadd.f32 0.0, %v2659
        %v2661 = vpop.f32.mrf.mxu0
        %2662 = vmatprep.mubr.f32.mxu0 0.0
        %2663 = vmatmul.mubr.f32.gmra.mxu0 %v2157
        %v2664 = vpop.f32.mrf.mxu0
        %v2665 = vadd.f32 0.0, %v2664
        %v2666 = vpop.f32.mrf.mxu0
        %2667 = vmatprep.mubr.f32.mxu0 0.0
        %2668 = vmatmul.mubr.f32.gmra.mxu0 %v2160
        %v2669 = vpop.f32.mrf.mxu0
        %v2670 = vadd.f32 0.0, %v2669
        %v2671 = vpop.f32.mrf.mxu0
        %2672 = vmatprep.mubr.f32.mxu0 0.0
        %2673 = vmatmul.mubr.f32.gmra.mxu0 %v2163
        %v2674 = vpop.f32.mrf.mxu0
        %v2675 = vadd.f32 0.0, %v2674
        %v2676 = vpop.f32.mrf.mxu0
        %2677 = vmatprep.mubr.f32.mxu0 0.0
        %2678 = vmatmul.mubr.f32.gmra.mxu0 %v2166
        %v2679 = vpop.f32.mrf.mxu0
        %v2680 = vadd.f32 0.0, %v2679
        %v2681 = vpop.f32.mrf.mxu0
        %2682 = vmatprep.mubr.f32.mxu0 0.0
        %2683 = vmatmul.mubr.f32.gmra.mxu0 %v2169
        %v2684 = vpop.f32.mrf.mxu0
        %v2685 = vadd.f32 0.0, %v2684
        %v2686 = vpop.f32.mrf.mxu0
        %2687 = vmatprep.mubr.f32.mxu0 0.0
        %2688 = vmatmul.mubr.f32.gmra.mxu0 %v2172
        %v2689 = vpop.f32.mrf.mxu0
        %v2690 = vadd.f32 0.0, %v2689
        %v2691 = vpop.f32.mrf.mxu0
        %2692 = vmatprep.mubr.f32.mxu0 0.0
        %2693 = vmatmul.mubr.f32.gmra.mxu0 %v2175
        %v2694 = vpop.f32.mrf.mxu0
        %v2695 = vadd.f32 0.0, %v2694
        %v2696 = vpop.f32.mrf.mxu0
        %2697 = vmatprep.mubr.f32.mxu0 0.0
        %2698 = vmatmul.mubr.f32.gmra.mxu0 %v2178
        %v2699 = vpop.f32.mrf.mxu0
        %v2700 = vadd.f32 0.0, %v2699
        %v2701 = vpop.f32.mrf.mxu0
        %2702 = vmatprep.mubr.f32.mxu0 0.0
        %2703 = vmatmul.mubr.f32.gmra.mxu0 %v2181
        %v2704 = vpop.f32.mrf.mxu0
        %v2705 = vadd.f32 0.0, %v2704
        %v2706 = vpop.f32.mrf.mxu0
        %2707 = vmatprep.mubr.f32.mxu0 0.0
        %2708 = vmatmul.mubr.f32.gmra.mxu0 %v2184
        %v2709 = vpop.f32.mrf.mxu0
        %v2710 = vadd.f32 0.0, %v2709
        %v2711 = vpop.f32.mrf.mxu0
        %2712 = vmatprep.mubr.f32.mxu0 0.0
        %2713 = vmatmul.mubr.f32.gmra.mxu0 %v2187
        %v2714 = vpop.f32.mrf.mxu0
        %v2715 = vadd.f32 0.0, %v2714
        %v2716 = vpop.f32.mrf.mxu0
        %2717 = vmatprep.mubr.f32.mxu0 0.0
        %2718 = vmatmul.mubr.f32.gmra.mxu0 %v2190
        %v2719 = vpop.f32.mrf.mxu0
        %v2720 = vadd.f32 0.0, %v2719
        %v2721 = vpop.f32.mrf.mxu0
        %2722 = vmatprep.mubr.f32.mxu0 0.0
        %2723 = vmatmul.mubr.f32.gmra.mxu0 %v2193
        %v2724 = vpop.f32.mrf.mxu0
        %v2725 = vadd.f32 0.0, %v2724
        %v2726 = vpop.f32.mrf.mxu0
        %2727 = vmatprep.mubr.f32.mxu0 0.0
        %2728 = vmatmul.mubr.f32.gmra.mxu0 %v2196
        %v2729 = vpop.f32.mrf.mxu0
        %v2730 = vadd.f32 0.0, %v2729
        %v2731 = vpop.f32.mrf.mxu0
        %2732 = vmatprep.mubr.f32.mxu0 0.0
        %2733 = vmatmul.mubr.f32.gmra.mxu0 %v2199
        %v2734 = vpop.f32.mrf.mxu0
        %v2735 = vadd.f32 0.0, %v2734
        %v2736 = vpop.f32.mrf.mxu0
        %2737 = vmatprep.mubr.f32.mxu0 0.0
        %2738 = vmatmul.mubr.f32.gmra.mxu0 %v2202
        %v2739 = vpop.f32.mrf.mxu0
        %v2740 = vadd.f32 0.0, %v2739
        %v2741 = vpop.f32.mrf.mxu0
        %2742 = vmatprep.mubr.f32.mxu0 0.0
        %2743 = vmatmul.mubr.f32.gmra.mxu0 %v2205
        %v2744 = vpop.f32.mrf.mxu0
        %v2745 = vadd.f32 0.0, %v2744
        %v2746 = vpop.f32.mrf.mxu0
        %2747 = vmatprep.mubr.f32.mxu0 0.0
        %2748 = vmatmul.mubr.f32.gmra.mxu0 %v2208
        %v2749 = vpop.f32.mrf.mxu0
        %v2750 = vadd.f32 0.0, %v2749
        %v2751 = vpop.f32.mrf.mxu0
        %2752 = vmatprep.mubr.f32.mxu0 0.0
        %2753 = vmatmul.mubr.f32.gmra.mxu0 %v2211
        %v2754 = vpop.f32.mrf.mxu0
        %v2755 = vadd.f32 0.0, %v2754
        %v2756 = vpop.f32.mrf.mxu0
        %2757 = vmatprep.mubr.f32.mxu0 0.0
        %2758 = vmatmul.mubr.f32.gmra.mxu0 %v2214
        %v2759 = vpop.f32.mrf.mxu0
        %v2760 = vadd.f32 0.0, %v2759
        %v2761 = vpop.f32.mrf.mxu0
        %2762 = vmatprep.mubr.f32.mxu0 0.0
        %2763 = vmatmul.mubr.f32.gmra.mxu0 %v2217
        %v2764 = vpop.f32.mrf.mxu0
        %v2765 = vadd.f32 0.0, %v2764
        %v2766 = vpop.f32.mrf.mxu0
        %2767 = vmatprep.mubr.f32.mxu0 0.0
        %2768 = vmatmul.mubr.f32.gmra.mxu0 %v2220
        %v2769 = vpop.f32.mrf.mxu0
        %v2770 = vadd.f32 0.0, %v2769
        %v2771 = vpop.f32.mrf.mxu0
        %2772 = vmatprep.mubr.f32.mxu0 0.0
        %2773 = vmatmul.mubr.f32.gmra.mxu0 %v2223
        %v2774 = vpop.f32.mrf.mxu0
        %v2775 = vadd.f32 0.0, %v2774
        %v2776 = vpop.f32.mrf.mxu0
        %2777 = vmatprep.mubr.f32.mxu0 0.0
        %2778 = vmatmul.mubr.f32.gmra.mxu0 %v2226
        %v2779 = vpop.f32.mrf.mxu0
        %v2780 = vadd.f32 0.0, %v2779
        %v2781 = vpop.f32.mrf.mxu0
        %2782 = vmatprep.mubr.f32.mxu0 0.0
        %2783 = vmatmul.mubr.f32.gmra.mxu0 %v2229
        %v2784 = vpop.f32.mrf.mxu0
        %v2785 = vadd.f32 0.0, %v2784
        %v2786 = vpop.f32.mrf.mxu0
        %2787 = vmatprep.mubr.f32.mxu0 0.0
        %2788 = vmatmul.mubr.f32.gmra.mxu0 %v2232
        %v2789 = vpop.f32.mrf.mxu0
        %v2790 = vadd.f32 0.0, %v2789
        %v2791 = vpop.f32.mrf.mxu0
        %2792 = vmatprep.mubr.f32.mxu0 0.0
        %2793 = vmatmul.mubr.f32.gmra.mxu0 %v2235
        %v2794 = vpop.f32.mrf.mxu0
        %v2795 = vadd.f32 0.0, %v2794
        %v2796 = vpop.f32.mrf.mxu0
        %2797 = vmatprep.mubr.f32.mxu0 0.0
        %2798 = vmatmul.mubr.f32.gmra.mxu0 %v2238
        %v2799 = vpop.f32.mrf.mxu0
        %v2800 = vadd.f32 0.0, %v2799
        %v2801 = vpop.f32.mrf.mxu0
        %2802 = vmatprep.mubr.f32.mxu0 0.0
        %2803 = vmatmul.mubr.f32.gmra.mxu0 %v2241
        %v2804 = vpop.f32.mrf.mxu0
        %v2805 = vadd.f32 0.0, %v2804
        %v2806 = vpop.f32.mrf.mxu0
        %2807 = vmatprep.mubr.f32.mxu0 0.0
        %2808 = vmatmul.mubr.f32.gmra.mxu0 %v2244
        %v2809 = vpop.f32.mrf.mxu0
        %v2810 = vadd.f32 0.0, %v2809
        %v2811 = vpop.f32.mrf.mxu0
        %2812 = vmatprep.mubr.f32.mxu0 0.0
        %2813 = vmatmul.mubr.f32.gmra.mxu0 %v2247
        %v2814 = vpop.f32.mrf.mxu0
        %v2815 = vadd.f32 0.0, %v2814
        %v2816 = vpop.f32.mrf.mxu0
        %2817 = vmatprep.mubr.f32.mxu0 0.0
        %2818 = vmatmul.mubr.f32.gmra.mxu0 %v2250
        %v2819 = vpop.f32.mrf.mxu0
        %v2820 = vadd.f32 0.0, %v2819
        %v2821 = vpop.f32.mrf.mxu0
        %2822 = vmatprep.mubr.f32.mxu0 0.0
        %2823 = vmatmul.mubr.f32.gmra.mxu0 %v2253
        %v2824 = vpop.f32.mrf.mxu0
        %v2825 = vadd.f32 0.0, %v2824
        %v2826 = vpop.f32.mrf.mxu0
        %2827 = vmatprep.mubr.f32.mxu0 0.0
        %2828 = vmatmul.mubr.f32.gmra.mxu0 %v2256
        %v2829 = vpop.f32.mrf.mxu0
        %v2830 = vadd.f32 0.0, %v2829
        %v2831 = vpop.f32.mrf.mxu0
        %2832 = vmatprep.mubr.f32.mxu0 0.0
        %2833 = vmatmul.mubr.f32.gmra.mxu0 %v2259
        %v2834 = vpop.f32.mrf.mxu0
        %v2835 = vadd.f32 0.0, %v2834
        %v2836 = vpop.f32.mrf.mxu0
        %2837 = vmatprep.mubr.f32.mxu0 0.0
        %2838 = vmatmul.mubr.f32.gmra.mxu0 %v2262
        %v2839 = vpop.f32.mrf.mxu0
        %v2840 = vadd.f32 0.0, %v2839
        %v2841 = vpop.f32.mrf.mxu0
        %2842 = vmatprep.mubr.f32.mxu0 0.0
        %2843 = vmatmul.mubr.f32.gmra.mxu0 %v2265
        %v2844 = vpop.f32.mrf.mxu0
        %v2845 = vadd.f32 0.0, %v2844
        %v2846 = vpop.f32.mrf.mxu0
        %2847 = vmatprep.mubr.f32.mxu0 0.0
        %2848 = vmatmul.mubr.f32.gmra.mxu0 %v2268
        %v2849 = vpop.f32.mrf.mxu0
        %v2850 = vadd.f32 0.0, %v2849
        %v2851 = vpop.f32.mrf.mxu0
        %2852 = vmatprep.mubr.f32.mxu0 0.0
        %2853 = vmatmul.mubr.f32.gmra.mxu0 %v2271
        %v2854 = vpop.f32.mrf.mxu0
        %v2855 = vadd.f32 0.0, %v2854
        %v2856 = vpop.f32.mrf.mxu0
        %2857 = vmatprep.mubr.f32.mxu0 0.0
        %2858 = vmatmul.mubr.f32.gmra.mxu0 %v2274
        %v2859 = vpop.f32.mrf.mxu0
        %v2860 = vadd.f32 0.0, %v2859
        %v2861 = vpop.f32.mrf.mxu0
        %2862 = vmatprep.mubr.f32.mxu0 0.0
        %2863 = vmatmul.mubr.f32.gmra.mxu0 %v2277
        %v2864 = vpop.f32.mrf.mxu0
        %v2865 = vadd.f32 0.0, %v2864
        %v2866 = vpop.f32.mrf.mxu0
        %2867 = vmatprep.mubr.f32.mxu0 0.0
        %2868 = vmatmul.mubr.f32.gmra.mxu0 %v2280
        %v2869 = vpop.f32.mrf.mxu0
        %v2870 = vadd.f32 0.0, %v2869
        %v2871 = vpop.f32.mrf.mxu0
        %2872 = vmatprep.mubr.f32.mxu0 0.0
        %2873 = vmatmul.mubr.f32.gmra.mxu0 %v2283
        %v2874 = vpop.f32.mrf.mxu0
        %v2875 = vadd.f32 0.0, %v2874
        %v2876 = vpop.f32.mrf.mxu0
        %2877 = vmatprep.mubr.f32.mxu0 0.0
        %2878 = vmatmul.mubr.f32.gmra.mxu0 %v2286
        %v2879 = vpop.f32.mrf.mxu0
        %v2880 = vadd.f32 0.0, %v2879
        %v2881 = vpop.f32.mrf.mxu0
        %2882 = vmatprep.mubr.f32.mxu0 0.0
        %2883 = vmatmul.mubr.f32.gmra.mxu0 %v2289
        %v2884 = vpop.f32.mrf.mxu0
        %v2885 = vadd.f32 0.0, %v2884
        %v2886 = vpop.f32.mrf.mxu0
        %2887 = vmatprep.mubr.f32.mxu0 0.0
        %2888 = vmatmul.mubr.f32.gmra.mxu0 %v2292
        %v2889 = vpop.f32.mrf.mxu0
        %v2890 = vadd.f32 0.0, %v2889
        %v2891 = vpop.f32.mrf.mxu0
        %2892 = vmatprep.mubr.f32.mxu0 0.0
        %2893 = vmatmul.mubr.f32.gmra.mxu0 %v2295
        %v2894 = vpop.f32.mrf.mxu0
        %v2895 = vadd.f32 0.0, %v2894
        %v2896 = vpop.f32.mrf.mxu0
        %2897 = vmatprep.mubr.f32.mxu0 0.0
        %2898 = vmatmul.mubr.f32.gmra.mxu0 %v2298
        %v2899 = vpop.f32.mrf.mxu0
        %v2900 = vadd.f32 0.0, %v2899
        %v2901 = vpop.f32.mrf.mxu0
        %2902 = vmatprep.mubr.f32.mxu0 0.0
        %2903 = vmatmul.mubr.f32.gmra.mxu0 %v2301
        %v2904 = vpop.f32.mrf.mxu0
        %v2905 = vadd.f32 0.0, %v2904
        %v2906 = vpop.f32.mrf.mxu0
        %2907 = vmatprep.mubr.f32.mxu0 0.0
        %2908 = vmatmul.mubr.f32.gmra.mxu0 %v2304
        %v2909 = vpop.f32.mrf.mxu0
        %v2910 = vadd.f32 0.0, %v2909
        %v2911 = vpop.f32.mrf.mxu0
        %2912 = vmatprep.mubr.f32.mxu0 0.0
        %2913 = vmatmul.mubr.f32.gmra.mxu0 %v2307
        %v2914 = vpop.f32.mrf.mxu0
        %v2915 = vadd.f32 0.0, %v2914
        %v2916 = vpop.f32.mrf.mxu0
        %2917 = vmatprep.mubr.f32.mxu0 0.0
        %2918 = vmatmul.mubr.f32.gmra.mxu0 %v2310
        %v2919 = vpop.f32.mrf.mxu0
        %v2920 = vadd.f32 0.0, %v2919
        %v2921 = vpop.f32.mrf.mxu0
        %2922 = vmatprep.mubr.f32.mxu0 0.0
        %2923 = vmatmul.mubr.f32.gmra.mxu0 %v2313
        %v2924 = vpop.f32.mrf.mxu0
        %v2925 = vadd.f32 0.0, %v2924
        %v2926 = vpop.f32.mrf.mxu0
        %2927 = vmatprep.mubr.f32.mxu0 0.0
        %2928 = vmatmul.mubr.f32.gmra.mxu0 %v2316
        %v2929 = vpop.f32.mrf.mxu0
        %v2930 = vadd.f32 0.0, %v2929
        %v2931 = vpop.f32.mrf.mxu0
        %2932 = vmatprep.mubr.f32.mxu0 0.0
        %2933 = vmatmul.mubr.f32.gmra.mxu0 %v2319
        %v2934 = vpop.f32.mrf.mxu0
        %v2935 = vadd.f32 0.0, %v2934
        %v2936 = vpop.f32.mrf.mxu0
        %2937 = vmatprep.mubr.f32.mxu0 0.0
        %2938 = vmatmul.mubr.f32.gmra.mxu0 %v2322
        %v2939 = vpop.f32.mrf.mxu0
        %v2940 = vadd.f32 0.0, %v2939
        %v2941 = vpop.f32.mrf.mxu0
        %2942 = vmatprep.mubr.f32.mxu0 0.0
        %2943 = vmatmul.mubr.f32.gmra.mxu0 %v2325
        %v2944 = vpop.f32.mrf.mxu0
        %v2945 = vadd.f32 0.0, %v2944
        %v2946 = vpop.f32.mrf.mxu0
        %2947 = vmatprep.mubr.f32.mxu0 0.0
        %2948 = vmatmul.mubr.f32.gmra.mxu0 %v2328
        %v2949 = vpop.f32.mrf.mxu0
        %v2950 = vadd.f32 0.0, %v2949
        %v2951 = vpop.f32.mrf.mxu0
        %2952 = vmatprep.mubr.f32.mxu0 0.0
        %2953 = vmatmul.mubr.f32.gmra.mxu0 %v2331
        %v2954 = vpop.f32.mrf.mxu0
        %v2955 = vadd.f32 0.0, %v2954
        %v2956 = vpop.f32.mrf.mxu0
        %2957 = vmatprep.mubr.f32.mxu0 0.0
        %2958 = vmatmul.mubr.f32.gmra.mxu0 %v2334
        %v2959 = vpop.f32.mrf.mxu0
        %v2960 = vadd.f32 0.0, %v2959
        %v2961 = vpop.f32.mrf.mxu0
        %2962 = vmatprep.mubr.f32.mxu0 0.0
        %2963 = vmatmul.mubr.f32.gmra.mxu0 %v2337
        %v2964 = vpop.f32.mrf.mxu0
        %v2965 = vadd.f32 0.0, %v2964
        %v2966 = vpop.f32.mrf.mxu0
        %2967 = vmatprep.mubr.f32.mxu0 0.0
        %2968 = vmatmul.mubr.f32.gmra.mxu0 %v2340
        %v2969 = vpop.f32.mrf.mxu0
        %v2970 = vadd.f32 0.0, %v2969
        %v2971 = vpop.f32.mrf.mxu0
        %2972 = vmatprep.mubr.f32.mxu0 0.0
        %2973 = vmatmul.mubr.f32.gmra.mxu0 %v2343
        %v2974 = vpop.f32.mrf.mxu0
        %v2975 = vadd.f32 0.0, %v2974
        %v2976 = vpop.f32.mrf.mxu0
        %2977 = vmatprep.mubr.f32.mxu0 0.0
        %2978 = vmatmul.mubr.f32.gmra.mxu0 %v2346
        %v2979 = vpop.f32.mrf.mxu0
        %v2980 = vadd.f32 0.0, %v2979
        %v2981 = vpop.f32.mrf.mxu0
        %2982 = vmatprep.mubr.f32.mxu0 0.0
        %2983 = vmatmul.mubr.f32.gmra.mxu0 %v2349
        %v2984 = vpop.f32.mrf.mxu0
        %v2985 = vadd.f32 0.0, %v2984
        %v2986 = vpop.f32.mrf.mxu0
        %2987 = vmatprep.mubr.f32.mxu0 0.0
        %2988 = vmatmul.mubr.f32.gmra.mxu0 %v2352
        %v2989 = vpop.f32.mrf.mxu0
        %v2990 = vadd.f32 0.0, %v2989
        %v2991 = vpop.f32.mrf.mxu0
        %2992 = vmatprep.mubr.f32.mxu0 0.0
        %2993 = vmatmul.mubr.f32.gmra.mxu0 %v2355
        %v2994 = vpop.f32.mrf.mxu0
        %v2995 = vadd.f32 0.0, %v2994
        %v2996 = vpop.f32.mrf.mxu0
        %2997 = vmatprep.mubr.f32.mxu0 0.0
        %2998 = vmatmul.mubr.f32.gmra.mxu0 %v2358
        %v2999 = vpop.f32.mrf.mxu0
        %v3000 = vadd.f32 0.0, %v2999
        %v3001 = vpop.f32.mrf.mxu0
        %3002 = vmatprep.mubr.f32.mxu0 0.0
        %3003 = vmatmul.mubr.f32.gmra.mxu0 %v2361
        %v3004 = vpop.f32.mrf.mxu0
        %v3005 = vadd.f32 0.0, %v3004
        %v3006 = vpop.f32.mrf.mxu0
        %3007 = vmatprep.mubr.f32.mxu0 0.0
        %3008 = vmatmul.mubr.f32.gmra.mxu0 %v2364
        %v3009 = vpop.f32.mrf.mxu0
        %v3010 = vadd.f32 0.0, %v3009
        %v3011 = vpop.f32.mrf.mxu0
        %3012 = vmatprep.mubr.f32.mxu0 0.0
        %3013 = vmatmul.mubr.f32.gmra.mxu0 %v2367
        %v3014 = vpop.f32.mrf.mxu0
        %v3015 = vadd.f32 0.0, %v3014
        %v3016 = vpop.f32.mrf.mxu0
        %3017 = vmatprep.mubr.f32.mxu0 0.0
        %3018 = vmatmul.mubr.f32.gmra.mxu0 %v2370
        %v3019 = vpop.f32.mrf.mxu0
        %v3020 = vadd.f32 0.0, %v3019
        %v3021 = vpop.f32.mrf.mxu0
        %3022 = vmatprep.mubr.f32.mxu0 0.0
        %3023 = vmatmul.mubr.f32.gmra.mxu0 %v2373
        %v3024 = vpop.f32.mrf.mxu0
        %v3025 = vadd.f32 0.0, %v3024
        %v3026 = vpop.f32.mrf.mxu0
        %3027 = vmatprep.mubr.f32.mxu0 0.0
        %3028 = vmatmul.mubr.f32.gmra.mxu0 %v2376
        %v3029 = vpop.f32.mrf.mxu0
        %v3030 = vadd.f32 0.0, %v3029
        %v3031 = vpop.f32.mrf.mxu0
        %3032 = vmatprep.mubr.f32.mxu0 0.0
        %3033 = vmatmul.mubr.f32.gmra.mxu0 %v2379
        %v3034 = vpop.f32.mrf.mxu0
        %v3035 = vadd.f32 0.0, %v3034
        %v3036 = vpop.f32.mrf.mxu0
        %3037 = vmatprep.mubr.f32.mxu0 0.0
        %3038 = vmatmul.mubr.f32.gmra.mxu0 %v2382
        %v3039 = vpop.f32.mrf.mxu0
        %v3040 = vadd.f32 0.0, %v3039
        %v3041 = vpop.f32.mrf.mxu0
        %3042 = vmatprep.mubr.f32.mxu0 0.0
        %3043 = vmatmul.mubr.f32.gmra.mxu0 %v2385
        %v3044 = vpop.f32.mrf.mxu0
        %v3045 = vadd.f32 0.0, %v3044
        %v3046 = vpop.f32.mrf.mxu0
        %3047 = vmatprep.mubr.f32.mxu0 0.0
        %3048 = vmatmul.mubr.f32.gmra.mxu0 %v2388
        %v3049 = vpop.f32.mrf.mxu0
        %v3050 = vadd.f32 0.0, %v3049
        %v3051 = vpop.f32.mrf.mxu0
        %3052 = vmatprep.mubr.f32.mxu0 0.0
        %3053 = vmatmul.mubr.f32.gmra.mxu0 %v2391
        %v3054 = vpop.f32.mrf.mxu0
        %v3055 = vadd.f32 0.0, %v3054
        %v3056 = vpop.f32.mrf.mxu0
        %3057 = vmatprep.mubr.f32.mxu0 0.0
        %3058 = vmatmul.mubr.f32.gmra.mxu0 %v2394
        %v3059 = vpop.f32.mrf.mxu0
        %v3060 = vadd.f32 0.0, %v3059
        %v3061 = vpop.f32.mrf.mxu0
        %3062 = vmatprep.mubr.f32.mxu0 0.0
        %3063 = vmatmul.mubr.f32.gmra.mxu0 %v2397
        %v3064 = vpop.f32.mrf.mxu0
        %v3065 = vadd.f32 0.0, %v3064
        %v3066 = vpop.f32.mrf.mxu0
        %3067 = vmatprep.mubr.f32.mxu0 0.0
        %3068 = vmatmul.mubr.f32.gmra.mxu0 %v2400
        %v3069 = vpop.f32.mrf.mxu0
        %v3070 = vadd.f32 0.0, %v3069
        %v3071 = vpop.f32.mrf.mxu0
        %3072 = vmatprep.mubr.f32.mxu0 0.0
        %3073 = vmatmul.mubr.f32.gmra.mxu0 %v2403
        %v3074 = vpop.f32.mrf.mxu0
        %v3075 = vadd.f32 0.0, %v3074
        %v3076 = vpop.f32.mrf.mxu0
        %3077 = vmatprep.mubr.f32.mxu0 0.0
        %3078 = vmatmul.mubr.f32.gmra.mxu0 %v2406
        %v3079 = vpop.f32.mrf.mxu0
        %v3080 = vadd.f32 0.0, %v3079
        %v3081 = vpop.f32.mrf.mxu0
        %3082 = vmatprep.mubr.f32.mxu0 0.0
        %3083 = vmatmul.mubr.f32.gmra.mxu0 %v2409
        %v3084 = vpop.f32.mrf.mxu0
        %v3085 = vadd.f32 0.0, %v3084
        %v3086 = vpop.f32.mrf.mxu0
        %3087 = vmatprep.mubr.f32.mxu0 0.0
        %3088 = vmatmul.mubr.f32.gmra.mxu0 %v2412
        %v3089 = vpop.f32.mrf.mxu0
        %v3090 = vadd.f32 0.0, %v3089
        %v3091 = vpop.f32.mrf.mxu0
        %3092 = vmatprep.mubr.f32.mxu0 0.0
        %3093 = vmatmul.mubr.f32.gmra.mxu0 %v2415
        %v3094 = vpop.f32.mrf.mxu0
        %v3095 = vadd.f32 0.0, %v3094
        %v3096 = vpop.f32.mrf.mxu0
        %3097 = vmatprep.mubr.f32.mxu0 0.0
        %3098 = vmatmul.mubr.f32.gmra.mxu0 %v2418
        %v3099 = vpop.f32.mrf.mxu0
        %v3100 = vadd.f32 0.0, %v3099
        %v3101 = vpop.f32.mrf.mxu0
        %3102 = vmatprep.mubr.f32.mxu0 0.0
        %3103 = vmatmul.mubr.f32.gmra.mxu0 %v2421
        %v3104 = vpop.f32.mrf.mxu0
        %v3105 = vadd.f32 0.0, %v3104
        %v3106 = vpop.f32.mrf.mxu0
        %3107 = vmatprep.mubr.f32.mxu0 0.0
        %3108 = vmatmul.mubr.f32.gmra.mxu0 %v2424
        %v3109 = vpop.f32.mrf.mxu0
        %v3110 = vadd.f32 0.0, %v3109
        %v3111 = vpop.f32.mrf.mxu0
        %3112 = vmatprep.mubr.f32.mxu0 0.0
        %3113 = vmatmul.mubr.f32.gmra.mxu0 %v2427
        %v3114 = vpop.f32.mrf.mxu0
        %v3115 = vadd.f32 0.0, %v3114
        %v3116 = vpop.f32.mrf.mxu0
        %3117 = vmatprep.mubr.f32.mxu0 0.0
        %3118 = vmatmul.mubr.f32.gmra.mxu0 %v2430
        %v3119 = vpop.f32.mrf.mxu0
        %v3120 = vadd.f32 0.0, %v3119
        %v3121 = vpop.f32.mrf.mxu0
        %3122 = vmatprep.mubr.f32.mxu0 0.0
        %3123 = vmatmul.mubr.f32.gmra.mxu0 %v2433
        %v3124 = vpop.f32.mrf.mxu0
        %v3125 = vadd.f32 0.0, %v3124
        %v3126 = vpop.f32.mrf.mxu0
        %3127 = vmatprep.mubr.f32.mxu0 0.0
        %3128 = vmatmul.mubr.f32.gmra.mxu0 %v2436
        %v3129 = vpop.f32.mrf.mxu0
        %v3130 = vadd.f32 0.0, %v3129
        %v3131 = vpop.f32.mrf.mxu0
        %3132 = vmatprep.mubr.f32.mxu0 0.0
        %3133 = vmatmul.mubr.f32.gmra.mxu0 %v2439
        %v3134 = vpop.f32.mrf.mxu0
        %v3135 = vadd.f32 0.0, %v3134
        %v3136 = vpop.f32.mrf.mxu0
        %3137 = vmatprep.mubr.f32.mxu0 0.0
        %3138 = vmatmul.mubr.f32.gmra.mxu0 %v2442
        %v3139 = vpop.f32.mrf.mxu0
        %v3140 = vadd.f32 0.0, %v3139
        %v3141 = vpop.f32.mrf.mxu0
        %3142 = vmatprep.mubr.f32.mxu0 0.0
        %3143 = vmatmul.mubr.f32.gmra.mxu0 %v2445
        %v3144 = vpop.f32.mrf.mxu0
        %v3145 = vadd.f32 0.0, %v3144
        %v3146 = vpop.f32.mrf.mxu0
        %3147 = vmatprep.mubr.f32.mxu0 0.0
        %3148 = vmatmul.mubr.f32.gmra.mxu0 %v2448
        %v3149 = vpop.f32.mrf.mxu0
        %v3150 = vadd.f32 0.0, %v3149
        %v3151 = vpop.f32.mrf.mxu0
        %3152 = vmatprep.mubr.f32.mxu0 0.0
        %3153 = vmatmul.mubr.f32.gmra.mxu0 %v2451
        %v3154 = vpop.f32.mrf.mxu0
        %v3155 = vadd.f32 0.0, %v3154
        %v3156 = vpop.f32.mrf.mxu0
        %3157 = vdwg.mxu0
        %vm3158 = vcmask 261120
        %v3160 = vsel %vm3158, %v1927, 0
        %v3163 = vsel %vm3158, %v1928, 0
        %v3166 = vsel %vm3158, %v1929, 0
        %v3169 = vsel %vm3158, %v1930, 0
        %v3172 = vsel %vm3158, %v1931, 0
        %v3175 = vsel %vm3158, %v1932, 0
        %v3178 = vsel %vm3158, %v1933, 0
        %v3181 = vsel %vm3158, %v1934, 0
        %v3184 = vsel %vm3158, %v1935, 0
        %v3187 = vsel %vm3158, %v1936, 0
        %v3190 = vsel %vm3158, %v1937, 0
        %v3193 = vsel %vm3158, %v1938, 0
        %v3196 = vsel %vm3158, %v1939, 0
        %v3199 = vsel %vm3158, %v1940, 0
        %v3202 = vsel %vm3158, %v1941, 0
        %v3205 = vsel %vm3158, %v1942, 0
        %v3208 = vsel %vm3158, %v1943, 0
        %v3211 = vsel %vm3158, %v1944, 0
        %v3214 = vsel %vm3158, %v1945, 0
        %v3217 = vsel %vm3158, %v1946, 0
        %v3220 = vsel %vm3158, %v1947, 0
        %v3223 = vsel %vm3158, %v1948, 0
        %v3226 = vsel %vm3158, %v1949, 0
        %v3229 = vsel %vm3158, %v1950, 0
        %v3232 = vsel %vm3158, %v1951, 0
        %v3235 = vsel %vm3158, %v1952, 0
        %v3238 = vsel %vm3158, %v1953, 0
        %v3241 = vsel %vm3158, %v1954, 0
        %v3244 = vsel %vm3158, %v1955, 0
        %v3247 = vsel %vm3158, %v1956, 0
        %v3250 = vsel %vm3158, %v1957, 0
        %v3253 = vsel %vm3158, %v1958, 0
        %v3256 = vsel %vm3158, %v1959, 0
        %v3259 = vsel %vm3158, %v1960, 0
        %v3262 = vsel %vm3158, %v1961, 0
        %v3265 = vsel %vm3158, %v1962, 0
        %v3268 = vsel %vm3158, %v1963, 0
        %v3271 = vsel %vm3158, %v1964, 0
        %v3274 = vsel %vm3158, %v1965, 0
        %v3277 = vsel %vm3158, %v1966, 0
        %v3280 = vsel %vm3158, %v1967, 0
        %v3283 = vsel %vm3158, %v1968, 0
        %v3286 = vsel %vm3158, %v1969, 0
        %v3289 = vsel %vm3158, %v1970, 0
        %v3292 = vsel %vm3158, %v1971, 0
        %v3295 = vsel %vm3158, %v1972, 0
        %v3298 = vsel %vm3158, %v1973, 0
        %v3301 = vsel %vm3158, %v1974, 0
        %v3304 = vsel %vm3158, %v1975, 0
        %v3307 = vsel %vm3158, %v1976, 0
        %v3310 = vsel %vm3158, %v1977, 0
        %v3313 = vsel %vm3158, %v1978, 0
        %v3316 = vsel %vm3158, %v1979, 0
        %v3319 = vsel %vm3158, %v1980, 0
        %v3322 = vsel %vm3158, %v1981, 0
        %v3325 = vsel %vm3158, %v1982, 0
        %v3328 = vsel %vm3158, %v1983, 0
        %v3331 = vsel %vm3158, %v1984, 0
        %v3334 = vsel %vm3158, %v1985, 0
        %v3337 = vsel %vm3158, %v1986, 0
        %v3340 = vsel %vm3158, %v1987, 0
        %v3343 = vsel %vm3158, %v1988, 0
        %v3346 = vsel %vm3158, %v1989, 0
        %v3349 = vsel %vm3158, %v1990, 0
        %v3352 = vsel %vm3158, %v1991, 0
        %v3355 = vsel %vm3158, %v1992, 0
        %v3358 = vsel %vm3158, %v1993, 0
        %v3361 = vsel %vm3158, %v1994, 0
        %v3364 = vsel %vm3158, %v1995, 0
        %v3367 = vsel %vm3158, %v1996, 0
        %v3370 = vsel %vm3158, %v1997, 0
        %v3373 = vsel %vm3158, %v1998, 0
        %v3376 = vsel %vm3158, %v1999, 0
        %v3379 = vsel %vm3158, %v2000, 0
        %v3382 = vsel %vm3158, %v2001, 0
        %v3385 = vsel %vm3158, %v2002, 0
        %v3388 = vsel %vm3158, %v2003, 0
        %v3391 = vsel %vm3158, %v2004, 0
        %v3394 = vsel %vm3158, %v2005, 0
        %v3397 = vsel %vm3158, %v2006, 0
        %v3400 = vsel %vm3158, %v2007, 0
        %v3403 = vsel %vm3158, %v2008, 0
        %v3406 = vsel %vm3158, %v2009, 0
        %v3409 = vsel %vm3158, %v2010, 0
        %v3412 = vsel %vm3158, %v2011, 0
        %v3415 = vsel %vm3158, %v2012, 0
        %v3418 = vsel %vm3158, %v2013, 0
        %v3421 = vsel %vm3158, %v2014, 0
        %v3424 = vsel %vm3158, %v2015, 0
        %v3427 = vsel %vm3158, %v2016, 0
        %v3430 = vsel %vm3158, %v2017, 0
        %v3433 = vsel %vm3158, %v2018, 0
        %v3436 = vsel %vm3158, %v2019, 0
        %v3439 = vsel %vm3158, %v2020, 0
        %v3442 = vsel %vm3158, %v2021, 0
        %v3445 = vsel %vm3158, %v2022, 0
        %v3448 = vsel %vm3158, %v2023, 0
        %v3451 = vsel %vm3158, %v2024, 0
        %v3454 = vsel %vm3158, %v2025, 0
        %v3457 = vsel %vm3158, %v2026, 0
        %v3460 = vsel %vm3158, %v2027, 0
        %v3463 = vsel %vm3158, %v2028, 0
        %v3466 = vsel %vm3158, %v2029, 0
        %v3469 = vsel %vm3158, %v2030, 0
        %v3472 = vsel %vm3158, %v2031, 0
        %v3475 = vsel %vm3158, %v2032, 0
        %v3478 = vsel %vm3158, %v2033, 0
        %v3481 = vsel %vm3158, %v2034, 0
        %v3484 = vsel %vm3158, %v2035, 0
        %v3487 = vsel %vm3158, %v2036, 0
        %v3490 = vsel %vm3158, %v2037, 0
        %v3493 = vsel %vm3158, %v2038, 0
        %v3496 = vsel %vm3158, %v2039, 0
        %v3499 = vsel %vm3158, %v2040, 0
        %v3502 = vsel %vm3158, %v2041, 0
        %v3505 = vsel %vm3158, %v2042, 0
        %v3508 = vsel %vm3158, %v2043, 0
        %v3511 = vsel %vm3158, %v2044, 0
        %v3514 = vsel %vm3158, %v2045, 0
        %v3517 = vsel %vm3158, %v2046, 0
        %v3520 = vsel %vm3158, %v2047, 0
        %v3523 = vsel %vm3158, %v2048, 0
        %v3526 = vsel %vm3158, %v2049, 0
        %v3529 = vsel %vm3158, %v2050, 0
        %v3532 = vsel %vm3158, %v2051, 0
        %v3535 = vsel %vm3158, %v2052, 0
        %v3538 = vsel %vm3158, %v2053, 0
        %v3541 = vsel %vm3158, %v2054, 0
        %3543 = vmatprep.subr.mxu0 0.0
        %3544 = vmatpush1.msra.mxu0 0.0
        %3545 = vmatprep.subr.mxu0 0.0
        %3546 = vmatpush1.msra.mxu0 0.0
        %3547 = vmatprep.subr.mxu0 0.0
        %3548 = vmatpush1.msra.mxu0 0.0
        %3549 = vmatprep.subr.mxu0 0.0
        %3550 = vmatpush1.msra.mxu0 0.0
        %3551 = vmatprep.subr.mxu0 0.0
        %3552 = vmatpush1.msra.mxu0 0.0
        %3553 = vmatprep.subr.mxu0 0.0
        %3554 = vmatpush1.msra.mxu0 0.0
        %3555 = vmatprep.subr.mxu0 0.0
        %3556 = vmatpush1.msra.mxu0 0.0
        %3557 = vmatprep.subr.mxu0 0.0
        %3558 = vmatpush1.msra.mxu0 0.0
        %3559 = vmatprep.subr.mxu0 0.0
        %3560 = vmatpush1.msra.mxu0 0.0
        %3561 = vmatprep.subr.mxu0 0.0
        %3562 = vmatpush1.msra.mxu0 0.0
        %3563 = vmatprep.subr.mxu0 0.0
        %3564 = vmatpush1.msra.mxu0 0.0
        %3565 = vmatprep.subr.mxu0 0.0
        %3566 = vmatpush1.msra.mxu0 0.0
        %3567 = vmatprep.subr.mxu0 0.0
        %3568 = vmatpush1.msra.mxu0 %v2058
        %3569 = vmatprep.subr.mxu0 0.0
        %3570 = vmatpush1.msra.mxu0 %v2057
        %3571 = vmatprep.subr.mxu0 0.0
        %3572 = vmatpush1.msra.mxu0 %v2056
        %3573 = vmatprep.subr.mxu0 0.0
        %3574 = vmatpush1.msra.mxu0 %v2055
        %3575 = vmatprep.subr.mxu0 0.0
        %3576 = vmatpush2.msra.mxu0 0.0
        %3577 = vmatprep.subr.mxu0 0.0
        %3578 = vmatpush2.msra.mxu0 0.0
        %3579 = vmatprep.subr.mxu0 0.0
        %3580 = vmatpush2.msra.mxu0 0.0
        %3581 = vmatprep.subr.mxu0 0.0
        %3582 = vmatpush2.msra.mxu0 0.0
        %3583 = vmatprep.subr.mxu0 0.0
        %3584 = vmatpush2.msra.mxu0 0.0
        %3585 = vmatprep.subr.mxu0 0.0
        %3586 = vmatpush2.msra.mxu0 0.0
        %3587 = vmatprep.subr.mxu0 0.0
        %3588 = vmatpush2.msra.mxu0 0.0
        %3589 = vmatprep.subr.mxu0 0.0
        %3590 = vmatpush2.msra.mxu0 0.0
        %3591 = vmatprep.subr.mxu0 0.0
        %3592 = vmatpush2.msra.mxu0 0.0
        %3593 = vmatprep.subr.mxu0 0.0
        %3594 = vmatpush2.msra.mxu0 0.0
        %3595 = vmatprep.subr.mxu0 0.0
        %3596 = vmatpush2.msra.mxu0 0.0
        %3597 = vmatprep.subr.mxu0 0.0
        %3598 = vmatpush2.msra.mxu0 0.0
        %3599 = vmatprep.subr.mxu0 0.0
        %3600 = vmatpush2.msra.mxu0 0.0
        %3601 = vmatprep.subr.mxu0 0.0
        %3602 = vmatpush2.msra.mxu0 0.0
        %3603 = vmatprep.subr.mxu0 0.0
        %3604 = vmatpush2.msra.mxu0 0.0
        %3605 = vmatprep.subr.mxu0 0.0
        %3606 = vmatpush2.msra.mxu0 0.0
        %3607 = vmatprep.mubr.f32.mxu0 0.0
        %3608 = vmatmul.mubr.f32.gmra.mxu0 %v3160
        %v3609 = vpop.f32.mrf.mxu0
        %v3610 = vadd.f32 %v2520, %v3609
        %v3611 = vpop.f32.mrf.mxu0
        %3612 = vmatprep.mubr.f32.mxu0 0.0
        %3613 = vmatmul.mubr.f32.gmra.mxu0 %v3163
        %v3614 = vpop.f32.mrf.mxu0
        %v3615 = vadd.f32 %v2525, %v3614
        %v3616 = vpop.f32.mrf.mxu0
        %3617 = vmatprep.mubr.f32.mxu0 0.0
        %3618 = vmatmul.mubr.f32.gmra.mxu0 %v3166
        %v3619 = vpop.f32.mrf.mxu0
        %v3620 = vadd.f32 %v2530, %v3619
        %v3621 = vpop.f32.mrf.mxu0
        %3622 = vmatprep.mubr.f32.mxu0 0.0
        %3623 = vmatmul.mubr.f32.gmra.mxu0 %v3169
        %v3624 = vpop.f32.mrf.mxu0
        %v3625 = vadd.f32 %v2535, %v3624
        %v3626 = vpop.f32.mrf.mxu0
        %3627 = vmatprep.mubr.f32.mxu0 0.0
        %3628 = vmatmul.mubr.f32.gmra.mxu0 %v3172
        %v3629 = vpop.f32.mrf.mxu0
        %v3630 = vadd.f32 %v2540, %v3629
        %v3631 = vpop.f32.mrf.mxu0
        %3632 = vmatprep.mubr.f32.mxu0 0.0
        %3633 = vmatmul.mubr.f32.gmra.mxu0 %v3175
        %v3634 = vpop.f32.mrf.mxu0
        %v3635 = vadd.f32 %v2545, %v3634
        %v3636 = vpop.f32.mrf.mxu0
        %3637 = vmatprep.mubr.f32.mxu0 0.0
        %3638 = vmatmul.mubr.f32.gmra.mxu0 %v3178
        %v3639 = vpop.f32.mrf.mxu0
        %v3640 = vadd.f32 %v2550, %v3639
        %v3641 = vpop.f32.mrf.mxu0
        %3642 = vmatprep.mubr.f32.mxu0 0.0
        %3643 = vmatmul.mubr.f32.gmra.mxu0 %v3181
        %v3644 = vpop.f32.mrf.mxu0
        %v3645 = vadd.f32 %v2555, %v3644
        %v3646 = vpop.f32.mrf.mxu0
        %3647 = vmatprep.mubr.f32.mxu0 0.0
        %3648 = vmatmul.mubr.f32.gmra.mxu0 %v3184
        %v3649 = vpop.f32.mrf.mxu0
        %v3650 = vadd.f32 %v2560, %v3649
        %v3651 = vpop.f32.mrf.mxu0
        %3652 = vmatprep.mubr.f32.mxu0 0.0
        %3653 = vmatmul.mubr.f32.gmra.mxu0 %v3187
        %v3654 = vpop.f32.mrf.mxu0
        %v3655 = vadd.f32 %v2565, %v3654
        %v3656 = vpop.f32.mrf.mxu0
        %3657 = vmatprep.mubr.f32.mxu0 0.0
        %3658 = vmatmul.mubr.f32.gmra.mxu0 %v3190
        %v3659 = vpop.f32.mrf.mxu0
        %v3660 = vadd.f32 %v2570, %v3659
        %v3661 = vpop.f32.mrf.mxu0
        %3662 = vmatprep.mubr.f32.mxu0 0.0
        %3663 = vmatmul.mubr.f32.gmra.mxu0 %v3193
        %v3664 = vpop.f32.mrf.mxu0
        %v3665 = vadd.f32 %v2575, %v3664
        %v3666 = vpop.f32.mrf.mxu0
        %3667 = vmatprep.mubr.f32.mxu0 0.0
        %3668 = vmatmul.mubr.f32.gmra.mxu0 %v3196
        %v3669 = vpop.f32.mrf.mxu0
        %v3670 = vadd.f32 %v2580, %v3669
        %v3671 = vpop.f32.mrf.mxu0
        %3672 = vmatprep.mubr.f32.mxu0 0.0
        %3673 = vmatmul.mubr.f32.gmra.mxu0 %v3199
        %v3674 = vpop.f32.mrf.mxu0
        %v3675 = vadd.f32 %v2585, %v3674
        %v3676 = vpop.f32.mrf.mxu0
        %3677 = vmatprep.mubr.f32.mxu0 0.0
        %3678 = vmatmul.mubr.f32.gmra.mxu0 %v3202
        %v3679 = vpop.f32.mrf.mxu0
        %v3680 = vadd.f32 %v2590, %v3679
        %v3681 = vpop.f32.mrf.mxu0
        %3682 = vmatprep.mubr.f32.mxu0 0.0
        %3683 = vmatmul.mubr.f32.gmra.mxu0 %v3205
        %v3684 = vpop.f32.mrf.mxu0
        %v3685 = vadd.f32 %v2595, %v3684
        %v3686 = vpop.f32.mrf.mxu0
        %3687 = vmatprep.mubr.f32.mxu0 0.0
        %3688 = vmatmul.mubr.f32.gmra.mxu0 %v3208
        %v3689 = vpop.f32.mrf.mxu0
        %v3690 = vadd.f32 %v2600, %v3689
        %v3691 = vpop.f32.mrf.mxu0
        %3692 = vmatprep.mubr.f32.mxu0 0.0
        %3693 = vmatmul.mubr.f32.gmra.mxu0 %v3211
        %v3694 = vpop.f32.mrf.mxu0
        %v3695 = vadd.f32 %v2605, %v3694
        %v3696 = vpop.f32.mrf.mxu0
        %3697 = vmatprep.mubr.f32.mxu0 0.0
        %3698 = vmatmul.mubr.f32.gmra.mxu0 %v3214
        %v3699 = vpop.f32.mrf.mxu0
        %v3700 = vadd.f32 %v2610, %v3699
        %v3701 = vpop.f32.mrf.mxu0
        %3702 = vmatprep.mubr.f32.mxu0 0.0
        %3703 = vmatmul.mubr.f32.gmra.mxu0 %v3217
        %v3704 = vpop.f32.mrf.mxu0
        %v3705 = vadd.f32 %v2615, %v3704
        %v3706 = vpop.f32.mrf.mxu0
        %3707 = vmatprep.mubr.f32.mxu0 0.0
        %3708 = vmatmul.mubr.f32.gmra.mxu0 %v3220
        %v3709 = vpop.f32.mrf.mxu0
        %v3710 = vadd.f32 %v2620, %v3709
        %v3711 = vpop.f32.mrf.mxu0
        %3712 = vmatprep.mubr.f32.mxu0 0.0
        %3713 = vmatmul.mubr.f32.gmra.mxu0 %v3223
        %v3714 = vpop.f32.mrf.mxu0
        %v3715 = vadd.f32 %v2625, %v3714
        %v3716 = vpop.f32.mrf.mxu0
        %3717 = vmatprep.mubr.f32.mxu0 0.0
        %3718 = vmatmul.mubr.f32.gmra.mxu0 %v3226
        %v3719 = vpop.f32.mrf.mxu0
        %v3720 = vadd.f32 %v2630, %v3719
        %v3721 = vpop.f32.mrf.mxu0
        %3722 = vmatprep.mubr.f32.mxu0 0.0
        %3723 = vmatmul.mubr.f32.gmra.mxu0 %v3229
        %v3724 = vpop.f32.mrf.mxu0
        %v3725 = vadd.f32 %v2635, %v3724
        %v3726 = vpop.f32.mrf.mxu0
        %3727 = vmatprep.mubr.f32.mxu0 0.0
        %3728 = vmatmul.mubr.f32.gmra.mxu0 %v3232
        %v3729 = vpop.f32.mrf.mxu0
        %v3730 = vadd.f32 %v2640, %v3729
        %v3731 = vpop.f32.mrf.mxu0
        %3732 = vmatprep.mubr.f32.mxu0 0.0
        %3733 = vmatmul.mubr.f32.gmra.mxu0 %v3235
        %v3734 = vpop.f32.mrf.mxu0
        %v3735 = vadd.f32 %v2645, %v3734
        %v3736 = vpop.f32.mrf.mxu0
        %3737 = vmatprep.mubr.f32.mxu0 0.0
        %3738 = vmatmul.mubr.f32.gmra.mxu0 %v3238
        %v3739 = vpop.f32.mrf.mxu0
        %v3740 = vadd.f32 %v2650, %v3739
        %v3741 = vpop.f32.mrf.mxu0
        %3742 = vmatprep.mubr.f32.mxu0 0.0
        %3743 = vmatmul.mubr.f32.gmra.mxu0 %v3241
        %v3744 = vpop.f32.mrf.mxu0
        %v3745 = vadd.f32 %v2655, %v3744
        %v3746 = vpop.f32.mrf.mxu0
        %3747 = vmatprep.mubr.f32.mxu0 0.0
        %3748 = vmatmul.mubr.f32.gmra.mxu0 %v3244
        %v3749 = vpop.f32.mrf.mxu0
        %v3750 = vadd.f32 %v2660, %v3749
        %v3751 = vpop.f32.mrf.mxu0
        %3752 = vmatprep.mubr.f32.mxu0 0.0
        %3753 = vmatmul.mubr.f32.gmra.mxu0 %v3247
        %v3754 = vpop.f32.mrf.mxu0
        %v3755 = vadd.f32 %v2665, %v3754
        %v3756 = vpop.f32.mrf.mxu0
        %3757 = vmatprep.mubr.f32.mxu0 0.0
        %3758 = vmatmul.mubr.f32.gmra.mxu0 %v3250
        %v3759 = vpop.f32.mrf.mxu0
        %v3760 = vadd.f32 %v2670, %v3759
        %v3761 = vpop.f32.mrf.mxu0
        %3762 = vmatprep.mubr.f32.mxu0 0.0
        %3763 = vmatmul.mubr.f32.gmra.mxu0 %v3253
        %v3764 = vpop.f32.mrf.mxu0
        %v3765 = vadd.f32 %v2675, %v3764
        %v3766 = vpop.f32.mrf.mxu0
        %3767 = vmatprep.mubr.f32.mxu0 0.0
        %3768 = vmatmul.mubr.f32.gmra.mxu0 %v3256
        %v3769 = vpop.f32.mrf.mxu0
        %v3770 = vadd.f32 %v2680, %v3769
        %v3771 = vpop.f32.mrf.mxu0
        %3772 = vmatprep.mubr.f32.mxu0 0.0
        %3773 = vmatmul.mubr.f32.gmra.mxu0 %v3259
        %v3774 = vpop.f32.mrf.mxu0
        %v3775 = vadd.f32 %v2685, %v3774
        %v3776 = vpop.f32.mrf.mxu0
        %3777 = vmatprep.mubr.f32.mxu0 0.0
        %3778 = vmatmul.mubr.f32.gmra.mxu0 %v3262
        %v3779 = vpop.f32.mrf.mxu0
        %v3780 = vadd.f32 %v2690, %v3779
        %v3781 = vpop.f32.mrf.mxu0
        %3782 = vmatprep.mubr.f32.mxu0 0.0
        %3783 = vmatmul.mubr.f32.gmra.mxu0 %v3265
        %v3784 = vpop.f32.mrf.mxu0
        %v3785 = vadd.f32 %v2695, %v3784
        %v3786 = vpop.f32.mrf.mxu0
        %3787 = vmatprep.mubr.f32.mxu0 0.0
        %3788 = vmatmul.mubr.f32.gmra.mxu0 %v3268
        %v3789 = vpop.f32.mrf.mxu0
        %v3790 = vadd.f32 %v2700, %v3789
        %v3791 = vpop.f32.mrf.mxu0
        %3792 = vmatprep.mubr.f32.mxu0 0.0
        %3793 = vmatmul.mubr.f32.gmra.mxu0 %v3271
        %v3794 = vpop.f32.mrf.mxu0
        %v3795 = vadd.f32 %v2705, %v3794
        %v3796 = vpop.f32.mrf.mxu0
        %3797 = vmatprep.mubr.f32.mxu0 0.0
        %3798 = vmatmul.mubr.f32.gmra.mxu0 %v3274
        %v3799 = vpop.f32.mrf.mxu0
        %v3800 = vadd.f32 %v2710, %v3799
        %v3801 = vpop.f32.mrf.mxu0
        %3802 = vmatprep.mubr.f32.mxu0 0.0
        %3803 = vmatmul.mubr.f32.gmra.mxu0 %v3277
        %v3804 = vpop.f32.mrf.mxu0
        %v3805 = vadd.f32 %v2715, %v3804
        %v3806 = vpop.f32.mrf.mxu0
        %3807 = vmatprep.mubr.f32.mxu0 0.0
        %3808 = vmatmul.mubr.f32.gmra.mxu0 %v3280
        %v3809 = vpop.f32.mrf.mxu0
        %v3810 = vadd.f32 %v2720, %v3809
        %v3811 = vpop.f32.mrf.mxu0
        %3812 = vmatprep.mubr.f32.mxu0 0.0
        %3813 = vmatmul.mubr.f32.gmra.mxu0 %v3283
        %v3814 = vpop.f32.mrf.mxu0
        %v3815 = vadd.f32 %v2725, %v3814
        %v3816 = vpop.f32.mrf.mxu0
        %3817 = vmatprep.mubr.f32.mxu0 0.0
        %3818 = vmatmul.mubr.f32.gmra.mxu0 %v3286
        %v3819 = vpop.f32.mrf.mxu0
        %v3820 = vadd.f32 %v2730, %v3819
        %v3821 = vpop.f32.mrf.mxu0
        %3822 = vmatprep.mubr.f32.mxu0 0.0
        %3823 = vmatmul.mubr.f32.gmra.mxu0 %v3289
        %v3824 = vpop.f32.mrf.mxu0
        %v3825 = vadd.f32 %v2735, %v3824
        %v3826 = vpop.f32.mrf.mxu0
        %3827 = vmatprep.mubr.f32.mxu0 0.0
        %3828 = vmatmul.mubr.f32.gmra.mxu0 %v3292
        %v3829 = vpop.f32.mrf.mxu0
        %v3830 = vadd.f32 %v2740, %v3829
        %v3831 = vpop.f32.mrf.mxu0
        %3832 = vmatprep.mubr.f32.mxu0 0.0
        %3833 = vmatmul.mubr.f32.gmra.mxu0 %v3295
        %v3834 = vpop.f32.mrf.mxu0
        %v3835 = vadd.f32 %v2745, %v3834
        %v3836 = vpop.f32.mrf.mxu0
        %3837 = vmatprep.mubr.f32.mxu0 0.0
        %3838 = vmatmul.mubr.f32.gmra.mxu0 %v3298
        %v3839 = vpop.f32.mrf.mxu0
        %v3840 = vadd.f32 %v2750, %v3839
        %v3841 = vpop.f32.mrf.mxu0
        %3842 = vmatprep.mubr.f32.mxu0 0.0
        %3843 = vmatmul.mubr.f32.gmra.mxu0 %v3301
        %v3844 = vpop.f32.mrf.mxu0
        %v3845 = vadd.f32 %v2755, %v3844
        %v3846 = vpop.f32.mrf.mxu0
        %3847 = vmatprep.mubr.f32.mxu0 0.0
        %3848 = vmatmul.mubr.f32.gmra.mxu0 %v3304
        %v3849 = vpop.f32.mrf.mxu0
        %v3850 = vadd.f32 %v2760, %v3849
        %v3851 = vpop.f32.mrf.mxu0
        %3852 = vmatprep.mubr.f32.mxu0 0.0
        %3853 = vmatmul.mubr.f32.gmra.mxu0 %v3307
        %v3854 = vpop.f32.mrf.mxu0
        %v3855 = vadd.f32 %v2765, %v3854
        %v3856 = vpop.f32.mrf.mxu0
        %3857 = vmatprep.mubr.f32.mxu0 0.0
        %3858 = vmatmul.mubr.f32.gmra.mxu0 %v3310
        %v3859 = vpop.f32.mrf.mxu0
        %v3860 = vadd.f32 %v2770, %v3859
        %v3861 = vpop.f32.mrf.mxu0
        %3862 = vmatprep.mubr.f32.mxu0 0.0
        %3863 = vmatmul.mubr.f32.gmra.mxu0 %v3313
        %v3864 = vpop.f32.mrf.mxu0
        %v3865 = vadd.f32 %v2775, %v3864
        %v3866 = vpop.f32.mrf.mxu0
        %3867 = vmatprep.mubr.f32.mxu0 0.0
        %3868 = vmatmul.mubr.f32.gmra.mxu0 %v3316
        %v3869 = vpop.f32.mrf.mxu0
        %v3870 = vadd.f32 %v2780, %v3869
        %v3871 = vpop.f32.mrf.mxu0
        %3872 = vmatprep.mubr.f32.mxu0 0.0
        %3873 = vmatmul.mubr.f32.gmra.mxu0 %v3319
        %v3874 = vpop.f32.mrf.mxu0
        %v3875 = vadd.f32 %v2785, %v3874
        %v3876 = vpop.f32.mrf.mxu0
        %3877 = vmatprep.mubr.f32.mxu0 0.0
        %3878 = vmatmul.mubr.f32.gmra.mxu0 %v3322
        %v3879 = vpop.f32.mrf.mxu0
        %v3880 = vadd.f32 %v2790, %v3879
        %v3881 = vpop.f32.mrf.mxu0
        %3882 = vmatprep.mubr.f32.mxu0 0.0
        %3883 = vmatmul.mubr.f32.gmra.mxu0 %v3325
        %v3884 = vpop.f32.mrf.mxu0
        %v3885 = vadd.f32 %v2795, %v3884
        %v3886 = vpop.f32.mrf.mxu0
        %3887 = vmatprep.mubr.f32.mxu0 0.0
        %3888 = vmatmul.mubr.f32.gmra.mxu0 %v3328
        %v3889 = vpop.f32.mrf.mxu0
        %v3890 = vadd.f32 %v2800, %v3889
        %v3891 = vpop.f32.mrf.mxu0
        %3892 = vmatprep.mubr.f32.mxu0 0.0
        %3893 = vmatmul.mubr.f32.gmra.mxu0 %v3331
        %v3894 = vpop.f32.mrf.mxu0
        %v3895 = vadd.f32 %v2805, %v3894
        %v3896 = vpop.f32.mrf.mxu0
        %3897 = vmatprep.mubr.f32.mxu0 0.0
        %3898 = vmatmul.mubr.f32.gmra.mxu0 %v3334
        %v3899 = vpop.f32.mrf.mxu0
        %v3900 = vadd.f32 %v2810, %v3899
        %v3901 = vpop.f32.mrf.mxu0
        %3902 = vmatprep.mubr.f32.mxu0 0.0
        %3903 = vmatmul.mubr.f32.gmra.mxu0 %v3337
        %v3904 = vpop.f32.mrf.mxu0
        %v3905 = vadd.f32 %v2815, %v3904
        %v3906 = vpop.f32.mrf.mxu0
        %3907 = vmatprep.mubr.f32.mxu0 0.0
        %3908 = vmatmul.mubr.f32.gmra.mxu0 %v3340
        %v3909 = vpop.f32.mrf.mxu0
        %v3910 = vadd.f32 %v2820, %v3909
        %v3911 = vpop.f32.mrf.mxu0
        %3912 = vmatprep.mubr.f32.mxu0 0.0
        %3913 = vmatmul.mubr.f32.gmra.mxu0 %v3343
        %v3914 = vpop.f32.mrf.mxu0
        %v3915 = vadd.f32 %v2825, %v3914
        %v3916 = vpop.f32.mrf.mxu0
        %3917 = vmatprep.mubr.f32.mxu0 0.0
        %3918 = vmatmul.mubr.f32.gmra.mxu0 %v3346
        %v3919 = vpop.f32.mrf.mxu0
        %v3920 = vadd.f32 %v2830, %v3919
        %v3921 = vpop.f32.mrf.mxu0
        %3922 = vmatprep.mubr.f32.mxu0 0.0
        %3923 = vmatmul.mubr.f32.gmra.mxu0 %v3349
        %v3924 = vpop.f32.mrf.mxu0
        %v3925 = vadd.f32 %v2835, %v3924
        %v3926 = vpop.f32.mrf.mxu0
        %3927 = vmatprep.mubr.f32.mxu0 0.0
        %3928 = vmatmul.mubr.f32.gmra.mxu0 %v3352
        %v3929 = vpop.f32.mrf.mxu0
        %v3930 = vadd.f32 %v2840, %v3929
        %v3931 = vpop.f32.mrf.mxu0
        %3932 = vmatprep.mubr.f32.mxu0 0.0
        %3933 = vmatmul.mubr.f32.gmra.mxu0 %v3355
        %v3934 = vpop.f32.mrf.mxu0
        %v3935 = vadd.f32 %v2845, %v3934
        %v3936 = vpop.f32.mrf.mxu0
        %3937 = vmatprep.mubr.f32.mxu0 0.0
        %3938 = vmatmul.mubr.f32.gmra.mxu0 %v3358
        %v3939 = vpop.f32.mrf.mxu0
        %v3940 = vadd.f32 %v2850, %v3939
        %v3941 = vpop.f32.mrf.mxu0
        %3942 = vmatprep.mubr.f32.mxu0 0.0
        %3943 = vmatmul.mubr.f32.gmra.mxu0 %v3361
        %v3944 = vpop.f32.mrf.mxu0
        %v3945 = vadd.f32 %v2855, %v3944
        %v3946 = vpop.f32.mrf.mxu0
        %3947 = vmatprep.mubr.f32.mxu0 0.0
        %3948 = vmatmul.mubr.f32.gmra.mxu0 %v3364
        %v3949 = vpop.f32.mrf.mxu0
        %v3950 = vadd.f32 %v2860, %v3949
        %v3951 = vpop.f32.mrf.mxu0
        %3952 = vmatprep.mubr.f32.mxu0 0.0
        %3953 = vmatmul.mubr.f32.gmra.mxu0 %v3367
        %v3954 = vpop.f32.mrf.mxu0
        %v3955 = vadd.f32 %v2865, %v3954
        %v3956 = vpop.f32.mrf.mxu0
        %3957 = vmatprep.mubr.f32.mxu0 0.0
        %3958 = vmatmul.mubr.f32.gmra.mxu0 %v3370
        %v3959 = vpop.f32.mrf.mxu0
        %v3960 = vadd.f32 %v2870, %v3959
        %v3961 = vpop.f32.mrf.mxu0
        %3962 = vmatprep.mubr.f32.mxu0 0.0
        %3963 = vmatmul.mubr.f32.gmra.mxu0 %v3373
        %v3964 = vpop.f32.mrf.mxu0
        %v3965 = vadd.f32 %v2875, %v3964
        %v3966 = vpop.f32.mrf.mxu0
        %3967 = vmatprep.mubr.f32.mxu0 0.0
        %3968 = vmatmul.mubr.f32.gmra.mxu0 %v3376
        %v3969 = vpop.f32.mrf.mxu0
        %v3970 = vadd.f32 %v2880, %v3969
        %v3971 = vpop.f32.mrf.mxu0
        %3972 = vmatprep.mubr.f32.mxu0 0.0
        %3973 = vmatmul.mubr.f32.gmra.mxu0 %v3379
        %v3974 = vpop.f32.mrf.mxu0
        %v3975 = vadd.f32 %v2885, %v3974
        %v3976 = vpop.f32.mrf.mxu0
        %3977 = vmatprep.mubr.f32.mxu0 0.0
        %3978 = vmatmul.mubr.f32.gmra.mxu0 %v3382
        %v3979 = vpop.f32.mrf.mxu0
        %v3980 = vadd.f32 %v2890, %v3979
        %v3981 = vpop.f32.mrf.mxu0
        %3982 = vmatprep.mubr.f32.mxu0 0.0
        %3983 = vmatmul.mubr.f32.gmra.mxu0 %v3385
        %v3984 = vpop.f32.mrf.mxu0
        %v3985 = vadd.f32 %v2895, %v3984
        %v3986 = vpop.f32.mrf.mxu0
        %3987 = vmatprep.mubr.f32.mxu0 0.0
        %3988 = vmatmul.mubr.f32.gmra.mxu0 %v3388
        %v3989 = vpop.f32.mrf.mxu0
        %v3990 = vadd.f32 %v2900, %v3989
        %v3991 = vpop.f32.mrf.mxu0
        %3992 = vmatprep.mubr.f32.mxu0 0.0
        %3993 = vmatmul.mubr.f32.gmra.mxu0 %v3391
        %v3994 = vpop.f32.mrf.mxu0
        %v3995 = vadd.f32 %v2905, %v3994
        %v3996 = vpop.f32.mrf.mxu0
        %3997 = vmatprep.mubr.f32.mxu0 0.0
        %3998 = vmatmul.mubr.f32.gmra.mxu0 %v3394
        %v3999 = vpop.f32.mrf.mxu0
        %v4000 = vadd.f32 %v2910, %v3999
        %v4001 = vpop.f32.mrf.mxu0
        %4002 = vmatprep.mubr.f32.mxu0 0.0
        %4003 = vmatmul.mubr.f32.gmra.mxu0 %v3397
        %v4004 = vpop.f32.mrf.mxu0
        %v4005 = vadd.f32 %v2915, %v4004
        %v4006 = vpop.f32.mrf.mxu0
        %4007 = vmatprep.mubr.f32.mxu0 0.0
        %4008 = vmatmul.mubr.f32.gmra.mxu0 %v3400
        %v4009 = vpop.f32.mrf.mxu0
        %v4010 = vadd.f32 %v2920, %v4009
        %v4011 = vpop.f32.mrf.mxu0
        %4012 = vmatprep.mubr.f32.mxu0 0.0
        %4013 = vmatmul.mubr.f32.gmra.mxu0 %v3403
        %v4014 = vpop.f32.mrf.mxu0
        %v4015 = vadd.f32 %v2925, %v4014
        %v4016 = vpop.f32.mrf.mxu0
        %4017 = vmatprep.mubr.f32.mxu0 0.0
        %4018 = vmatmul.mubr.f32.gmra.mxu0 %v3406
        %v4019 = vpop.f32.mrf.mxu0
        %v4020 = vadd.f32 %v2930, %v4019
        %v4021 = vpop.f32.mrf.mxu0
        %4022 = vmatprep.mubr.f32.mxu0 0.0
        %4023 = vmatmul.mubr.f32.gmra.mxu0 %v3409
        %v4024 = vpop.f32.mrf.mxu0
        %v4025 = vadd.f32 %v2935, %v4024
        %v4026 = vpop.f32.mrf.mxu0
        %4027 = vmatprep.mubr.f32.mxu0 0.0
        %4028 = vmatmul.mubr.f32.gmra.mxu0 %v3412
        %v4029 = vpop.f32.mrf.mxu0
        %v4030 = vadd.f32 %v2940, %v4029
        %v4031 = vpop.f32.mrf.mxu0
        %4032 = vmatprep.mubr.f32.mxu0 0.0
        %4033 = vmatmul.mubr.f32.gmra.mxu0 %v3415
        %v4034 = vpop.f32.mrf.mxu0
        %v4035 = vadd.f32 %v2945, %v4034
        %v4036 = vpop.f32.mrf.mxu0
        %4037 = vmatprep.mubr.f32.mxu0 0.0
        %4038 = vmatmul.mubr.f32.gmra.mxu0 %v3418
        %v4039 = vpop.f32.mrf.mxu0
        %v4040 = vadd.f32 %v2950, %v4039
        %v4041 = vpop.f32.mrf.mxu0
        %4042 = vmatprep.mubr.f32.mxu0 0.0
        %4043 = vmatmul.mubr.f32.gmra.mxu0 %v3421
        %v4044 = vpop.f32.mrf.mxu0
        %v4045 = vadd.f32 %v2955, %v4044
        %v4046 = vpop.f32.mrf.mxu0
        %4047 = vmatprep.mubr.f32.mxu0 0.0
        %4048 = vmatmul.mubr.f32.gmra.mxu0 %v3424
        %v4049 = vpop.f32.mrf.mxu0
        %v4050 = vadd.f32 %v2960, %v4049
        %v4051 = vpop.f32.mrf.mxu0
        %4052 = vmatprep.mubr.f32.mxu0 0.0
        %4053 = vmatmul.mubr.f32.gmra.mxu0 %v3427
        %v4054 = vpop.f32.mrf.mxu0
        %v4055 = vadd.f32 %v2965, %v4054
        %v4056 = vpop.f32.mrf.mxu0
        %4057 = vmatprep.mubr.f32.mxu0 0.0
        %4058 = vmatmul.mubr.f32.gmra.mxu0 %v3430
        %v4059 = vpop.f32.mrf.mxu0
        %v4060 = vadd.f32 %v2970, %v4059
        %v4061 = vpop.f32.mrf.mxu0
        %4062 = vmatprep.mubr.f32.mxu0 0.0
        %4063 = vmatmul.mubr.f32.gmra.mxu0 %v3433
        %v4064 = vpop.f32.mrf.mxu0
        %v4065 = vadd.f32 %v2975, %v4064
        %v4066 = vpop.f32.mrf.mxu0
        %4067 = vmatprep.mubr.f32.mxu0 0.0
        %4068 = vmatmul.mubr.f32.gmra.mxu0 %v3436
        %v4069 = vpop.f32.mrf.mxu0
        %v4070 = vadd.f32 %v2980, %v4069
        %v4071 = vpop.f32.mrf.mxu0
        %4072 = vmatprep.mubr.f32.mxu0 0.0
        %4073 = vmatmul.mubr.f32.gmra.mxu0 %v3439
        %v4074 = vpop.f32.mrf.mxu0
        %v4075 = vadd.f32 %v2985, %v4074
        %v4076 = vpop.f32.mrf.mxu0
        %4077 = vmatprep.mubr.f32.mxu0 0.0
        %4078 = vmatmul.mubr.f32.gmra.mxu0 %v3442
        %v4079 = vpop.f32.mrf.mxu0
        %v4080 = vadd.f32 %v2990, %v4079
        %v4081 = vpop.f32.mrf.mxu0
        %4082 = vmatprep.mubr.f32.mxu0 0.0
        %4083 = vmatmul.mubr.f32.gmra.mxu0 %v3445
        %v4084 = vpop.f32.mrf.mxu0
        %v4085 = vadd.f32 %v2995, %v4084
        %v4086 = vpop.f32.mrf.mxu0
        %4087 = vmatprep.mubr.f32.mxu0 0.0
        %4088 = vmatmul.mubr.f32.gmra.mxu0 %v3448
        %v4089 = vpop.f32.mrf.mxu0
        %v4090 = vadd.f32 %v3000, %v4089
        %v4091 = vpop.f32.mrf.mxu0
        %4092 = vmatprep.mubr.f32.mxu0 0.0
        %4093 = vmatmul.mubr.f32.gmra.mxu0 %v3451
        %v4094 = vpop.f32.mrf.mxu0
        %v4095 = vadd.f32 %v3005, %v4094
        %v4096 = vpop.f32.mrf.mxu0
        %4097 = vmatprep.mubr.f32.mxu0 0.0
        %4098 = vmatmul.mubr.f32.gmra.mxu0 %v3454
        %v4099 = vpop.f32.mrf.mxu0
        %v4100 = vadd.f32 %v3010, %v4099
        %v4101 = vpop.f32.mrf.mxu0
        %4102 = vmatprep.mubr.f32.mxu0 0.0
        %4103 = vmatmul.mubr.f32.gmra.mxu0 %v3457
        %v4104 = vpop.f32.mrf.mxu0
        %v4105 = vadd.f32 %v3015, %v4104
        %v4106 = vpop.f32.mrf.mxu0
        %4107 = vmatprep.mubr.f32.mxu0 0.0
        %4108 = vmatmul.mubr.f32.gmra.mxu0 %v3460
        %v4109 = vpop.f32.mrf.mxu0
        %v4110 = vadd.f32 %v3020, %v4109
        %v4111 = vpop.f32.mrf.mxu0
        %4112 = vmatprep.mubr.f32.mxu0 0.0
        %4113 = vmatmul.mubr.f32.gmra.mxu0 %v3463
        %v4114 = vpop.f32.mrf.mxu0
        %v4115 = vadd.f32 %v3025, %v4114
        %v4116 = vpop.f32.mrf.mxu0
        %4117 = vmatprep.mubr.f32.mxu0 0.0
        %4118 = vmatmul.mubr.f32.gmra.mxu0 %v3466
        %v4119 = vpop.f32.mrf.mxu0
        %v4120 = vadd.f32 %v3030, %v4119
        %v4121 = vpop.f32.mrf.mxu0
        %4122 = vmatprep.mubr.f32.mxu0 0.0
        %4123 = vmatmul.mubr.f32.gmra.mxu0 %v3469
        %v4124 = vpop.f32.mrf.mxu0
        %v4125 = vadd.f32 %v3035, %v4124
        %v4126 = vpop.f32.mrf.mxu0
        %4127 = vmatprep.mubr.f32.mxu0 0.0
        %4128 = vmatmul.mubr.f32.gmra.mxu0 %v3472
        %v4129 = vpop.f32.mrf.mxu0
        %v4130 = vadd.f32 %v3040, %v4129
        %v4131 = vpop.f32.mrf.mxu0
        %4132 = vmatprep.mubr.f32.mxu0 0.0
        %4133 = vmatmul.mubr.f32.gmra.mxu0 %v3475
        %v4134 = vpop.f32.mrf.mxu0
        %v4135 = vadd.f32 %v3045, %v4134
        %v4136 = vpop.f32.mrf.mxu0
        %4137 = vmatprep.mubr.f32.mxu0 0.0
        %4138 = vmatmul.mubr.f32.gmra.mxu0 %v3478
        %v4139 = vpop.f32.mrf.mxu0
        %v4140 = vadd.f32 %v3050, %v4139
        %v4141 = vpop.f32.mrf.mxu0
        %4142 = vmatprep.mubr.f32.mxu0 0.0
        %4143 = vmatmul.mubr.f32.gmra.mxu0 %v3481
        %v4144 = vpop.f32.mrf.mxu0
        %v4145 = vadd.f32 %v3055, %v4144
        %v4146 = vpop.f32.mrf.mxu0
        %4147 = vmatprep.mubr.f32.mxu0 0.0
        %4148 = vmatmul.mubr.f32.gmra.mxu0 %v3484
        %v4149 = vpop.f32.mrf.mxu0
        %v4150 = vadd.f32 %v3060, %v4149
        %v4151 = vpop.f32.mrf.mxu0
        %4152 = vmatprep.mubr.f32.mxu0 0.0
        %4153 = vmatmul.mubr.f32.gmra.mxu0 %v3487
        %v4154 = vpop.f32.mrf.mxu0
        %v4155 = vadd.f32 %v3065, %v4154
        %v4156 = vpop.f32.mrf.mxu0
        %4157 = vmatprep.mubr.f32.mxu0 0.0
        %4158 = vmatmul.mubr.f32.gmra.mxu0 %v3490
        %v4159 = vpop.f32.mrf.mxu0
        %v4160 = vadd.f32 %v3070, %v4159
        %v4161 = vpop.f32.mrf.mxu0
        %4162 = vmatprep.mubr.f32.mxu0 0.0
        %4163 = vmatmul.mubr.f32.gmra.mxu0 %v3493
        %v4164 = vpop.f32.mrf.mxu0
        %v4165 = vadd.f32 %v3075, %v4164
        %v4166 = vpop.f32.mrf.mxu0
        %4167 = vmatprep.mubr.f32.mxu0 0.0
        %4168 = vmatmul.mubr.f32.gmra.mxu0 %v3496
        %v4169 = vpop.f32.mrf.mxu0
        %v4170 = vadd.f32 %v3080, %v4169
        %v4171 = vpop.f32.mrf.mxu0
        %4172 = vmatprep.mubr.f32.mxu0 0.0
        %4173 = vmatmul.mubr.f32.gmra.mxu0 %v3499
        %v4174 = vpop.f32.mrf.mxu0
        %v4175 = vadd.f32 %v3085, %v4174
        %v4176 = vpop.f32.mrf.mxu0
        %4177 = vmatprep.mubr.f32.mxu0 0.0
        %4178 = vmatmul.mubr.f32.gmra.mxu0 %v3502
        %v4179 = vpop.f32.mrf.mxu0
        %v4180 = vadd.f32 %v3090, %v4179
        %v4181 = vpop.f32.mrf.mxu0
        %4182 = vmatprep.mubr.f32.mxu0 0.0
        %4183 = vmatmul.mubr.f32.gmra.mxu0 %v3505
        %v4184 = vpop.f32.mrf.mxu0
        %v4185 = vadd.f32 %v3095, %v4184
        %v4186 = vpop.f32.mrf.mxu0
        %4187 = vmatprep.mubr.f32.mxu0 0.0
        %4188 = vmatmul.mubr.f32.gmra.mxu0 %v3508
        %v4189 = vpop.f32.mrf.mxu0
        %v4190 = vadd.f32 %v3100, %v4189
        %v4191 = vpop.f32.mrf.mxu0
        %4192 = vmatprep.mubr.f32.mxu0 0.0
        %4193 = vmatmul.mubr.f32.gmra.mxu0 %v3511
        %v4194 = vpop.f32.mrf.mxu0
        %v4195 = vadd.f32 %v3105, %v4194
        %v4196 = vpop.f32.mrf.mxu0
        %4197 = vmatprep.mubr.f32.mxu0 0.0
        %4198 = vmatmul.mubr.f32.gmra.mxu0 %v3514
        %v4199 = vpop.f32.mrf.mxu0
        %v4200 = vadd.f32 %v3110, %v4199
        %v4201 = vpop.f32.mrf.mxu0
        %4202 = vmatprep.mubr.f32.mxu0 0.0
        %4203 = vmatmul.mubr.f32.gmra.mxu0 %v3517
        %v4204 = vpop.f32.mrf.mxu0
        %v4205 = vadd.f32 %v3115, %v4204
        %v4206 = vpop.f32.mrf.mxu0
        %4207 = vmatprep.mubr.f32.mxu0 0.0
        %4208 = vmatmul.mubr.f32.gmra.mxu0 %v3520
        %v4209 = vpop.f32.mrf.mxu0
        %v4210 = vadd.f32 %v3120, %v4209
        %v4211 = vpop.f32.mrf.mxu0
        %4212 = vmatprep.mubr.f32.mxu0 0.0
        %4213 = vmatmul.mubr.f32.gmra.mxu0 %v3523
        %v4214 = vpop.f32.mrf.mxu0
        %v4215 = vadd.f32 %v3125, %v4214
        %v4216 = vpop.f32.mrf.mxu0
        %4217 = vmatprep.mubr.f32.mxu0 0.0
        %4218 = vmatmul.mubr.f32.gmra.mxu0 %v3526
        %v4219 = vpop.f32.mrf.mxu0
        %v4220 = vadd.f32 %v3130, %v4219
        %v4221 = vpop.f32.mrf.mxu0
        %4222 = vmatprep.mubr.f32.mxu0 0.0
        %4223 = vmatmul.mubr.f32.gmra.mxu0 %v3529
        %v4224 = vpop.f32.mrf.mxu0
        %v4225 = vadd.f32 %v3135, %v4224
        %v4226 = vpop.f32.mrf.mxu0
        %4227 = vmatprep.mubr.f32.mxu0 0.0
        %4228 = vmatmul.mubr.f32.gmra.mxu0 %v3532
        %v4229 = vpop.f32.mrf.mxu0
        %v4230 = vadd.f32 %v3140, %v4229
        %v4231 = vpop.f32.mrf.mxu0
        %4232 = vmatprep.mubr.f32.mxu0 0.0
        %4233 = vmatmul.mubr.f32.gmra.mxu0 %v3535
        %v4234 = vpop.f32.mrf.mxu0
        %v4235 = vadd.f32 %v3145, %v4234
        %v4236 = vpop.f32.mrf.mxu0
        %4237 = vmatprep.mubr.f32.mxu0 0.0
        %4238 = vmatmul.mubr.f32.gmra.mxu0 %v3538
        %v4239 = vpop.f32.mrf.mxu0
        %v4240 = vadd.f32 %v3150, %v4239
        %v4241 = vpop.f32.mrf.mxu0
        %4242 = vmatprep.mubr.f32.mxu0 0.0
        %4243 = vmatmul.mubr.f32.gmra.mxu0 %v3541
        %v4244 = vpop.f32.mrf.mxu0
        %v4245 = vadd.f32 %v3155, %v4244
        %v4246 = vpop.f32.mrf.mxu0
        %4247 = vdwg.mxu0
        %4248 = vst.msk [vmem:[%s227] sm:$0xff] %vm3158, %v3610
        %4249 = vst.msk [vmem:[%s227 + $0x8] sm:$0xff] %vm3158, %v3615
        %4250 = vst.msk [vmem:[%s227 + $0x10] sm:$0xff] %vm3158, %v3620
        %4251 = vst.msk [vmem:[%s227 + $0x18] sm:$0xff] %vm3158, %v3625
        %4252 = vst.msk [vmem:[%s227 + $0x20] sm:$0xff] %vm3158, %v3630
        %4253 = vst.msk [vmem:[%s227 + $0x28] sm:$0xff] %vm3158, %v3635
        %4254 = vst.msk [vmem:[%s227 + $0x30] sm:$0xff] %vm3158, %v3640
        %4255 = vst.msk [vmem:[%s227 + $0x38] sm:$0xff] %vm3158, %v3645
        %4256 = vst.msk [vmem:[%s227 + $0x40] sm:$0xff] %vm3158, %v3650
        %4257 = vst.msk [vmem:[%s227 + $0x48] sm:$0xff] %vm3158, %v3655
        %4258 = vst.msk [vmem:[%s227 + $0x50] sm:$0xff] %vm3158, %v3660
        %4259 = vst.msk [vmem:[%s227 + $0x58] sm:$0xff] %vm3158, %v3665
        %4260 = vst.msk [vmem:[%s227 + $0x60] sm:$0xff] %vm3158, %v3670
        %4261 = vst.msk [vmem:[%s227 + $0x68] sm:$0xff] %vm3158, %v3675
        %4262 = vst.msk [vmem:[%s227 + $0x70] sm:$0xff] %vm3158, %v3680
        %4263 = vst.msk [vmem:[%s227 + $0x78] sm:$0xff] %vm3158, %v3685
        %4264 = vst.msk [vmem:[%s227 + $0x80] sm:$0xff] %vm3158, %v3690
        %4265 = vst.msk [vmem:[%s227 + $0x88] sm:$0xff] %vm3158, %v3695
        %4266 = vst.msk [vmem:[%s227 + $0x90] sm:$0xff] %vm3158, %v3700
        %4267 = vst.msk [vmem:[%s227 + $0x98] sm:$0xff] %vm3158, %v3705
        %4268 = vst.msk [vmem:[%s227 + $0xa0] sm:$0xff] %vm3158, %v3710
        %4269 = vst.msk [vmem:[%s227 + $0xa8] sm:$0xff] %vm3158, %v3715
        %4270 = vst.msk [vmem:[%s227 + $0xb0] sm:$0xff] %vm3158, %v3720
        %4271 = vst.msk [vmem:[%s227 + $0xb8] sm:$0xff] %vm3158, %v3725
        %4272 = vst.msk [vmem:[%s227 + $0xc0] sm:$0xff] %vm3158, %v3730
        %4273 = vst.msk [vmem:[%s227 + $0xc8] sm:$0xff] %vm3158, %v3735
        %4274 = vst.msk [vmem:[%s227 + $0xd0] sm:$0xff] %vm3158, %v3740
        %4275 = vst.msk [vmem:[%s227 + $0xd8] sm:$0xff] %vm3158, %v3745
        %4276 = vst.msk [vmem:[%s227 + $0xe0] sm:$0xff] %vm3158, %v3750
        %4277 = vst.msk [vmem:[%s227 + $0xe8] sm:$0xff] %vm3158, %v3755
        %4278 = vst.msk [vmem:[%s227 + $0xf0] sm:$0xff] %vm3158, %v3760
        %4279 = vst.msk [vmem:[%s227 + $0xf8] sm:$0xff] %vm3158, %v3765
        %4280 = vst.msk [vmem:[%s227 + $0x100] sm:$0xff] %vm3158, %v3770
        %4281 = vst.msk [vmem:[%s227 + $0x108] sm:$0xff] %vm3158, %v3775
        %4282 = vst.msk [vmem:[%s227 + $0x110] sm:$0xff] %vm3158, %v3780
        %4283 = vst.msk [vmem:[%s227 + $0x118] sm:$0xff] %vm3158, %v3785
        %4284 = vst.msk [vmem:[%s227 + $0x120] sm:$0xff] %vm3158, %v3790
        %4285 = vst.msk [vmem:[%s227 + $0x128] sm:$0xff] %vm3158, %v3795
        %4286 = vst.msk [vmem:[%s227 + $0x130] sm:$0xff] %vm3158, %v3800
        %4287 = vst.msk [vmem:[%s227 + $0x138] sm:$0xff] %vm3158, %v3805
        %4288 = vst.msk [vmem:[%s227 + $0x140] sm:$0xff] %vm3158, %v3810
        %4289 = vst.msk [vmem:[%s227 + $0x148] sm:$0xff] %vm3158, %v3815
        %4290 = vst.msk [vmem:[%s227 + $0x150] sm:$0xff] %vm3158, %v3820
        %4291 = vst.msk [vmem:[%s227 + $0x158] sm:$0xff] %vm3158, %v3825
        %4292 = vst.msk [vmem:[%s227 + $0x160] sm:$0xff] %vm3158, %v3830
        %4293 = vst.msk [vmem:[%s227 + $0x168] sm:$0xff] %vm3158, %v3835
        %4294 = vst.msk [vmem:[%s227 + $0x170] sm:$0xff] %vm3158, %v3840
        %4295 = vst.msk [vmem:[%s227 + $0x178] sm:$0xff] %vm3158, %v3845
        %4296 = vst.msk [vmem:[%s227 + $0x180] sm:$0xff] %vm3158, %v3850
        %4297 = vst.msk [vmem:[%s227 + $0x188] sm:$0xff] %vm3158, %v3855
        %4298 = vst.msk [vmem:[%s227 + $0x190] sm:$0xff] %vm3158, %v3860
        %4299 = vst.msk [vmem:[%s227 + $0x198] sm:$0xff] %vm3158, %v3865
        %4300 = vst.msk [vmem:[%s227 + $0x1a0] sm:$0xff] %vm3158, %v3870
        %4301 = vst.msk [vmem:[%s227 + $0x1a8] sm:$0xff] %vm3158, %v3875
        %4302 = vst.msk [vmem:[%s227 + $0x1b0] sm:$0xff] %vm3158, %v3880
        %4303 = vst.msk [vmem:[%s227 + $0x1b8] sm:$0xff] %vm3158, %v3885
        %4304 = vst.msk [vmem:[%s227 + $0x1c0] sm:$0xff] %vm3158, %v3890
        %4305 = vst.msk [vmem:[%s227 + $0x1c8] sm:$0xff] %vm3158, %v3895
        %4306 = vst.msk [vmem:[%s227 + $0x1d0] sm:$0xff] %vm3158, %v3900
        %4307 = vst.msk [vmem:[%s227 + $0x1d8] sm:$0xff] %vm3158, %v3905
        %4308 = vst.msk [vmem:[%s227 + $0x1e0] sm:$0xff] %vm3158, %v3910
        %4309 = vst.msk [vmem:[%s227 + $0x1e8] sm:$0xff] %vm3158, %v3915
        %4310 = vst.msk [vmem:[%s227 + $0x1f0] sm:$0xff] %vm3158, %v3920
        %4311 = vst.msk [vmem:[%s227 + $0x1f8] sm:$0xff] %vm3158, %v3925
        %4312 = vst.msk [vmem:[%s227 + $0x200] sm:$0xff] %vm3158, %v3930
        %4313 = vst.msk [vmem:[%s227 + $0x208] sm:$0xff] %vm3158, %v3935
        %4314 = vst.msk [vmem:[%s227 + $0x210] sm:$0xff] %vm3158, %v3940
        %4315 = vst.msk [vmem:[%s227 + $0x218] sm:$0xff] %vm3158, %v3945
        %4316 = vst.msk [vmem:[%s227 + $0x220] sm:$0xff] %vm3158, %v3950
        %4317 = vst.msk [vmem:[%s227 + $0x228] sm:$0xff] %vm3158, %v3955
        %4318 = vst.msk [vmem:[%s227 + $0x230] sm:$0xff] %vm3158, %v3960
        %4319 = vst.msk [vmem:[%s227 + $0x238] sm:$0xff] %vm3158, %v3965
        %4320 = vst.msk [vmem:[%s227 + $0x240] sm:$0xff] %vm3158, %v3970
        %4321 = vst.msk [vmem:[%s227 + $0x248] sm:$0xff] %vm3158, %v3975
        %4322 = vst.msk [vmem:[%s227 + $0x250] sm:$0xff] %vm3158, %v3980
        %4323 = vst.msk [vmem:[%s227 + $0x258] sm:$0xff] %vm3158, %v3985
        %4324 = vst.msk [vmem:[%s227 + $0x260] sm:$0xff] %vm3158, %v3990
        %4325 = vst.msk [vmem:[%s227 + $0x268] sm:$0xff] %vm3158, %v3995
        %4326 = vst.msk [vmem:[%s227 + $0x270] sm:$0xff] %vm3158, %v4000
        %4327 = vst.msk [vmem:[%s227 + $0x278] sm:$0xff] %vm3158, %v4005
        %4328 = vst.msk [vmem:[%s227 + $0x280] sm:$0xff] %vm3158, %v4010
        %4329 = vst.msk [vmem:[%s227 + $0x288] sm:$0xff] %vm3158, %v4015
        %4330 = vst.msk [vmem:[%s227 + $0x290] sm:$0xff] %vm3158, %v4020
        %4331 = vst.msk [vmem:[%s227 + $0x298] sm:$0xff] %vm3158, %v4025
        %4332 = vst.msk [vmem:[%s227 + $0x2a0] sm:$0xff] %vm3158, %v4030
        %4333 = vst.msk [vmem:[%s227 + $0x2a8] sm:$0xff] %vm3158, %v4035
        %4334 = vst.msk [vmem:[%s227 + $0x2b0] sm:$0xff] %vm3158, %v4040
        %4335 = vst.msk [vmem:[%s227 + $0x2b8] sm:$0xff] %vm3158, %v4045
        %4336 = vst.msk [vmem:[%s227 + $0x2c0] sm:$0xff] %vm3158, %v4050
        %4337 = vst.msk [vmem:[%s227 + $0x2c8] sm:$0xff] %vm3158, %v4055
        %4338 = vst.msk [vmem:[%s227 + $0x2d0] sm:$0xff] %vm3158, %v4060
        %4339 = vst.msk [vmem:[%s227 + $0x2d8] sm:$0xff] %vm3158, %v4065
        %4340 = vst.msk [vmem:[%s227 + $0x2e0] sm:$0xff] %vm3158, %v4070
        %4341 = vst.msk [vmem:[%s227 + $0x2e8] sm:$0xff] %vm3158, %v4075
        %4342 = vst.msk [vmem:[%s227 + $0x2f0] sm:$0xff] %vm3158, %v4080
        %4343 = vst.msk [vmem:[%s227 + $0x2f8] sm:$0xff] %vm3158, %v4085
        %4344 = vst.msk [vmem:[%s227 + $0x300] sm:$0xff] %vm3158, %v4090
        %4345 = vst.msk [vmem:[%s227 + $0x308] sm:$0xff] %vm3158, %v4095
        %4346 = vst.msk [vmem:[%s227 + $0x310] sm:$0xff] %vm3158, %v4100
        %4347 = vst.msk [vmem:[%s227 + $0x318] sm:$0xff] %vm3158, %v4105
        %4348 = vst.msk [vmem:[%s227 + $0x320] sm:$0xff] %vm3158, %v4110
        %4349 = vst.msk [vmem:[%s227 + $0x328] sm:$0xff] %vm3158, %v4115
        %4350 = vst.msk [vmem:[%s227 + $0x330] sm:$0xff] %vm3158, %v4120
        %4351 = vst.msk [vmem:[%s227 + $0x338] sm:$0xff] %vm3158, %v4125
        %4352 = vst.msk [vmem:[%s227 + $0x340] sm:$0xff] %vm3158, %v4130
        %4353 = vst.msk [vmem:[%s227 + $0x348] sm:$0xff] %vm3158, %v4135
        %4354 = vst.msk [vmem:[%s227 + $0x350] sm:$0xff] %vm3158, %v4140
        %4355 = vst.msk [vmem:[%s227 + $0x358] sm:$0xff] %vm3158, %v4145
        %4356 = vst.msk [vmem:[%s227 + $0x360] sm:$0xff] %vm3158, %v4150
        %4357 = vst.msk [vmem:[%s227 + $0x368] sm:$0xff] %vm3158, %v4155
        %4358 = vst.msk [vmem:[%s227 + $0x370] sm:$0xff] %vm3158, %v4160
        %4359 = vst.msk [vmem:[%s227 + $0x378] sm:$0xff] %vm3158, %v4165
        %4360 = vst.msk [vmem:[%s227 + $0x380] sm:$0xff] %vm3158, %v4170
        %4361 = vst.msk [vmem:[%s227 + $0x388] sm:$0xff] %vm3158, %v4175
        %4362 = vst.msk [vmem:[%s227 + $0x390] sm:$0xff] %vm3158, %v4180
        %4363 = vst.msk [vmem:[%s227 + $0x398] sm:$0xff] %vm3158, %v4185
        %4364 = vst.msk [vmem:[%s227 + $0x3a0] sm:$0xff] %vm3158, %v4190
        %4365 = vst.msk [vmem:[%s227 + $0x3a8] sm:$0xff] %vm3158, %v4195
        %4366 = vst.msk [vmem:[%s227 + $0x3b0] sm:$0xff] %vm3158, %v4200
        %4367 = vst.msk [vmem:[%s227 + $0x3b8] sm:$0xff] %vm3158, %v4205
        %4368 = vst.msk [vmem:[%s227 + $0x3c0] sm:$0xff] %vm3158, %v4210
        %4369 = vst.msk [vmem:[%s227 + $0x3c8] sm:$0xff] %vm3158, %v4215
        %4370 = vst.msk [vmem:[%s227 + $0x3d0] sm:$0xff] %vm3158, %v4220
        %4371 = vst.msk [vmem:[%s227 + $0x3d8] sm:$0xff] %vm3158, %v4225
        %4372 = vst.msk [vmem:[%s227 + $0x3e0] sm:$0xff] %vm3158, %v4230
        %4373 = vst.msk [vmem:[%s227 + $0x3e8] sm:$0xff] %vm3158, %v4235
        %4374 = vst.msk [vmem:[%s227 + $0x3f0] sm:$0xff] %vm3158, %v4240
        %4375 = vst.msk [vmem:[%s227 + $0x3f8] sm:$0xff] %vm3158, %v4245
        %s4376 = sand.u32 %s117, 1
        %s4377 = sand.u32 %s117, 1
        %s4378 = smul.addr %s4377, 1024
        %s4379 = scalar_lea.vmem [#allocation2], %s4378
        // Predicated region
        $region37: #{tpu_custom_call.1} parent=35 // pred_check
          %p4380 = pneg %p127
        $region38: #{tpu_custom_call.1} parent=35 // pred_check_branch
          %4382 = sbr.rel (%p4380) target = $region40
        $region39: #{tpu_custom_call.1} parent=35 // pred_region
          %s4383 = smul.u32 128, %s15
          %s4384 = ssub.s32 313, %s4383
          %p4385 = scmp.lt.s32.totalorder %s4384, 128
          %s4386 = scalar_select %p4385, %s4384, 128
          %s4387 = smul.u32 128, %s4386
          %p4388 = scmp.ne.s32.totalorder 0, %s4387
          %s4389 = smul.addr %s4383, 8
          %s4390 = scalar_lea.vmem %s4, %s4389
          // Predicated region
          $region41: #{tpu_custom_call.1} parent=39 // pred_check
            %p4391 = pneg %p4388
          $region42: #{tpu_custom_call.1} parent=39 // pred_check_branch
            %4393 = sbr.rel (%p4391) target = $region44
          $region43: #{tpu_custom_call.1} parent=39 // pred_region
            // Predicated region
            $region45: #{tpu_custom_call.1} parent=43 // pred_check
              _
            $region46: #{tpu_custom_call.1} parent=43 // pred_check_branch
              %4395 = sbr.rel (0) target = $region48
            $region47: #{tpu_custom_call.1} parent=43 // pred_region
              // Predicated region
              $region67: #{tpu_custom_call.1} parent=47 // pred_check
                _
              $region68: #{tpu_custom_call.1} parent=47 // pred_check_branch
                %4571 = sbr.rel (0) target = $region70
              $region69: #{tpu_custom_call.1} parent=47 // pred_region
                %s4572 = sshrl.u32 %s4386, 6
                // While loop
                $region71: #{tpu_custom_call.1} parent=69 // loop_pre_header
                  _
                $region72: #{tpu_custom_call.1} parent=69 // loop_header
                  %s4574 = sphi 0, %s4576
                  %p4575 = scmp.ge.s32.totalorder %s4574, %s4572
                  %s4579 = sphi 0, %s4712
                  %s4580 = sphi %s4379, %s4715
                  %s4581 = sphi %s4390, %s4716
                $region73: #{tpu_custom_call.1} parent=69 // loop_header_branch
                  %4578 = sbr.rel (%p4575) target = $region77
                $region74: #{tpu_custom_call.1} parent=69 // loop_body
                  %v4582 = vld [vmem:[%s4580] sm:$0xff]
                  %4583 = vst [vmem:[%s4581] sm:$0xff] %v4582
                  %v4584 = vld [vmem:[%s4580 + $0x8] sm:$0xff]
                  %4585 = vst [vmem:[%s4581 + $0x8] sm:$0xff] %v4584
                  %v4586 = vld [vmem:[%s4580 + $0x10] sm:$0xff]
                  %4587 = vst [vmem:[%s4581 + $0x10] sm:$0xff] %v4586
                  %v4588 = vld [vmem:[%s4580 + $0x18] sm:$0xff]
                  %4589 = vst [vmem:[%s4581 + $0x18] sm:$0xff] %v4588
                  %v4590 = vld [vmem:[%s4580 + $0x20] sm:$0xff]
                  %4591 = vst [vmem:[%s4581 + $0x20] sm:$0xff] %v4590
                  %v4592 = vld [vmem:[%s4580 + $0x28] sm:$0xff]
                  %4593 = vst [vmem:[%s4581 + $0x28] sm:$0xff] %v4592
                  %v4594 = vld [vmem:[%s4580 + $0x30] sm:$0xff]
                  %4595 = vst [vmem:[%s4581 + $0x30] sm:$0xff] %v4594
                  %v4596 = vld [vmem:[%s4580 + $0x38] sm:$0xff]
                  %4597 = vst [vmem:[%s4581 + $0x38] sm:$0xff] %v4596
                  %v4598 = vld [vmem:[%s4580 + $0x40] sm:$0xff]
                  %4599 = vst [vmem:[%s4581 + $0x40] sm:$0xff] %v4598
                  %v4600 = vld [vmem:[%s4580 + $0x48] sm:$0xff]
                  %4601 = vst [vmem:[%s4581 + $0x48] sm:$0xff] %v4600
                  %v4602 = vld [vmem:[%s4580 + $0x50] sm:$0xff]
                  %4603 = vst [vmem:[%s4581 + $0x50] sm:$0xff] %v4602
                  %v4604 = vld [vmem:[%s4580 + $0x58] sm:$0xff]
                  %4605 = vst [vmem:[%s4581 + $0x58] sm:$0xff] %v4604
                  %v4606 = vld [vmem:[%s4580 + $0x60] sm:$0xff]
                  %4607 = vst [vmem:[%s4581 + $0x60] sm:$0xff] %v4606
                  %v4608 = vld [vmem:[%s4580 + $0x68] sm:$0xff]
                  %4609 = vst [vmem:[%s4581 + $0x68] sm:$0xff] %v4608
                  %v4610 = vld [vmem:[%s4580 + $0x70] sm:$0xff]
                  %4611 = vst [vmem:[%s4581 + $0x70] sm:$0xff] %v4610
                  %v4612 = vld [vmem:[%s4580 + $0x78] sm:$0xff]
                  %4613 = vst [vmem:[%s4581 + $0x78] sm:$0xff] %v4612
                  %v4614 = vld [vmem:[%s4580 + $0x80] sm:$0xff]
                  %4615 = vst [vmem:[%s4581 + $0x80] sm:$0xff] %v4614
                  %v4616 = vld [vmem:[%s4580 + $0x88] sm:$0xff]
                  %4617 = vst [vmem:[%s4581 + $0x88] sm:$0xff] %v4616
                  %v4618 = vld [vmem:[%s4580 + $0x90] sm:$0xff]
                  %4619 = vst [vmem:[%s4581 + $0x90] sm:$0xff] %v4618
                  %v4620 = vld [vmem:[%s4580 + $0x98] sm:$0xff]
                  %4621 = vst [vmem:[%s4581 + $0x98] sm:$0xff] %v4620
                  %v4622 = vld [vmem:[%s4580 + $0xa0] sm:$0xff]
                  %4623 = vst [vmem:[%s4581 + $0xa0] sm:$0xff] %v4622
                  %v4624 = vld [vmem:[%s4580 + $0xa8] sm:$0xff]
                  %4625 = vst [vmem:[%s4581 + $0xa8] sm:$0xff] %v4624
                  %v4626 = vld [vmem:[%s4580 + $0xb0] sm:$0xff]
                  %4627 = vst [vmem:[%s4581 + $0xb0] sm:$0xff] %v4626
                  %v4628 = vld [vmem:[%s4580 + $0xb8] sm:$0xff]
                  %4629 = vst [vmem:[%s4581 + $0xb8] sm:$0xff] %v4628
                  %v4630 = vld [vmem:[%s4580 + $0xc0] sm:$0xff]
                  %4631 = vst [vmem:[%s4581 + $0xc0] sm:$0xff] %v4630
                  %v4632 = vld [vmem:[%s4580 + $0xc8] sm:$0xff]
                  %4633 = vst [vmem:[%s4581 + $0xc8] sm:$0xff] %v4632
                  %v4634 = vld [vmem:[%s4580 + $0xd0] sm:$0xff]
                  %4635 = vst [vmem:[%s4581 + $0xd0] sm:$0xff] %v4634
                  %v4636 = vld [vmem:[%s4580 + $0xd8] sm:$0xff]
                  %4637 = vst [vmem:[%s4581 + $0xd8] sm:$0xff] %v4636
                  %v4638 = vld [vmem:[%s4580 + $0xe0] sm:$0xff]
                  %4639 = vst [vmem:[%s4581 + $0xe0] sm:$0xff] %v4638
                  %v4640 = vld [vmem:[%s4580 + $0xe8] sm:$0xff]
                  %4641 = vst [vmem:[%s4581 + $0xe8] sm:$0xff] %v4640
                  %v4642 = vld [vmem:[%s4580 + $0xf0] sm:$0xff]
                  %4643 = vst [vmem:[%s4581 + $0xf0] sm:$0xff] %v4642
                  %v4644 = vld [vmem:[%s4580 + $0xf8] sm:$0xff]
                  %4645 = vst [vmem:[%s4581 + $0xf8] sm:$0xff] %v4644
                  %v4646 = vld [vmem:[%s4580 + $0x100] sm:$0xff]
                  %4647 = vst [vmem:[%s4581 + $0x100] sm:$0xff] %v4646
                  %v4648 = vld [vmem:[%s4580 + $0x108] sm:$0xff]
                  %4649 = vst [vmem:[%s4581 + $0x108] sm:$0xff] %v4648
                  %v4650 = vld [vmem:[%s4580 + $0x110] sm:$0xff]
                  %4651 = vst [vmem:[%s4581 + $0x110] sm:$0xff] %v4650
                  %v4652 = vld [vmem:[%s4580 + $0x118] sm:$0xff]
                  %4653 = vst [vmem:[%s4581 + $0x118] sm:$0xff] %v4652
                  %v4654 = vld [vmem:[%s4580 + $0x120] sm:$0xff]
                  %4655 = vst [vmem:[%s4581 + $0x120] sm:$0xff] %v4654
                  %v4656 = vld [vmem:[%s4580 + $0x128] sm:$0xff]
                  %4657 = vst [vmem:[%s4581 + $0x128] sm:$0xff] %v4656
                  %v4658 = vld [vmem:[%s4580 + $0x130] sm:$0xff]
                  %4659 = vst [vmem:[%s4581 + $0x130] sm:$0xff] %v4658
                  %v4660 = vld [vmem:[%s4580 + $0x138] sm:$0xff]
                  %4661 = vst [vmem:[%s4581 + $0x138] sm:$0xff] %v4660
                  %v4662 = vld [vmem:[%s4580 + $0x140] sm:$0xff]
                  %4663 = vst [vmem:[%s4581 + $0x140] sm:$0xff] %v4662
                  %v4664 = vld [vmem:[%s4580 + $0x148] sm:$0xff]
                  %4665 = vst [vmem:[%s4581 + $0x148] sm:$0xff] %v4664
                  %v4666 = vld [vmem:[%s4580 + $0x150] sm:$0xff]
                  %4667 = vst [vmem:[%s4581 + $0x150] sm:$0xff] %v4666
                  %v4668 = vld [vmem:[%s4580 + $0x158] sm:$0xff]
                  %4669 = vst [vmem:[%s4581 + $0x158] sm:$0xff] %v4668
                  %v4670 = vld [vmem:[%s4580 + $0x160] sm:$0xff]
                  %4671 = vst [vmem:[%s4581 + $0x160] sm:$0xff] %v4670
                  %v4672 = vld [vmem:[%s4580 + $0x168] sm:$0xff]
                  %4673 = vst [vmem:[%s4581 + $0x168] sm:$0xff] %v4672
                  %v4674 = vld [vmem:[%s4580 + $0x170] sm:$0xff]
                  %4675 = vst [vmem:[%s4581 + $0x170] sm:$0xff] %v4674
                  %v4676 = vld [vmem:[%s4580 + $0x178] sm:$0xff]
                  %4677 = vst [vmem:[%s4581 + $0x178] sm:$0xff] %v4676
                  %v4678 = vld [vmem:[%s4580 + $0x180] sm:$0xff]
                  %4679 = vst [vmem:[%s4581 + $0x180] sm:$0xff] %v4678
                  %v4680 = vld [vmem:[%s4580 + $0x188] sm:$0xff]
                  %4681 = vst [vmem:[%s4581 + $0x188] sm:$0xff] %v4680
                  %v4682 = vld [vmem:[%s4580 + $0x190] sm:$0xff]
                  %4683 = vst [vmem:[%s4581 + $0x190] sm:$0xff] %v4682
                  %v4684 = vld [vmem:[%s4580 + $0x198] sm:$0xff]
                  %4685 = vst [vmem:[%s4581 + $0x198] sm:$0xff] %v4684
                  %v4686 = vld [vmem:[%s4580 + $0x1a0] sm:$0xff]
                  %4687 = vst [vmem:[%s4581 + $0x1a0] sm:$0xff] %v4686
                  %v4688 = vld [vmem:[%s4580 + $0x1a8] sm:$0xff]
                  %4689 = vst [vmem:[%s4581 + $0x1a8] sm:$0xff] %v4688
                  %v4690 = vld [vmem:[%s4580 + $0x1b0] sm:$0xff]
                  %4691 = vst [vmem:[%s4581 + $0x1b0] sm:$0xff] %v4690
                  %v4692 = vld [vmem:[%s4580 + $0x1b8] sm:$0xff]
                  %4693 = vst [vmem:[%s4581 + $0x1b8] sm:$0xff] %v4692
                  %v4694 = vld [vmem:[%s4580 + $0x1c0] sm:$0xff]
                  %4695 = vst [vmem:[%s4581 + $0x1c0] sm:$0xff] %v4694
                  %v4696 = vld [vmem:[%s4580 + $0x1c8] sm:$0xff]
                  %4697 = vst [vmem:[%s4581 + $0x1c8] sm:$0xff] %v4696
                  %v4698 = vld [vmem:[%s4580 + $0x1d0] sm:$0xff]
                  %4699 = vst [vmem:[%s4581 + $0x1d0] sm:$0xff] %v4698
                  %v4700 = vld [vmem:[%s4580 + $0x1d8] sm:$0xff]
                  %4701 = vst [vmem:[%s4581 + $0x1d8] sm:$0xff] %v4700
                  %v4702 = vld [vmem:[%s4580 + $0x1e0] sm:$0xff]
                  %4703 = vst [vmem:[%s4581 + $0x1e0] sm:$0xff] %v4702
                  %v4704 = vld [vmem:[%s4580 + $0x1e8] sm:$0xff]
                  %4705 = vst [vmem:[%s4581 + $0x1e8] sm:$0xff] %v4704
                  %v4706 = vld [vmem:[%s4580 + $0x1f0] sm:$0xff]
                  %4707 = vst [vmem:[%s4581 + $0x1f0] sm:$0xff] %v4706
                  %v4708 = vld [vmem:[%s4580 + $0x1f8] sm:$0xff]
                  %4709 = vst [vmem:[%s4581 + $0x1f8] sm:$0xff] %v4708
                  %s4710 = sadd.s32 1, %s4579
                  %p4711 = scmp.ge.s32.totalorder %s4710, %s4572
                  %s4712 = scalar_select %p4711, 0, %s4710
                  %s4713 = smul.u32 %s4712, 512
                  %s4714 = smul.u32 %s4712, 512
                  %s4715 = scalar_lea.vmem %s4379, %s4713 [#allocation2]
                  %s4716 = scalar_lea.vmem %s4390, %s4714
                $region75: #{tpu_custom_call.1} parent=69 // loop_footer
                  %s4576 = sadd.s32 %s4574, 1
                $region76: #{tpu_custom_call.1} parent=69 // loop_footer_branch
                  %4573 = sbr.rel target = $region72
                $region77: #{tpu_custom_call.1} parent=69 // loop_exit
                  _
                %s4717 = sshrl.u32 %s4386, 6
                %s4718 = sand.u32 %s4386, 63
                %s4719 = smul.u32 %s4717, 64
                %s4720 = smul.u32 8, %s4719
                %s4721 = scalar_lea.vmem %s4379, %s4720 [#allocation2]
                %s4722 = smul.u32 8, %s4719
                %s4723 = scalar_lea.vmem %s4390, %s4722
                // While loop
                $region78: #{tpu_custom_call.1} parent=69 // loop_pre_header
                  _
                $region79: #{tpu_custom_call.1} parent=69 // loop_header
                  %s4725 = sphi 0, %s4727
                  %p4726 = scmp.ge.s32.totalorder %s4725, %s4718
                  %s4730 = sphi 0, %s4737
                  %s4731 = sphi %s4721, %s4740
                  %s4732 = sphi %s4723, %s4741
                $region80: #{tpu_custom_call.1} parent=69 // loop_header_branch
                  %4729 = sbr.rel (%p4726) target = $region84
                $region81: #{tpu_custom_call.1} parent=69 // loop_body
                  %v4733 = vld [vmem:[%s4731] sm:$0xff]
                  %4734 = vst [vmem:[%s4732] sm:$0xff] %v4733
                  %s4735 = sadd.s32 1, %s4730
                  %p4736 = scmp.ge.s32.totalorder %s4735, %s4718
                  %s4737 = scalar_select %p4736, 0, %s4735
                  %s4738 = smul.u32 %s4737, 8
                  %s4739 = smul.u32 %s4737, 8
                  %s4740 = scalar_lea.vmem %s4721, %s4738 [#allocation2]
                  %s4741 = scalar_lea.vmem %s4723, %s4739
                $region82: #{tpu_custom_call.1} parent=69 // loop_footer
                  %s4727 = sadd.s32 %s4725, 1
                $region83: #{tpu_custom_call.1} parent=69 // loop_footer_branch
                  %4724 = sbr.rel target = $region79
                $region84: #{tpu_custom_call.1} parent=69 // loop_exit
                  _
              $region70: #{tpu_custom_call.1} parent=47 // pred_fallthru
                _
              // Predicated region
              $region85: #{tpu_custom_call.1} parent=47 // pred_check
                _
              $region86: #{tpu_custom_call.1} parent=47 // pred_check_branch
                %4743 = sbr.rel target = $region88
              $region87: #{tpu_custom_call.1} parent=47 // pred_region
                _
              $region88: #{tpu_custom_call.1} parent=47 // pred_fallthru
                _
            $region48: #{tpu_custom_call.1} parent=43 // pred_fallthru
              _
            // Predicated region
            $region49: #{tpu_custom_call.1} parent=43 // pred_check
              _
            $region50: #{tpu_custom_call.1} parent=43 // pred_check_branch
              %4397 = sbr.rel target = $region52
            $region51: #{tpu_custom_call.1} parent=43 // pred_region
              %s4399 = ssub.s32 256, 1
              %s4400 = sshrl.u32 %s4386, 6
              // While loop
              $region53: #{tpu_custom_call.1} parent=51 // loop_pre_header
                _
              $region54: #{tpu_custom_call.1} parent=51 // loop_header
                %s4402 = sphi 0, %s4404
                %p4403 = scmp.ge.s32.totalorder %s4402, %s4400
                %s4407 = sphi 0, %s4540
                %s4408 = sphi %s4379, %s4543
                %s4409 = sphi %s4390, %s4544
              $region55: #{tpu_custom_call.1} parent=51 // loop_header_branch
                %4406 = sbr.rel (%p4403) target = $region59
              $region56: #{tpu_custom_call.1} parent=51 // loop_body
                %v4410 = vld [vmem:[%s4408] sm:%s4399]
                %4411 = vst [vmem:[%s4409] sm:%s4399] %v4410
                %v4412 = vld [vmem:[%s4408 + $0x8] sm:%s4399]
                %4413 = vst [vmem:[%s4409 + $0x8] sm:%s4399] %v4412
                %v4414 = vld [vmem:[%s4408 + $0x10] sm:%s4399]
                %4415 = vst [vmem:[%s4409 + $0x10] sm:%s4399] %v4414
                %v4416 = vld [vmem:[%s4408 + $0x18] sm:%s4399]
                %4417 = vst [vmem:[%s4409 + $0x18] sm:%s4399] %v4416
                %v4418 = vld [vmem:[%s4408 + $0x20] sm:%s4399]
                %4419 = vst [vmem:[%s4409 + $0x20] sm:%s4399] %v4418
                %v4420 = vld [vmem:[%s4408 + $0x28] sm:%s4399]
                %4421 = vst [vmem:[%s4409 + $0x28] sm:%s4399] %v4420
                %v4422 = vld [vmem:[%s4408 + $0x30] sm:%s4399]
                %4423 = vst [vmem:[%s4409 + $0x30] sm:%s4399] %v4422
                %v4424 = vld [vmem:[%s4408 + $0x38] sm:%s4399]
                %4425 = vst [vmem:[%s4409 + $0x38] sm:%s4399] %v4424
                %v4426 = vld [vmem:[%s4408 + $0x40] sm:%s4399]
                %4427 = vst [vmem:[%s4409 + $0x40] sm:%s4399] %v4426
                %v4428 = vld [vmem:[%s4408 + $0x48] sm:%s4399]
                %4429 = vst [vmem:[%s4409 + $0x48] sm:%s4399] %v4428
                %v4430 = vld [vmem:[%s4408 + $0x50] sm:%s4399]
                %4431 = vst [vmem:[%s4409 + $0x50] sm:%s4399] %v4430
                %v4432 = vld [vmem:[%s4408 + $0x58] sm:%s4399]
                %4433 = vst [vmem:[%s4409 + $0x58] sm:%s4399] %v4432
                %v4434 = vld [vmem:[%s4408 + $0x60] sm:%s4399]
                %4435 = vst [vmem:[%s4409 + $0x60] sm:%s4399] %v4434
                %v4436 = vld [vmem:[%s4408 + $0x68] sm:%s4399]
                %4437 = vst [vmem:[%s4409 + $0x68] sm:%s4399] %v4436
                %v4438 = vld [vmem:[%s4408 + $0x70] sm:%s4399]
                %4439 = vst [vmem:[%s4409 + $0x70] sm:%s4399] %v4438
                %v4440 = vld [vmem:[%s4408 + $0x78] sm:%s4399]
                %4441 = vst [vmem:[%s4409 + $0x78] sm:%s4399] %v4440
                %v4442 = vld [vmem:[%s4408 + $0x80] sm:%s4399]
                %4443 = vst [vmem:[%s4409 + $0x80] sm:%s4399] %v4442
                %v4444 = vld [vmem:[%s4408 + $0x88] sm:%s4399]
                %4445 = vst [vmem:[%s4409 + $0x88] sm:%s4399] %v4444
                %v4446 = vld [vmem:[%s4408 + $0x90] sm:%s4399]
                %4447 = vst [vmem:[%s4409 + $0x90] sm:%s4399] %v4446
                %v4448 = vld [vmem:[%s4408 + $0x98] sm:%s4399]
                %4449 = vst [vmem:[%s4409 + $0x98] sm:%s4399] %v4448
                %v4450 = vld [vmem:[%s4408 + $0xa0] sm:%s4399]
                %4451 = vst [vmem:[%s4409 + $0xa0] sm:%s4399] %v4450
                %v4452 = vld [vmem:[%s4408 + $0xa8] sm:%s4399]
                %4453 = vst [vmem:[%s4409 + $0xa8] sm:%s4399] %v4452
                %v4454 = vld [vmem:[%s4408 + $0xb0] sm:%s4399]
                %4455 = vst [vmem:[%s4409 + $0xb0] sm:%s4399] %v4454
                %v4456 = vld [vmem:[%s4408 + $0xb8] sm:%s4399]
                %4457 = vst [vmem:[%s4409 + $0xb8] sm:%s4399] %v4456
                %v4458 = vld [vmem:[%s4408 + $0xc0] sm:%s4399]
                %4459 = vst [vmem:[%s4409 + $0xc0] sm:%s4399] %v4458
                %v4460 = vld [vmem:[%s4408 + $0xc8] sm:%s4399]
                %4461 = vst [vmem:[%s4409 + $0xc8] sm:%s4399] %v4460
                %v4462 = vld [vmem:[%s4408 + $0xd0] sm:%s4399]
                %4463 = vst [vmem:[%s4409 + $0xd0] sm:%s4399] %v4462
                %v4464 = vld [vmem:[%s4408 + $0xd8] sm:%s4399]
                %4465 = vst [vmem:[%s4409 + $0xd8] sm:%s4399] %v4464
                %v4466 = vld [vmem:[%s4408 + $0xe0] sm:%s4399]
                %4467 = vst [vmem:[%s4409 + $0xe0] sm:%s4399] %v4466
                %v4468 = vld [vmem:[%s4408 + $0xe8] sm:%s4399]
                %4469 = vst [vmem:[%s4409 + $0xe8] sm:%s4399] %v4468
                %v4470 = vld [vmem:[%s4408 + $0xf0] sm:%s4399]
                %4471 = vst [vmem:[%s4409 + $0xf0] sm:%s4399] %v4470
                %v4472 = vld [vmem:[%s4408 + $0xf8] sm:%s4399]
                %4473 = vst [vmem:[%s4409 + $0xf8] sm:%s4399] %v4472
                %v4474 = vld [vmem:[%s4408 + $0x100] sm:%s4399]
                %4475 = vst [vmem:[%s4409 + $0x100] sm:%s4399] %v4474
                %v4476 = vld [vmem:[%s4408 + $0x108] sm:%s4399]
                %4477 = vst [vmem:[%s4409 + $0x108] sm:%s4399] %v4476
                %v4478 = vld [vmem:[%s4408 + $0x110] sm:%s4399]
                %4479 = vst [vmem:[%s4409 + $0x110] sm:%s4399] %v4478
                %v4480 = vld [vmem:[%s4408 + $0x118] sm:%s4399]
                %4481 = vst [vmem:[%s4409 + $0x118] sm:%s4399] %v4480
                %v4482 = vld [vmem:[%s4408 + $0x120] sm:%s4399]
                %4483 = vst [vmem:[%s4409 + $0x120] sm:%s4399] %v4482
                %v4484 = vld [vmem:[%s4408 + $0x128] sm:%s4399]
                %4485 = vst [vmem:[%s4409 + $0x128] sm:%s4399] %v4484
                %v4486 = vld [vmem:[%s4408 + $0x130] sm:%s4399]
                %4487 = vst [vmem:[%s4409 + $0x130] sm:%s4399] %v4486
                %v4488 = vld [vmem:[%s4408 + $0x138] sm:%s4399]
                %4489 = vst [vmem:[%s4409 + $0x138] sm:%s4399] %v4488
                %v4490 = vld [vmem:[%s4408 + $0x140] sm:%s4399]
                %4491 = vst [vmem:[%s4409 + $0x140] sm:%s4399] %v4490
                %v4492 = vld [vmem:[%s4408 + $0x148] sm:%s4399]
                %4493 = vst [vmem:[%s4409 + $0x148] sm:%s4399] %v4492
                %v4494 = vld [vmem:[%s4408 + $0x150] sm:%s4399]
                %4495 = vst [vmem:[%s4409 + $0x150] sm:%s4399] %v4494
                %v4496 = vld [vmem:[%s4408 + $0x158] sm:%s4399]
                %4497 = vst [vmem:[%s4409 + $0x158] sm:%s4399] %v4496
                %v4498 = vld [vmem:[%s4408 + $0x160] sm:%s4399]
                %4499 = vst [vmem:[%s4409 + $0x160] sm:%s4399] %v4498
                %v4500 = vld [vmem:[%s4408 + $0x168] sm:%s4399]
                %4501 = vst [vmem:[%s4409 + $0x168] sm:%s4399] %v4500
                %v4502 = vld [vmem:[%s4408 + $0x170] sm:%s4399]
                %4503 = vst [vmem:[%s4409 + $0x170] sm:%s4399] %v4502
                %v4504 = vld [vmem:[%s4408 + $0x178] sm:%s4399]
                %4505 = vst [vmem:[%s4409 + $0x178] sm:%s4399] %v4504
                %v4506 = vld [vmem:[%s4408 + $0x180] sm:%s4399]
                %4507 = vst [vmem:[%s4409 + $0x180] sm:%s4399] %v4506
                %v4508 = vld [vmem:[%s4408 + $0x188] sm:%s4399]
                %4509 = vst [vmem:[%s4409 + $0x188] sm:%s4399] %v4508
                %v4510 = vld [vmem:[%s4408 + $0x190] sm:%s4399]
                %4511 = vst [vmem:[%s4409 + $0x190] sm:%s4399] %v4510
                %v4512 = vld [vmem:[%s4408 + $0x198] sm:%s4399]
                %4513 = vst [vmem:[%s4409 + $0x198] sm:%s4399] %v4512
                %v4514 = vld [vmem:[%s4408 + $0x1a0] sm:%s4399]
                %4515 = vst [vmem:[%s4409 + $0x1a0] sm:%s4399] %v4514
                %v4516 = vld [vmem:[%s4408 + $0x1a8] sm:%s4399]
                %4517 = vst [vmem:[%s4409 + $0x1a8] sm:%s4399] %v4516
                %v4518 = vld [vmem:[%s4408 + $0x1b0] sm:%s4399]
                %4519 = vst [vmem:[%s4409 + $0x1b0] sm:%s4399] %v4518
                %v4520 = vld [vmem:[%s4408 + $0x1b8] sm:%s4399]
                %4521 = vst [vmem:[%s4409 + $0x1b8] sm:%s4399] %v4520
                %v4522 = vld [vmem:[%s4408 + $0x1c0] sm:%s4399]
                %4523 = vst [vmem:[%s4409 + $0x1c0] sm:%s4399] %v4522
                %v4524 = vld [vmem:[%s4408 + $0x1c8] sm:%s4399]
                %4525 = vst [vmem:[%s4409 + $0x1c8] sm:%s4399] %v4524
                %v4526 = vld [vmem:[%s4408 + $0x1d0] sm:%s4399]
                %4527 = vst [vmem:[%s4409 + $0x1d0] sm:%s4399] %v4526
                %v4528 = vld [vmem:[%s4408 + $0x1d8] sm:%s4399]
                %4529 = vst [vmem:[%s4409 + $0x1d8] sm:%s4399] %v4528
                %v4530 = vld [vmem:[%s4408 + $0x1e0] sm:%s4399]
                %4531 = vst [vmem:[%s4409 + $0x1e0] sm:%s4399] %v4530
                %v4532 = vld [vmem:[%s4408 + $0x1e8] sm:%s4399]
                %4533 = vst [vmem:[%s4409 + $0x1e8] sm:%s4399] %v4532
                %v4534 = vld [vmem:[%s4408 + $0x1f0] sm:%s4399]
                %4535 = vst [vmem:[%s4409 + $0x1f0] sm:%s4399] %v4534
                %v4536 = vld [vmem:[%s4408 + $0x1f8] sm:%s4399]
                %4537 = vst [vmem:[%s4409 + $0x1f8] sm:%s4399] %v4536
                %s4538 = sadd.s32 1, %s4407
                %p4539 = scmp.ge.s32.totalorder %s4538, %s4400
                %s4540 = scalar_select %p4539, 0, %s4538
                %s4541 = smul.u32 %s4540, 512
                %s4542 = smul.u32 %s4540, 512
                %s4543 = scalar_lea.vmem %s4379, %s4541 [#allocation2]
                %s4544 = scalar_lea.vmem %s4390, %s4542
              $region57: #{tpu_custom_call.1} parent=51 // loop_footer
                %s4404 = sadd.s32 %s4402, 1
              $region58: #{tpu_custom_call.1} parent=51 // loop_footer_branch
                %4401 = sbr.rel target = $region54
              $region59: #{tpu_custom_call.1} parent=51 // loop_exit
                _
              %s4545 = sshrl.u32 %s4386, 6
              %s4546 = sand.u32 %s4386, 63
              %s4547 = smul.u32 %s4545, 64
              %s4548 = smul.u32 8, %s4547
              %s4549 = scalar_lea.vmem %s4379, %s4548 [#allocation2]
              %s4550 = smul.u32 8, %s4547
              %s4551 = scalar_lea.vmem %s4390, %s4550
              // While loop
              $region60: #{tpu_custom_call.1} parent=51 // loop_pre_header
                _
              $region61: #{tpu_custom_call.1} parent=51 // loop_header
                %s4553 = sphi 0, %s4555
                %p4554 = scmp.ge.s32.totalorder %s4553, %s4546
                %s4558 = sphi 0, %s4565
                %s4559 = sphi %s4549, %s4568
                %s4560 = sphi %s4551, %s4569
              $region62: #{tpu_custom_call.1} parent=51 // loop_header_branch
                %4557 = sbr.rel (%p4554) target = $region66
              $region63: #{tpu_custom_call.1} parent=51 // loop_body
                %v4561 = vld [vmem:[%s4559] sm:%s4399]
                %4562 = vst [vmem:[%s4560] sm:%s4399] %v4561
                %s4563 = sadd.s32 1, %s4558
                %p4564 = scmp.ge.s32.totalorder %s4563, %s4546
                %s4565 = scalar_select %p4564, 0, %s4563
                %s4566 = smul.u32 %s4565, 8
                %s4567 = smul.u32 %s4565, 8
                %s4568 = scalar_lea.vmem %s4549, %s4566 [#allocation2]
                %s4569 = scalar_lea.vmem %s4551, %s4567
              $region64: #{tpu_custom_call.1} parent=51 // loop_footer
                %s4555 = sadd.s32 %s4553, 1
              $region65: #{tpu_custom_call.1} parent=51 // loop_footer_branch
                %4552 = sbr.rel target = $region61
              $region66: #{tpu_custom_call.1} parent=51 // loop_exit
                _
            $region52: #{tpu_custom_call.1} parent=43 // pred_fallthru
              _
          $region44: #{tpu_custom_call.1} parent=39 // pred_fallthru
            _
          %4744 = vnop
        $region40: #{tpu_custom_call.1} parent=35 // pred_fallthru
          _
      $region36: #{tpu_custom_call.1} parent=5 // pred_fallthru
        _
      %p4745 = scmp.le.s32.totalorder 2, %s10
      // Predicated region
      $region89: #{tpu_custom_call.1} parent=5 // pred_check
        %p4746 = pneg %p4745
      $region90: #{tpu_custom_call.1} parent=5 // pred_check_branch
        %4748 = sbr.rel (%p4746) target = $region92
      $region91: #{tpu_custom_call.1} parent=5 // pred_region
        %s4749 = ssub.s32 %s10, 2
        // Predicated region
        $region93: #{tpu_custom_call.1} parent=91 // pred_check
          %p4750 = pneg %p133
        $region94: #{tpu_custom_call.1} parent=91 // pred_check_branch
          %4752 = sbr.rel (%p4750) target = $region96
        $region95: #{tpu_custom_call.1} parent=91 // pred_region
          %s4753 = sand.u32 %s118, 1
          %s4754 = sand.u32 %s118, 1
          %s4755 = smul.addr %s4754, 1024
          %s4756 = scalar_lea.vmem [#allocation2], %s4755
        $region96: #{tpu_custom_call.1} parent=91 // pred_fallthru
          _
      $region92: #{tpu_custom_call.1} parent=5 // pred_fallthru
        _
    $region6: #{tpu_custom_call.1} parent=1 // loop_footer
      %s14 = sadd.s32 1, %s10
    $region7: #{tpu_custom_call.1} parent=1 // loop_footer_branch
      %9 = sbr.rel target = $region3
    $region8: #{tpu_custom_call.1} parent=1 // loop_exit
      _

</llo_original>
